<compile_context>
chip_gen: v6e
topology: v6e:2x2x1
jax: 0.10.0
libtpu: 0.0.40
codegen_flags: <defaults>
</compile_context>

<pallas_src>
import functools

import jax
import jax.numpy as jnp
from jax import lax
from jax.experimental import pallas as pl
from jax.experimental.pallas import tpu as pltpu


def _gat_decoder_kernel(x_ref, adj_ref, w_ref, vec_ref, h_ref, *,
                        matmul_dtype=jnp.float32):
    x = x_ref[...]                                 # [GN, E] float32, packed group
    adj_f = adj_ref[...].astype(jnp.float32)       # [GN, GN] {0,1}, block-diagonal
    num_layers = w_ref.shape[0]
    gn, e_dim = x.shape
    neg = jnp.float32(-1e30)

    h_acc = jnp.zeros((gn, e_dim), jnp.float32)

    # TODO(synk): the reference forward calls Unpool()(x, edge_index) with a
    # signature that does not match Unpool.forward (expects data, idx,
    # orig_num_nodes); there is no consistent semantics, so unpooling is
    # treated as identity.

    for l in range(num_layers):                    # static unroll over layers
        w = w_ref[l]                               # [E, E]  GAT linear weight (bias=False)
        vecs = vec_ref[l]                          # [8, E]  packed per-layer vectors
        a_src = vecs[0:1]                          # [1, E]  attention vector (source)
        a_dst = vecs[1:2]                          # [1, E]  attention vector (target)
        bias = vecs[2:3]                           # [1, E]  GAT output bias
        gamma = vecs[3:4]                          # [1, E]  LayerNorm weight
        beta = vecs[4:5]                           # [1, E]  LayerNorm bias

        # ---------------- GATConv, heads=1 ----------------
        hw = jnp.dot(x.astype(matmul_dtype), w.astype(matmul_dtype),
                     preferred_element_type=jnp.float32)                    # [GN, E]
        # d_i = <hw_i, a_dst>: column vector via VPU multiply + XLU lane-reduce
        # (no MXU push needed; it is naturally a column).
        d = jnp.sum(hw * a_dst, axis=-1, keepdims=True)                     # [GN, 1]
        # s_j = <hw_j, a_src>: needs to land as a row -> one tiny MXU push.
        s = lax.dot_general(a_src.astype(matmul_dtype), hw.astype(matmul_dtype),
                            (((1,), (1,)), ((), ())),
                            preferred_element_type=jnp.float32)             # [1, GN]
        scores = d + s                                                      # e_ij = d_i + s_j
        scores = jnp.where(scores > 0, scores, 0.2 * scores)                # leaky_relu(0.2)
        # Masked softmax over in-neighbours.  The where-mask picks the row max
        # from edge scores only; the multiplicative adj keeps isolated rows
        # (and cross-graph entries of the block-diagonal group) exactly zero.
        masked = jnp.where(adj_f > 0.0, scores, neg)
        m = jnp.max(masked, axis=-1, keepdims=True)
        p = jnp.exp(masked - m) * adj_f
        denom = jnp.sum(p, axis=-1, keepdims=True)
        attn = p * pl.reciprocal(jnp.where(denom > 0.0, denom, 1.0), approx=True)
        out = jnp.dot(attn.astype(matmul_dtype), hw.astype(matmul_dtype),
                      preferred_element_type=jnp.float32) + bias            # [GN, E]

        # ---------------- LayerNorm (eps=1e-5, affine) ----------------
        # var = E[x^2] - mu^2 -> the two reductions are independent (shorter chain).
        mu = jnp.mean(out, axis=-1, keepdims=True)
        ms = jnp.mean(out * out, axis=-1, keepdims=True)
        var = jnp.maximum(ms - mu * mu, 0.0)
        y = (out - mu) * lax.rsqrt(var + jnp.float32(1e-5)) * gamma + beta

        # ---------------- LeakyReLU (negative_slope=0.01) ----------------
        y = jnp.where(y > 0, y, 0.01 * y)

        # ---------------- Dropout(p=0.3): inference mode -> identity ----------------

        # h = x*0.5 on first layer, h += x*0.5 afterwards (constant width -> no pad)
        h_acc = h_acc + 0.5 * y
        x = y

    h_ref[...] = h_acc


def graph_decoder_norm_unpooling(x, adj, w, vec_slab, *,
                                 graphs_per_step=None, use_bf16_matmul=False):
    """x: [B, N, E] node features; adj: [B, N, N] mask adj[b, dst, src]=1.

    w: [L, E, E] GAT weights; vec_slab: [L, 8, E] packed
    (a_src, a_dst, bias, gamma, beta, 3 zero-pad rows).
    """
    b, n, e_dim = x.shape
    num_layers = w.shape[0]

    if graphs_per_step is None:
        # Fill sublanes / amortize per-step overhead, but keep >= 2 grid steps
        # so v7x's two TensorCores both get work.
        graphs_per_step = b if b <= 1 else max(1, b // 2)
    g = graphs_per_step
    assert b % g == 0, "batch must be divisible by graphs_per_step"
    nsteps = b // g
    gn = g * n

    # Pack G graphs per grid step: features become one [GN, E] slab.
    x_grp = x.astype(jnp.float32).reshape(nsteps, gn, e_dim)

    # Block-diagonal int8 adjacency per group (cross-graph blocks stay 0,
    # which isolates the graphs inside the fused masked softmax).
    adj_grp = adj.reshape(nsteps, g, n, n)
    adj_bd = jnp.zeros((nsteps, gn, gn), jnp.int8)
    for gi in range(g):
        adj_bd = adj_bd.at[:, gi * n:(gi + 1) * n, gi * n:(gi + 1) * n].set(
            adj_grp[:, gi].astype(jnp.int8))

    kernel = functools.partial(
        _gat_decoder_kernel,
        matmul_dtype=(jnp.bfloat16 if use_bf16_matmul else jnp.float32))

    out = pl.pallas_call(
        kernel,
        out_shape=jax.ShapeDtypeStruct((nsteps, gn, e_dim), jnp.float32),
        grid=(nsteps,),
        in_specs=[
            pl.BlockSpec((None, gn, e_dim), lambda i: (i, 0, 0)),            # per-group x
            pl.BlockSpec((None, gn, gn), lambda i: (i, 0, 0)),               # per-group adj (int8)
            pl.BlockSpec((num_layers, e_dim, e_dim), lambda i: (0, 0, 0)),   # shared weights
            pl.BlockSpec((num_layers, 8, e_dim), lambda i: (0, 0, 0)),       # shared vector slab
        ],
        out_specs=pl.BlockSpec((None, gn, e_dim), lambda i: (i, 0, 0)),
        compiler_params=pltpu.CompilerParams(dimension_semantics=("parallel",)),
    )(x_grp, adj_bd, w, vec_slab)

    return out.reshape(b, n, e_dim)


def init_params(key, num_layers, e_dim):
    """Deterministic synthetic parameters (GATConv + LayerNorm per layer)."""
    ks = jax.random.split(key, 3)
    scale = 0.1
    w = scale * jax.random.normal(ks[0], (num_layers, e_dim, e_dim), jnp.float32)
    a_src = scale * jax.random.normal(ks[1], (num_layers, 1, e_dim), jnp.float32)
    a_dst = scale * jax.random.normal(ks[2], (num_layers, 1, e_dim), jnp.float32)
    bias = jnp.zeros((num_layers, 1, e_dim), jnp.float32)      # GATConv bias init = 0
    gamma = jnp.ones((num_layers, 1, e_dim), jnp.float32)      # LayerNorm weight
    beta = jnp.zeros((num_layers, 1, e_dim), jnp.float32)      # LayerNorm bias
    pad = jnp.zeros((num_layers, 3, e_dim), jnp.float32)       # sublane padding to 8 rows
    vec_slab = jnp.concatenate([a_src, a_dst, bias, gamma, beta, pad], axis=1)  # [L, 8, E]
    return w, vec_slab


def densify(src, dst, n):
    """adj[dst, src] = 1 for every edge src -> dst (duplicate edges collapse)."""
    return jnp.zeros((n, n), jnp.float32).at[dst, src].set(1.0)


if __name__ == "__main__":
    B = 8             # number of graphs
    N = 16            # nodes per graph
    E = 32            # embedding_size (num_heads=1)
    NUM_LAYERS = 4
    G = 4             # graphs packed per grid step -> grid=(2,)

    key = jax.random.PRNGKey(0)
    kx, kp = jax.random.split(key)

    x = jax.random.normal(kx, (B, N, E), jnp.float32)

    # Deterministic edge sets: bidirectional k-skip ring per graph.
    ar = jnp.arange(N)
    adjs = []
    for b in range(B):
        k = (b % 3) + 1
        src = jnp.concatenate([ar, (ar + k) % N]).astype(jnp.int32)
        dst = jnp.concatenate([(ar + k) % N, ar]).astype(jnp.int32)
        adjs.append(densify(src, dst, N))
    adj = jnp.stack(adjs)                                      # [B, N, N]

    w, vec_slab = init_params(kp, NUM_LAYERS, E)

    h = graph_decoder_norm_unpooling(x, adj, w, vec_slab, graphs_per_step=G)
    h = jax.block_until_ready(h)

    assert h.shape == (B, N, E) and h.dtype == jnp.float32
    assert bool(jnp.all(jnp.isfinite(h)))
    print("KERNEL_OK")
</pallas_src>

<mosaic_0001>
module attributes {stable_mosaic.version = 11 : i64} {
  func.func @_gat_decoder_kernel(%arg0: i32, %arg1: memref<1x64x32xf32, #tpu.memory_space<vmem>>, %arg2: memref<1x64x64xi8, #tpu.memory_space<vmem>>, %arg3: memref<4x32x32xf32, #tpu.memory_space<vmem>>, %arg4: memref<4x8x32xf32, #tpu.memory_space<vmem>>, %arg5: memref<1x64x32xf32, #tpu.memory_space<vmem>>) attributes {dimension_semantics = [#tpu.dimension_semantics<parallel>], iteration_bounds = array<i64: 2>, scalar_prefetch = 0 : i64, scratch_operands = 0 : i64, tpu.core_type = #tpu.core_type<tc>, window_params = [{transform_indices = @transform_0, window_bounds = array<i64: 1, 64, 32>}, {transform_indices = @transform_1, window_bounds = array<i64: 1, 64, 64>}, {pipeline_mode = #tpu.pipeline_mode<synchronous>, transform_indices = @transform_2, window_bounds = array<i64: 4, 32, 32>}, {pipeline_mode = #tpu.pipeline_mode<synchronous>, transform_indices = @transform_3, window_bounds = array<i64: 4, 8, 32>}, {transform_indices = @transform_4, window_bounds = array<i64: 1, 64, 32>}]} {
    %c0 = arith.constant 0 : index
    %c0_0 = arith.constant 0 : index
    %c0_1 = arith.constant 0 : index
    %0 = vector.load %arg1[%c0, %c0_0, %c0_1] : memref<1x64x32xf32, #tpu.memory_space<vmem>>, vector<1x64x32xf32>
    %1 = vector.shape_cast %0 : vector<1x64x32xf32> to vector<64x32xf32>
    %c0_2 = arith.constant 0 : index
    %c0_3 = arith.constant 0 : index
    %c0_4 = arith.constant 0 : index
    %2 = vector.load %arg2[%c0_2, %c0_3, %c0_4] : memref<1x64x64xi8, #tpu.memory_space<vmem>>, vector<1x64x64xi8>
    %3 = vector.shape_cast %2 : vector<1x64x64xi8> to vector<64x64xi8>
    %4 = arith.sitofp %3 : vector<64x64xi8> to vector<64x64xf32>
    %cst = arith.constant 0.000000e+00 : f32
    %5 = vector.broadcast %cst : f32 to vector<64x32xf32>
    %c0_5 = arith.constant 0 : index
    %c0_6 = arith.constant 0 : index
    %c0_7 = arith.constant 0 : index
    %6 = vector.load %arg3[%c0_5, %c0_6, %c0_7] : memref<4x32x32xf32, #tpu.memory_space<vmem>>, vector<1x32x32xf32>
    %7 = vector.shape_cast %6 : vector<1x32x32xf32> to vector<32x32xf32>
    %c0_8 = arith.constant 0 : index
    %c0_9 = arith.constant 0 : index
    %c0_10 = arith.constant 0 : index
    %8 = vector.load %arg4[%c0_8, %c0_9, %c0_10] : memref<4x8x32xf32, #tpu.memory_space<vmem>>, vector<1x8x32xf32>
    %9 = vector.shape_cast %8 : vector<1x8x32xf32> to vector<8x32xf32>
    %10 = vector.extract_strided_slice %9 {offsets = [0, 0], sizes = [1, 32], strides = [1, 1]} : vector<8x32xf32> to vector<1x32xf32>
    %11 = vector.extract_strided_slice %9 {offsets = [1, 0], sizes = [1, 32], strides = [1, 1]} : vector<8x32xf32> to vector<1x32xf32>
    %12 = vector.extract_strided_slice %9 {offsets = [2, 0], sizes = [1, 32], strides = [1, 1]} : vector<8x32xf32> to vector<1x32xf32>
    %13 = vector.extract_strided_slice %9 {offsets = [3, 0], sizes = [1, 32], strides = [1, 1]} : vector<8x32xf32> to vector<1x32xf32>
    %14 = vector.extract_strided_slice %9 {offsets = [4, 0], sizes = [1, 32], strides = [1, 1]} : vector<8x32xf32> to vector<1x32xf32>
    %cst_11 = arith.constant dense<0.000000e+00> : vector<64x32xf32>
    %15 = tpu.matmul %1, %7, %cst_11 {dimension_numbers = #tpu.dot_dimension_numbers<[1], [0], [0], [1], [0, 0, 1, 1], [], []>} : vector<64x32xf32>, vector<32x32xf32>, vector<64x32xf32> -> vector<64x32xf32>
    %16 = vector.broadcast %11 : vector<1x32xf32> to vector<64x32xf32>
    %17 = arith.mulf %15, %16 : vector<64x32xf32>
    %cst_12 = arith.constant dense<0.000000e+00> : vector<64xf32>
    %18 = vector.multi_reduction <add>, %17, %cst_12 [1] : vector<64x32xf32> to vector<64xf32>
    %19 = vector.shape_cast %18 : vector<64xf32> to vector<64x1xf32>
    %cst_13 = arith.constant dense<0.000000e+00> : vector<1x64xf32>
    %20 = tpu.matmul %10, %15, %cst_13 {dimension_numbers = #tpu.dot_dimension_numbers<[1], [1], [0], [0], [0, 0, 1, 0], [], []>} : vector<1x32xf32>, vector<64x32xf32>, vector<1x64xf32> -> vector<1x64xf32>
    %21 = vector.broadcast %19 : vector<64x1xf32> to vector<64x64xf32>
    %22 = vector.broadcast %20 : vector<1x64xf32> to vector<64x64xf32>
    %23 = arith.addf %21, %22 : vector<64x64xf32>
    %cst_14 = arith.constant 0.000000e+00 : f32
    %24 = vector.broadcast %cst_14 : f32 to vector<64x64xf32>
    %25 = arith.cmpf ogt, %23, %24 : vector<64x64xf32>
    %cst_15 = arith.constant 2.000000e-01 : f32
    %26 = vector.broadcast %cst_15 : f32 to vector<64x64xf32>
    %27 = arith.mulf %26, %23 : vector<64x64xf32>
    %28 = arith.select %25, %23, %27 : vector<64x64xi1>, vector<64x64xf32>
    %cst_16 = arith.constant 0.000000e+00 : f32
    %29 = vector.broadcast %cst_16 : f32 to vector<64x64xf32>
    %30 = arith.cmpf ogt, %4, %29 : vector<64x64xf32>
    %cst_17 = arith.constant -1.000000e+30 : f32
    %31 = vector.broadcast %cst_17 : f32 to vector<64x64xf32>
    %32 = arith.select %30, %28, %31 : vector<64x64xi1>, vector<64x64xf32>
    %cst_18 = arith.constant dense<0xFF800000> : vector<64xf32>
    %33 = vector.multi_reduction <maximumf>, %32, %cst_18 [1] : vector<64x64xf32> to vector<64xf32>
    %34 = vector.shape_cast %33 : vector<64xf32> to vector<64x1xf32>
    %35 = vector.broadcast %34 : vector<64x1xf32> to vector<64x64xf32>
    %36 = arith.subf %32, %35 : vector<64x64xf32>
    %37 = math.exp %36 : vector<64x64xf32>
    %38 = arith.mulf %37, %4 : vector<64x64xf32>
    %cst_19 = arith.constant dense<0.000000e+00> : vector<64xf32>
    %39 = vector.multi_reduction <add>, %38, %cst_19 [1] : vector<64x64xf32> to vector<64xf32>
    %40 = vector.shape_cast %39 : vector<64xf32> to vector<64x1xf32>
    %cst_20 = arith.constant 0.000000e+00 : f32
    %41 = vector.broadcast %cst_20 : f32 to vector<64x1xf32>
    %42 = arith.cmpf ogt, %40, %41 : vector<64x1xf32>
    %cst_21 = arith.constant 1.000000e+00 : f32
    %43 = vector.broadcast %cst_21 : f32 to vector<64x1xf32>
    %44 = arith.select %42, %40, %43 : vector<64x1xi1>, vector<64x1xf32>
    %45 = tpu.reciprocal %44 {approx = true} : vector<64x1xf32> -> vector<64x1xf32>
    %46 = vector.broadcast %45 : vector<64x1xf32> to vector<64x64xf32>
    %47 = arith.mulf %38, %46 : vector<64x64xf32>
    %cst_22 = arith.constant dense<0.000000e+00> : vector<64x32xf32>
    %48 = tpu.matmul %47, %15, %cst_22 {dimension_numbers = #tpu.dot_dimension_numbers<[1], [0], [0], [1], [0, 0, 1, 1], [], []>} : vector<64x64xf32>, vector<64x32xf32>, vector<64x32xf32> -> vector<64x32xf32>
    %49 = vector.broadcast %12 : vector<1x32xf32> to vector<64x32xf32>
    %50 = arith.addf %48, %49 : vector<64x32xf32>
    %cst_23 = arith.constant dense<0.000000e+00> : vector<64xf32>
    %51 = vector.multi_reduction <add>, %50, %cst_23 [1] : vector<64x32xf32> to vector<64xf32>
    %52 = vector.shape_cast %51 : vector<64xf32> to vector<64x1xf32>
    %cst_24 = arith.constant 3.200000e+01 : f32
    %53 = vector.broadcast %cst_24 : f32 to vector<64x1xf32>
    %54 = arith.divf %52, %53 : vector<64x1xf32>
    %55 = arith.mulf %50, %50 : vector<64x32xf32>
    %cst_25 = arith.constant dense<0.000000e+00> : vector<64xf32>
    %56 = vector.multi_reduction <add>, %55, %cst_25 [1] : vector<64x32xf32> to vector<64xf32>
    %57 = vector.shape_cast %56 : vector<64xf32> to vector<64x1xf32>
    %cst_26 = arith.constant 3.200000e+01 : f32
    %58 = vector.broadcast %cst_26 : f32 to vector<64x1xf32>
    %59 = arith.divf %57, %58 : vector<64x1xf32>
    %60 = arith.mulf %54, %54 : vector<64x1xf32>
    %61 = arith.subf %59, %60 : vector<64x1xf32>
    %cst_27 = arith.constant 0.000000e+00 : f32
    %62 = vector.broadcast %cst_27 : f32 to vector<64x1xf32>
    %63 = arith.maximumf %61, %62 : vector<64x1xf32>
    %64 = vector.broadcast %54 : vector<64x1xf32> to vector<64x32xf32>
    %65 = arith.subf %50, %64 : vector<64x32xf32>
    %cst_28 = arith.constant 9.99999974E-6 : f32
    %66 = vector.broadcast %cst_28 : f32 to vector<64x1xf32>
    %67 = arith.addf %63, %66 : vector<64x1xf32>
    %68 = math.rsqrt %67 : vector<64x1xf32>
    %69 = vector.broadcast %68 : vector<64x1xf32> to vector<64x32xf32>
    %70 = arith.mulf %65, %69 : vector<64x32xf32>
    %71 = vector.broadcast %13 : vector<1x32xf32> to vector<64x32xf32>
    %72 = arith.mulf %70, %71 : vector<64x32xf32>
    %73 = vector.broadcast %14 : vector<1x32xf32> to vector<64x32xf32>
    %74 = arith.addf %72, %73 : vector<64x32xf32>
    %cst_29 = arith.constant 0.000000e+00 : f32
    %75 = vector.broadcast %cst_29 : f32 to vector<64x32xf32>
    %76 = arith.cmpf ogt, %74, %75 : vector<64x32xf32>
    %cst_30 = arith.constant 0.00999999977 : f32
    %77 = vector.broadcast %cst_30 : f32 to vector<64x32xf32>
    %78 = arith.mulf %77, %74 : vector<64x32xf32>
    %79 = arith.select %76, %74, %78 : vector<64x32xi1>, vector<64x32xf32>
    %cst_31 = arith.constant 5.000000e-01 : f32
    %80 = vector.broadcast %cst_31 : f32 to vector<64x32xf32>
    %81 = arith.mulf %80, %79 : vector<64x32xf32>
    %82 = arith.addf %5, %81 : vector<64x32xf32>
    %c1 = arith.constant 1 : index
    %c0_32 = arith.constant 0 : index
    %c0_33 = arith.constant 0 : index
    %83 = vector.load %arg3[%c1, %c0_32, %c0_33] : memref<4x32x32xf32, #tpu.memory_space<vmem>>, vector<1x32x32xf32>
    %84 = vector.shape_cast %83 : vector<1x32x32xf32> to vector<32x32xf32>
    %c1_34 = arith.constant 1 : index
    %c0_35 = arith.constant 0 : index
    %c0_36 = arith.constant 0 : index
    %85 = vector.load %arg4[%c1_34, %c0_35, %c0_36] : memref<4x8x32xf32, #tpu.memory_space<vmem>>, vector<1x8x32xf32>
    %86 = vector.shape_cast %85 : vector<1x8x32xf32> to vector<8x32xf32>
    %87 = vector.extract_strided_slice %86 {offsets = [0, 0], sizes = [1, 32], strides = [1, 1]} : vector<8x32xf32> to vector<1x32xf32>
    %88 = vector.extract_strided_slice %86 {offsets = [1, 0], sizes = [1, 32], strides = [1, 1]} : vector<8x32xf32> to vector<1x32xf32>
    %89 = vector.extract_strided_slice %86 {offsets = [2, 0], sizes = [1, 32], strides = [1, 1]} : vector<8x32xf32> to vector<1x32xf32>
    %90 = vector.extract_strided_slice %86 {offsets = [3, 0], sizes = [1, 32], strides = [1, 1]} : vector<8x32xf32> to vector<1x32xf32>
    %91 = vector.extract_strided_slice %86 {offsets = [4, 0], sizes = [1, 32], strides = [1, 1]} : vector<8x32xf32> to vector<1x32xf32>
    %cst_37 = arith.constant dense<0.000000e+00> : vector<64x32xf32>
    %92 = tpu.matmul %79, %84, %cst_37 {dimension_numbers = #tpu.dot_dimension_numbers<[1], [0], [0], [1], [0, 0, 1, 1], [], []>} : vector<64x32xf32>, vector<32x32xf32>, vector<64x32xf32> -> vector<64x32xf32>
    %93 = vector.broadcast %88 : vector<1x32xf32> to vector<64x32xf32>
    %94 = arith.mulf %92, %93 : vector<64x32xf32>
    %cst_38 = arith.constant dense<0.000000e+00> : vector<64xf32>
    %95 = vector.multi_reduction <add>, %94, %cst_38 [1] : vector<64x32xf32> to vector<64xf32>
    %96 = vector.shape_cast %95 : vector<64xf32> to vector<64x1xf32>
    %cst_39 = arith.constant dense<0.000000e+00> : vector<1x64xf32>
    %97 = tpu.matmul %87, %92, %cst_39 {dimension_numbers = #tpu.dot_dimension_numbers<[1], [1], [0], [0], [0, 0, 1, 0], [], []>} : vector<1x32xf32>, vector<64x32xf32>, vector<1x64xf32> -> vector<1x64xf32>
    %98 = vector.broadcast %96 : vector<64x1xf32> to vector<64x64xf32>
    %99 = vector.broadcast %97 : vector<1x64xf32> to vector<64x64xf32>
    %100 = arith.addf %98, %99 : vector<64x64xf32>
    %cst_40 = arith.constant 0.000000e+00 : f32
    %101 = vector.broadcast %cst_40 : f32 to vector<64x64xf32>
    %102 = arith.cmpf ogt, %100, %101 : vector<64x64xf32>
    %cst_41 = arith.constant 2.000000e-01 : f32
    %103 = vector.broadcast %cst_41 : f32 to vector<64x64xf32>
    %104 = arith.mulf %103, %100 : vector<64x64xf32>
    %105 = arith.select %102, %100, %104 : vector<64x64xi1>, vector<64x64xf32>
    %cst_42 = arith.constant 0.000000e+00 : f32
    %106 = vector.broadcast %cst_42 : f32 to vector<64x64xf32>
    %107 = arith.cmpf ogt, %4, %106 : vector<64x64xf32>
    %cst_43 = arith.constant -1.000000e+30 : f32
    %108 = vector.broadcast %cst_43 : f32 to vector<64x64xf32>
    %109 = arith.select %107, %105, %108 : vector<64x64xi1>, vector<64x64xf32>
    %cst_44 = arith.constant dense<0xFF800000> : vector<64xf32>
    %110 = vector.multi_reduction <maximumf>, %109, %cst_44 [1] : vector<64x64xf32> to vector<64xf32>
    %111 = vector.shape_cast %110 : vector<64xf32> to vector<64x1xf32>
    %112 = vector.broadcast %111 : vector<64x1xf32> to vector<64x64xf32>
    %113 = arith.subf %109, %112 : vector<64x64xf32>
    %114 = math.exp %113 : vector<64x64xf32>
    %115 = arith.mulf %114, %4 : vector<64x64xf32>
    %cst_45 = arith.constant dense<0.000000e+00> : vector<64xf32>
    %116 = vector.multi_reduction <add>, %115, %cst_45 [1] : vector<64x64xf32> to vector<64xf32>
    %117 = vector.shape_cast %116 : vector<64xf32> to vector<64x1xf32>
    %cst_46 = arith.constant 0.000000e+00 : f32
    %118 = vector.broadcast %cst_46 : f32 to vector<64x1xf32>
    %119 = arith.cmpf ogt, %117, %118 : vector<64x1xf32>
    %cst_47 = arith.constant 1.000000e+00 : f32
    %120 = vector.broadcast %cst_47 : f32 to vector<64x1xf32>
    %121 = arith.select %119, %117, %120 : vector<64x1xi1>, vector<64x1xf32>
    %122 = tpu.reciprocal %121 {approx = true} : vector<64x1xf32> -> vector<64x1xf32>
    %123 = vector.broadcast %122 : vector<64x1xf32> to vector<64x64xf32>
    %124 = arith.mulf %115, %123 : vector<64x64xf32>
    %cst_48 = arith.constant dense<0.000000e+00> : vector<64x32xf32>
    %125 = tpu.matmul %124, %92, %cst_48 {dimension_numbers = #tpu.dot_dimension_numbers<[1], [0], [0], [1], [0, 0, 1, 1], [], []>} : vector<64x64xf32>, vector<64x32xf32>, vector<64x32xf32> -> vector<64x32xf32>
    %126 = vector.broadcast %89 : vector<1x32xf32> to vector<64x32xf32>
    %127 = arith.addf %125, %126 : vector<64x32xf32>
    %cst_49 = arith.constant dense<0.000000e+00> : vector<64xf32>
    %128 = vector.multi_reduction <add>, %127, %cst_49 [1] : vector<64x32xf32> to vector<64xf32>
    %129 = vector.shape_cast %128 : vector<64xf32> to vector<64x1xf32>
    %cst_50 = arith.constant 3.200000e+01 : f32
    %130 = vector.broadcast %cst_50 : f32 to vector<64x1xf32>
    %131 = arith.divf %129, %130 : vector<64x1xf32>
    %132 = arith.mulf %127, %127 : vector<64x32xf32>
    %cst_51 = arith.constant dense<0.000000e+00> : vector<64xf32>
    %133 = vector.multi_reduction <add>, %132, %cst_51 [1] : vector<64x32xf32> to vector<64xf32>
    %134 = vector.shape_cast %133 : vector<64xf32> to vector<64x1xf32>
    %cst_52 = arith.constant 3.200000e+01 : f32
    %135 = vector.broadcast %cst_52 : f32 to vector<64x1xf32>
    %136 = arith.divf %134, %135 : vector<64x1xf32>
    %137 = arith.mulf %131, %131 : vector<64x1xf32>
    %138 = arith.subf %136, %137 : vector<64x1xf32>
    %cst_53 = arith.constant 0.000000e+00 : f32
    %139 = vector.broadcast %cst_53 : f32 to vector<64x1xf32>
    %140 = arith.maximumf %138, %139 : vector<64x1xf32>
    %141 = vector.broadcast %131 : vector<64x1xf32> to vector<64x32xf32>
    %142 = arith.subf %127, %141 : vector<64x32xf32>
    %cst_54 = arith.constant 9.99999974E-6 : f32
    %143 = vector.broadcast %cst_54 : f32 to vector<64x1xf32>
    %144 = arith.addf %140, %143 : vector<64x1xf32>
    %145 = math.rsqrt %144 : vector<64x1xf32>
    %146 = vector.broadcast %145 : vector<64x1xf32> to vector<64x32xf32>
    %147 = arith.mulf %142, %146 : vector<64x32xf32>
    %148 = vector.broadcast %90 : vector<1x32xf32> to vector<64x32xf32>
    %149 = arith.mulf %147, %148 : vector<64x32xf32>
    %150 = vector.broadcast %91 : vector<1x32xf32> to vector<64x32xf32>
    %151 = arith.addf %149, %150 : vector<64x32xf32>
    %cst_55 = arith.constant 0.000000e+00 : f32
    %152 = vector.broadcast %cst_55 : f32 to vector<64x32xf32>
    %153 = arith.cmpf ogt, %151, %152 : vector<64x32xf32>
    %cst_56 = arith.constant 0.00999999977 : f32
    %154 = vector.broadcast %cst_56 : f32 to vector<64x32xf32>
    %155 = arith.mulf %154, %151 : vector<64x32xf32>
    %156 = arith.select %153, %151, %155 : vector<64x32xi1>, vector<64x32xf32>
    %cst_57 = arith.constant 5.000000e-01 : f32
    %157 = vector.broadcast %cst_57 : f32 to vector<64x32xf32>
    %158 = arith.mulf %157, %156 : vector<64x32xf32>
    %159 = arith.addf %82, %158 : vector<64x32xf32>
    %c2 = arith.constant 2 : index
    %c0_58 = arith.constant 0 : index
    %c0_59 = arith.constant 0 : index
    %160 = vector.load %arg3[%c2, %c0_58, %c0_59] : memref<4x32x32xf32, #tpu.memory_space<vmem>>, vector<1x32x32xf32>
    %161 = vector.shape_cast %160 : vector<1x32x32xf32> to vector<32x32xf32>
    %c2_60 = arith.constant 2 : index
    %c0_61 = arith.constant 0 : index
    %c0_62 = arith.constant 0 : index
    %162 = vector.load %arg4[%c2_60, %c0_61, %c0_62] : memref<4x8x32xf32, #tpu.memory_space<vmem>>, vector<1x8x32xf32>
    %163 = vector.shape_cast %162 : vector<1x8x32xf32> to vector<8x32xf32>
    %164 = vector.extract_strided_slice %163 {offsets = [0, 0], sizes = [1, 32], strides = [1, 1]} : vector<8x32xf32> to vector<1x32xf32>
    %165 = vector.extract_strided_slice %163 {offsets = [1, 0], sizes = [1, 32], strides = [1, 1]} : vector<8x32xf32> to vector<1x32xf32>
    %166 = vector.extract_strided_slice %163 {offsets = [2, 0], sizes = [1, 32], strides = [1, 1]} : vector<8x32xf32> to vector<1x32xf32>
    %167 = vector.extract_strided_slice %163 {offsets = [3, 0], sizes = [1, 32], strides = [1, 1]} : vector<8x32xf32> to vector<1x32xf32>
    %168 = vector.extract_strided_slice %163 {offsets = [4, 0], sizes = [1, 32], strides = [1, 1]} : vector<8x32xf32> to vector<1x32xf32>
    %cst_63 = arith.constant dense<0.000000e+00> : vector<64x32xf32>
    %169 = tpu.matmul %156, %161, %cst_63 {dimension_numbers = #tpu.dot_dimension_numbers<[1], [0], [0], [1], [0, 0, 1, 1], [], []>} : vector<64x32xf32>, vector<32x32xf32>, vector<64x32xf32> -> vector<64x32xf32>
    %170 = vector.broadcast %165 : vector<1x32xf32> to vector<64x32xf32>
    %171 = arith.mulf %169, %170 : vector<64x32xf32>
    %cst_64 = arith.constant dense<0.000000e+00> : vector<64xf32>
    %172 = vector.multi_reduction <add>, %171, %cst_64 [1] : vector<64x32xf32> to vector<64xf32>
    %173 = vector.shape_cast %172 : vector<64xf32> to vector<64x1xf32>
    %cst_65 = arith.constant dense<0.000000e+00> : vector<1x64xf32>
    %174 = tpu.matmul %164, %169, %cst_65 {dimension_numbers = #tpu.dot_dimension_numbers<[1], [1], [0], [0], [0, 0, 1, 0], [], []>} : vector<1x32xf32>, vector<64x32xf32>, vector<1x64xf32> -> vector<1x64xf32>
    %175 = vector.broadcast %173 : vector<64x1xf32> to vector<64x64xf32>
    %176 = vector.broadcast %174 : vector<1x64xf32> to vector<64x64xf32>
    %177 = arith.addf %175, %176 : vector<64x64xf32>
    %cst_66 = arith.constant 0.000000e+00 : f32
    %178 = vector.broadcast %cst_66 : f32 to vector<64x64xf32>
    %179 = arith.cmpf ogt, %177, %178 : vector<64x64xf32>
    %cst_67 = arith.constant 2.000000e-01 : f32
    %180 = vector.broadcast %cst_67 : f32 to vector<64x64xf32>
    %181 = arith.mulf %180, %177 : vector<64x64xf32>
    %182 = arith.select %179, %177, %181 : vector<64x64xi1>, vector<64x64xf32>
    %cst_68 = arith.constant 0.000000e+00 : f32
    %183 = vector.broadcast %cst_68 : f32 to vector<64x64xf32>
    %184 = arith.cmpf ogt, %4, %183 : vector<64x64xf32>
    %cst_69 = arith.constant -1.000000e+30 : f32
    %185 = vector.broadcast %cst_69 : f32 to vector<64x64xf32>
    %186 = arith.select %184, %182, %185 : vector<64x64xi1>, vector<64x64xf32>
    %cst_70 = arith.constant dense<0xFF800000> : vector<64xf32>
    %187 = vector.multi_reduction <maximumf>, %186, %cst_70 [1] : vector<64x64xf32> to vector<64xf32>
    %188 = vector.shape_cast %187 : vector<64xf32> to vector<64x1xf32>
    %189 = vector.broadcast %188 : vector<64x1xf32> to vector<64x64xf32>
    %190 = arith.subf %186, %189 : vector<64x64xf32>
    %191 = math.exp %190 : vector<64x64xf32>
    %192 = arith.mulf %191, %4 : vector<64x64xf32>
    %cst_71 = arith.constant dense<0.000000e+00> : vector<64xf32>
    %193 = vector.multi_reduction <add>, %192, %cst_71 [1] : vector<64x64xf32> to vector<64xf32>
    %194 = vector.shape_cast %193 : vector<64xf32> to vector<64x1xf32>
    %cst_72 = arith.constant 0.000000e+00 : f32
    %195 = vector.broadcast %cst_72 : f32 to vector<64x1xf32>
    %196 = arith.cmpf ogt, %194, %195 : vector<64x1xf32>
    %cst_73 = arith.constant 1.000000e+00 : f32
    %197 = vector.broadcast %cst_73 : f32 to vector<64x1xf32>
    %198 = arith.select %196, %194, %197 : vector<64x1xi1>, vector<64x1xf32>
    %199 = tpu.reciprocal %198 {approx = true} : vector<64x1xf32> -> vector<64x1xf32>
    %200 = vector.broadcast %199 : vector<64x1xf32> to vector<64x64xf32>
    %201 = arith.mulf %192, %200 : vector<64x64xf32>
    %cst_74 = arith.constant dense<0.000000e+00> : vector<64x32xf32>
    %202 = tpu.matmul %201, %169, %cst_74 {dimension_numbers = #tpu.dot_dimension_numbers<[1], [0], [0], [1], [0, 0, 1, 1], [], []>} : vector<64x64xf32>, vector<64x32xf32>, vector<64x32xf32> -> vector<64x32xf32>
    %203 = vector.broadcast %166 : vector<1x32xf32> to vector<64x32xf32>
    %204 = arith.addf %202, %203 : vector<64x32xf32>
    %cst_75 = arith.constant dense<0.000000e+00> : vector<64xf32>
    %205 = vector.multi_reduction <add>, %204, %cst_75 [1] : vector<64x32xf32> to vector<64xf32>
    %206 = vector.shape_cast %205 : vector<64xf32> to vector<64x1xf32>
    %cst_76 = arith.constant 3.200000e+01 : f32
    %207 = vector.broadcast %cst_76 : f32 to vector<64x1xf32>
    %208 = arith.divf %206, %207 : vector<64x1xf32>
    %209 = arith.mulf %204, %204 : vector<64x32xf32>
    %cst_77 = arith.constant dense<0.000000e+00> : vector<64xf32>
    %210 = vector.multi_reduction <add>, %209, %cst_77 [1] : vector<64x32xf32> to vector<64xf32>
    %211 = vector.shape_cast %210 : vector<64xf32> to vector<64x1xf32>
    %cst_78 = arith.constant 3.200000e+01 : f32
    %212 = vector.broadcast %cst_78 : f32 to vector<64x1xf32>
    %213 = arith.divf %211, %212 : vector<64x1xf32>
    %214 = arith.mulf %208, %208 : vector<64x1xf32>
    %215 = arith.subf %213, %214 : vector<64x1xf32>
    %cst_79 = arith.constant 0.000000e+00 : f32
    %216 = vector.broadcast %cst_79 : f32 to vector<64x1xf32>
    %217 = arith.maximumf %215, %216 : vector<64x1xf32>
    %218 = vector.broadcast %208 : vector<64x1xf32> to vector<64x32xf32>
    %219 = arith.subf %204, %218 : vector<64x32xf32>
    %cst_80 = arith.constant 9.99999974E-6 : f32
    %220 = vector.broadcast %cst_80 : f32 to vector<64x1xf32>
    %221 = arith.addf %217, %220 : vector<64x1xf32>
    %222 = math.rsqrt %221 : vector<64x1xf32>
    %223 = vector.broadcast %222 : vector<64x1xf32> to vector<64x32xf32>
    %224 = arith.mulf %219, %223 : vector<64x32xf32>
    %225 = vector.broadcast %167 : vector<1x32xf32> to vector<64x32xf32>
    %226 = arith.mulf %224, %225 : vector<64x32xf32>
    %227 = vector.broadcast %168 : vector<1x32xf32> to vector<64x32xf32>
    %228 = arith.addf %226, %227 : vector<64x32xf32>
    %cst_81 = arith.constant 0.000000e+00 : f32
    %229 = vector.broadcast %cst_81 : f32 to vector<64x32xf32>
    %230 = arith.cmpf ogt, %228, %229 : vector<64x32xf32>
    %cst_82 = arith.constant 0.00999999977 : f32
    %231 = vector.broadcast %cst_82 : f32 to vector<64x32xf32>
    %232 = arith.mulf %231, %228 : vector<64x32xf32>
    %233 = arith.select %230, %228, %232 : vector<64x32xi1>, vector<64x32xf32>
    %cst_83 = arith.constant 5.000000e-01 : f32
    %234 = vector.broadcast %cst_83 : f32 to vector<64x32xf32>
    %235 = arith.mulf %234, %233 : vector<64x32xf32>
    %236 = arith.addf %159, %235 : vector<64x32xf32>
    %c3 = arith.constant 3 : index
    %c0_84 = arith.constant 0 : index
    %c0_85 = arith.constant 0 : index
    %237 = vector.load %arg3[%c3, %c0_84, %c0_85] : memref<4x32x32xf32, #tpu.memory_space<vmem>>, vector<1x32x32xf32>
    %238 = vector.shape_cast %237 : vector<1x32x32xf32> to vector<32x32xf32>
    %c3_86 = arith.constant 3 : index
    %c0_87 = arith.constant 0 : index
    %c0_88 = arith.constant 0 : index
    %239 = vector.load %arg4[%c3_86, %c0_87, %c0_88] : memref<4x8x32xf32, #tpu.memory_space<vmem>>, vector<1x8x32xf32>
    %240 = vector.shape_cast %239 : vector<1x8x32xf32> to vector<8x32xf32>
    %241 = vector.extract_strided_slice %240 {offsets = [0, 0], sizes = [1, 32], strides = [1, 1]} : vector<8x32xf32> to vector<1x32xf32>
    %242 = vector.extract_strided_slice %240 {offsets = [1, 0], sizes = [1, 32], strides = [1, 1]} : vector<8x32xf32> to vector<1x32xf32>
    %243 = vector.extract_strided_slice %240 {offsets = [2, 0], sizes = [1, 32], strides = [1, 1]} : vector<8x32xf32> to vector<1x32xf32>
    %244 = vector.extract_strided_slice %240 {offsets = [3, 0], sizes = [1, 32], strides = [1, 1]} : vector<8x32xf32> to vector<1x32xf32>
    %245 = vector.extract_strided_slice %240 {offsets = [4, 0], sizes = [1, 32], strides = [1, 1]} : vector<8x32xf32> to vector<1x32xf32>
    %cst_89 = arith.constant dense<0.000000e+00> : vector<64x32xf32>
    %246 = tpu.matmul %233, %238, %cst_89 {dimension_numbers = #tpu.dot_dimension_numbers<[1], [0], [0], [1], [0, 0, 1, 1], [], []>} : vector<64x32xf32>, vector<32x32xf32>, vector<64x32xf32> -> vector<64x32xf32>
    %247 = vector.broadcast %242 : vector<1x32xf32> to vector<64x32xf32>
    %248 = arith.mulf %246, %247 : vector<64x32xf32>
    %cst_90 = arith.constant dense<0.000000e+00> : vector<64xf32>
    %249 = vector.multi_reduction <add>, %248, %cst_90 [1] : vector<64x32xf32> to vector<64xf32>
    %250 = vector.shape_cast %249 : vector<64xf32> to vector<64x1xf32>
    %cst_91 = arith.constant dense<0.000000e+00> : vector<1x64xf32>
    %251 = tpu.matmul %241, %246, %cst_91 {dimension_numbers = #tpu.dot_dimension_numbers<[1], [1], [0], [0], [0, 0, 1, 0], [], []>} : vector<1x32xf32>, vector<64x32xf32>, vector<1x64xf32> -> vector<1x64xf32>
    %252 = vector.broadcast %250 : vector<64x1xf32> to vector<64x64xf32>
    %253 = vector.broadcast %251 : vector<1x64xf32> to vector<64x64xf32>
    %254 = arith.addf %252, %253 : vector<64x64xf32>
    %cst_92 = arith.constant 0.000000e+00 : f32
    %255 = vector.broadcast %cst_92 : f32 to vector<64x64xf32>
    %256 = arith.cmpf ogt, %254, %255 : vector<64x64xf32>
    %cst_93 = arith.constant 2.000000e-01 : f32
    %257 = vector.broadcast %cst_93 : f32 to vector<64x64xf32>
    %258 = arith.mulf %257, %254 : vector<64x64xf32>
    %259 = arith.select %256, %254, %258 : vector<64x64xi1>, vector<64x64xf32>
    %cst_94 = arith.constant 0.000000e+00 : f32
    %260 = vector.broadcast %cst_94 : f32 to vector<64x64xf32>
    %261 = arith.cmpf ogt, %4, %260 : vector<64x64xf32>
    %cst_95 = arith.constant -1.000000e+30 : f32
    %262 = vector.broadcast %cst_95 : f32 to vector<64x64xf32>
    %263 = arith.select %261, %259, %262 : vector<64x64xi1>, vector<64x64xf32>
    %cst_96 = arith.constant dense<0xFF800000> : vector<64xf32>
    %264 = vector.multi_reduction <maximumf>, %263, %cst_96 [1] : vector<64x64xf32> to vector<64xf32>
    %265 = vector.shape_cast %264 : vector<64xf32> to vector<64x1xf32>
    %266 = vector.broadcast %265 : vector<64x1xf32> to vector<64x64xf32>
    %267 = arith.subf %263, %266 : vector<64x64xf32>
    %268 = math.exp %267 : vector<64x64xf32>
    %269 = arith.mulf %268, %4 : vector<64x64xf32>
    %cst_97 = arith.constant dense<0.000000e+00> : vector<64xf32>
    %270 = vector.multi_reduction <add>, %269, %cst_97 [1] : vector<64x64xf32> to vector<64xf32>
    %271 = vector.shape_cast %270 : vector<64xf32> to vector<64x1xf32>
    %cst_98 = arith.constant 0.000000e+00 : f32
    %272 = vector.broadcast %cst_98 : f32 to vector<64x1xf32>
    %273 = arith.cmpf ogt, %271, %272 : vector<64x1xf32>
    %cst_99 = arith.constant 1.000000e+00 : f32
    %274 = vector.broadcast %cst_99 : f32 to vector<64x1xf32>
    %275 = arith.select %273, %271, %274 : vector<64x1xi1>, vector<64x1xf32>
    %276 = tpu.reciprocal %275 {approx = true} : vector<64x1xf32> -> vector<64x1xf32>
    %277 = vector.broadcast %276 : vector<64x1xf32> to vector<64x64xf32>
    %278 = arith.mulf %269, %277 : vector<64x64xf32>
    %cst_100 = arith.constant dense<0.000000e+00> : vector<64x32xf32>
    %279 = tpu.matmul %278, %246, %cst_100 {dimension_numbers = #tpu.dot_dimension_numbers<[1], [0], [0], [1], [0, 0, 1, 1], [], []>} : vector<64x64xf32>, vector<64x32xf32>, vector<64x32xf32> -> vector<64x32xf32>
    %280 = vector.broadcast %243 : vector<1x32xf32> to vector<64x32xf32>
    %281 = arith.addf %279, %280 : vector<64x32xf32>
    %cst_101 = arith.constant dense<0.000000e+00> : vector<64xf32>
    %282 = vector.multi_reduction <add>, %281, %cst_101 [1] : vector<64x32xf32> to vector<64xf32>
    %283 = vector.shape_cast %282 : vector<64xf32> to vector<64x1xf32>
    %cst_102 = arith.constant 3.200000e+01 : f32
    %284 = vector.broadcast %cst_102 : f32 to vector<64x1xf32>
    %285 = arith.divf %283, %284 : vector<64x1xf32>
    %286 = arith.mulf %281, %281 : vector<64x32xf32>
    %cst_103 = arith.constant dense<0.000000e+00> : vector<64xf32>
    %287 = vector.multi_reduction <add>, %286, %cst_103 [1] : vector<64x32xf32> to vector<64xf32>
    %288 = vector.shape_cast %287 : vector<64xf32> to vector<64x1xf32>
    %cst_104 = arith.constant 3.200000e+01 : f32
    %289 = vector.broadcast %cst_104 : f32 to vector<64x1xf32>
    %290 = arith.divf %288, %289 : vector<64x1xf32>
    %291 = arith.mulf %285, %285 : vector<64x1xf32>
    %292 = arith.subf %290, %291 : vector<64x1xf32>
    %cst_105 = arith.constant 0.000000e+00 : f32
    %293 = vector.broadcast %cst_105 : f32 to vector<64x1xf32>
    %294 = arith.maximumf %292, %293 : vector<64x1xf32>
    %295 = vector.broadcast %285 : vector<64x1xf32> to vector<64x32xf32>
    %296 = arith.subf %281, %295 : vector<64x32xf32>
    %cst_106 = arith.constant 9.99999974E-6 : f32
    %297 = vector.broadcast %cst_106 : f32 to vector<64x1xf32>
    %298 = arith.addf %294, %297 : vector<64x1xf32>
    %299 = math.rsqrt %298 : vector<64x1xf32>
    %300 = vector.broadcast %299 : vector<64x1xf32> to vector<64x32xf32>
    %301 = arith.mulf %296, %300 : vector<64x32xf32>
    %302 = vector.broadcast %244 : vector<1x32xf32> to vector<64x32xf32>
    %303 = arith.mulf %301, %302 : vector<64x32xf32>
    %304 = vector.broadcast %245 : vector<1x32xf32> to vector<64x32xf32>
    %305 = arith.addf %303, %304 : vector<64x32xf32>
    %cst_107 = arith.constant 0.000000e+00 : f32
    %306 = vector.broadcast %cst_107 : f32 to vector<64x32xf32>
    %307 = arith.cmpf ogt, %305, %306 : vector<64x32xf32>
    %cst_108 = arith.constant 0.00999999977 : f32
    %308 = vector.broadcast %cst_108 : f32 to vector<64x32xf32>
    %309 = arith.mulf %308, %305 : vector<64x32xf32>
    %310 = arith.select %307, %305, %309 : vector<64x32xi1>, vector<64x32xf32>
    %cst_109 = arith.constant 5.000000e-01 : f32
    %311 = vector.broadcast %cst_109 : f32 to vector<64x32xf32>
    %312 = arith.mulf %311, %310 : vector<64x32xf32>
    %313 = arith.addf %236, %312 : vector<64x32xf32>
    %c0_110 = arith.constant 0 : index
    %c0_111 = arith.constant 0 : index
    %c0_112 = arith.constant 0 : index
    %314 = vector.load %arg5[%c0_110, %c0_111, %c0_112] : memref<1x64x32xf32, #tpu.memory_space<vmem>>, vector<1x64x32xf32>
    %315 = vector.shape_cast %314 : vector<1x64x32xf32> to vector<64x32xf32>
    %316 = vector.shape_cast %313 : vector<64x32xf32> to vector<1x64x32xf32>
    tpu.vector_store %arg5[%c0_110, %c0_111, %c0_112], %316 {strides = array<i32>} : memref<1x64x32xf32, #tpu.memory_space<vmem>>, vector<1x64x32xf32>,
    return
  }
  func.func @transform_0(%arg0: i32) -> (i32, i32, i32) {
    %c0_i32 = arith.constant 0 : i32
    %c0_i32_0 = arith.constant 0 : i32
    %c0_i32_1 = arith.constant 0 : i32
    return %arg0, %c0_i32, %c0_i32_0 : i32, i32, i32
  }
  func.func @transform_1(%arg0: i32) -> (i32, i32, i32) {
    %c0_i32 = arith.constant 0 : i32
    %c0_i32_0 = arith.constant 0 : i32
    %c0_i32_1 = arith.constant 0 : i32
    return %arg0, %c0_i32, %c0_i32_0 : i32, i32, i32
  }
  func.func @transform_2(%arg0: i32) -> (i32, i32, i32) {
    %c0_i32 = arith.constant 0 : i32
    %c0_i32_0 = arith.constant 0 : i32
    %c0_i32_1 = arith.constant 0 : i32
    %c0_i32_2 = arith.constant 0 : i32
    return %c0_i32, %c0_i32_0, %c0_i32_1 : i32, i32, i32
  }
  func.func @transform_3(%arg0: i32) -> (i32, i32, i32) {
    %c0_i32 = arith.constant 0 : i32
    %c0_i32_0 = arith.constant 0 : i32
    %c0_i32_1 = arith.constant 0 : i32
    %c0_i32_2 = arith.constant 0 : i32
    return %c0_i32, %c0_i32_0, %c0_i32_1 : i32, i32, i32
  }
  func.func @transform_4(%arg0: i32) -> (i32, i32, i32) {
    %c0_i32 = arith.constant 0 : i32
    %c0_i32_0 = arith.constant 0 : i32
    %c0_i32_1 = arith.constant 0 : i32
    return %arg0, %c0_i32, %c0_i32_0 : i32, i32, i32
  }
}

</mosaic_0001>

<llo_original>
// kernel: tpu_custom_call.1
$region0: #{tpu_custom_call.1}
  #allocation0 [shape = 'u32[]', space=smem, size = 0x4, offset = 0x4, fixed_abs, tag = 'smem constant byte address 0x4 - core index']
  #allocation1 [shape = 'u32[144,128]{1,0:T(1,128)}', space=vmem, size = 0x12000, scoped, tag = 'internal scratch']
  %s0 = inlined_call_operand.vmem [shape: f32[2,64,32], index: 0, kind: input, shape index: {}]
  %s1 = inlined_call_operand.vmem [shape: s8[2,64,64], index: 1, kind: input, shape index: {}]
  %s2 = inlined_call_operand.vmem [shape: f32[4,32,32], index: 2, kind: input, shape index: {}]
  %s3 = inlined_call_operand.vmem [shape: f32[4,8,32], index: 3, kind: input, shape index: {}]
  %s4 = inlined_call_operand.vmem [shape: f32[2,64,32], index: 4, kind: output, shape index: {}]
  %s5 = sld [smem:[#allocation0]]
  $region49: #{tpu_custom_call.1} parent=0
    _
  %s7 = ssub.s32 1, %s5
  %s8 = scalar_select 0, %s7, %s5
  loop: start=0, step=1, limit=4
  $region2: #{tpu_custom_call.1} parent=0 // loop_pre_header
    _
  $region3: #{tpu_custom_call.1} parent=0 // loop_header
    %s10 = sphi 0, %s14
    %p11 = scmp.ge.s32.totalorder %s10, 4
    %s20 = sphi 0, %s22
    %s23 = sphi 0, %s20
    %s24 = sphi 0, %s23
    %s40 = sphi 0, %s24
    %s46 = sphi 0, %s48
    %s49 = sphi 0, %s46
    %s50 = sphi 0, %s49
    %s66 = sphi 0, %s50
    %s70 = sphi 0, %s70
    %s72 = sphi 0, %s70
    %s73 = sphi 0, %s72
    %s87 = sphi 0, %s73
    %s91 = sphi 0, %s91
    %s93 = sphi 0, %s91
    %s94 = sphi 0, %s93
    %s108 = sphi 0, %s94
    %s114 = sphi 0, %s116
    %s117 = sphi 0, %s114
    %s118 = sphi 0, %s117
    %s134 = sphi 0, %s118
  $region4: #{tpu_custom_call.1} parent=0 // loop_header_branch
    %13 = sbr.rel (%p11) target = $region8
  $region5: #{tpu_custom_call.1} parent=0 // loop_body
    %s15 = ssub.s32 %s10, 1
    %s16 = ssub.s32 %s10, 2
    %s17 = sadd.s32 %s10, 1
    %s18 = ssub.s32 %s10, %s17
    %p19 = scmp.eq.s32.totalorder %s18, 0
    %s21 = sadd.s32 %s20, 1
    %s22 = scalar_select %p19, %s20, %s21
    %p25 = pneg %p19
    %p26 = scmp.eq.s32.totalorder %s10, 1
    %p27 = por %p25, %p26
    %p28 = scmp.ne.s32.totalorder %s20, %s23
    %p29 = scmp.eq.s32.totalorder %s10, 0
    %p30 = por %p28, %p29
    %p31 = scmp.ne.s32.totalorder %s20, %s23
    %p32 = scmp.eq.s32.totalorder %s15, 1
    %p33 = por %p31, %p32
    %p34 = scmp.ne.s32.totalorder %s23, %s24
    %p35 = scmp.eq.s32.totalorder %s15, 0
    %p36 = por %p34, %p35
    %p37 = scmp.ne.s32.totalorder %s23, %s24
    %p38 = scmp.eq.s32.totalorder %s16, 1
    %p39 = por %p37, %p38
    %p41 = scmp.ne.s32.totalorder %s24, %s40
    %p42 = scmp.eq.s32.totalorder %s16, 0
    %p43 = por %p41, %p42
    %s44 = ssub.s32 %s10, %s17
    %p45 = scmp.eq.s32.totalorder %s44, 0
    %s47 = sadd.s32 %s46, 1
    %s48 = scalar_select %p45, %s46, %s47
    %p51 = pneg %p45
    %p52 = scmp.eq.s32.totalorder %s10, 1
    %p53 = por %p51, %p52
    %p54 = scmp.ne.s32.totalorder %s46, %s49
    %p55 = scmp.eq.s32.totalorder %s10, 0
    %p56 = por %p54, %p55
    %p57 = scmp.ne.s32.totalorder %s46, %s49
    %p58 = scmp.eq.s32.totalorder %s15, 1
    %p59 = por %p57, %p58
    %p60 = scmp.ne.s32.totalorder %s49, %s50
    %p61 = scmp.eq.s32.totalorder %s15, 0
    %p62 = por %p60, %p61
    %p63 = scmp.ne.s32.totalorder %s49, %s50
    %p64 = scmp.eq.s32.totalorder %s16, 1
    %p65 = por %p63, %p64
    %p67 = scmp.ne.s32.totalorder %s50, %s66
    %p68 = scmp.eq.s32.totalorder %s16, 0
    %p69 = por %p67, %p68
    %s71 = sadd.s32 %s70, 1
    %p74 = scmp.eq.s32.totalorder %s10, 1
    %p75 = scmp.ne.s32.totalorder %s70, %s72
    %p76 = scmp.eq.s32.totalorder %s10, 0
    %p77 = por %p75, %p76
    %p78 = scmp.ne.s32.totalorder %s70, %s72
    %p79 = scmp.eq.s32.totalorder %s15, 1
    %p80 = por %p78, %p79
    %p81 = scmp.ne.s32.totalorder %s72, %s73
    %p82 = scmp.eq.s32.totalorder %s15, 0
    %p83 = por %p81, %p82
    %p84 = scmp.ne.s32.totalorder %s72, %s73
    %p85 = scmp.eq.s32.totalorder %s16, 1
    %p86 = por %p84, %p85
    %p88 = scmp.ne.s32.totalorder %s73, %s87
    %p89 = scmp.eq.s32.totalorder %s16, 0
    %p90 = por %p88, %p89
    %s92 = sadd.s32 %s91, 1
    %p95 = scmp.eq.s32.totalorder %s10, 1
    %p96 = scmp.ne.s32.totalorder %s91, %s93
    %p97 = scmp.eq.s32.totalorder %s10, 0
    %p98 = por %p96, %p97
    %p99 = scmp.ne.s32.totalorder %s91, %s93
    %p100 = scmp.eq.s32.totalorder %s15, 1
    %p101 = por %p99, %p100
    %p102 = scmp.ne.s32.totalorder %s93, %s94
    %p103 = scmp.eq.s32.totalorder %s15, 0
    %p104 = por %p102, %p103
    %p105 = scmp.ne.s32.totalorder %s93, %s94
    %p106 = scmp.eq.s32.totalorder %s16, 1
    %p107 = por %p105, %p106
    %p109 = scmp.ne.s32.totalorder %s94, %s108
    %p110 = scmp.eq.s32.totalorder %s16, 0
    %p111 = por %p109, %p110
    %s112 = ssub.s32 %s10, %s17
    %p113 = scmp.eq.s32.totalorder %s112, 0
    %s115 = sadd.s32 %s114, 1
    %s116 = scalar_select %p113, %s114, %s115
    %p119 = pneg %p113
    %p120 = scmp.eq.s32.totalorder %s10, 1
    %p121 = por %p119, %p120
    %p122 = scmp.ne.s32.totalorder %s114, %s117
    %p123 = scmp.eq.s32.totalorder %s10, 0
    %p124 = por %p122, %p123
    %p125 = scmp.ne.s32.totalorder %s114, %s117
    %p126 = scmp.eq.s32.totalorder %s15, 1
    %p127 = por %p125, %p126
    %p128 = scmp.ne.s32.totalorder %s117, %s118
    %p129 = scmp.eq.s32.totalorder %s15, 0
    %p130 = por %p128, %p129
    %p131 = scmp.ne.s32.totalorder %s117, %s118
    %p132 = scmp.eq.s32.totalorder %s16, 1
    %p133 = por %p131, %p132
    %p135 = scmp.ne.s32.totalorder %s118, %s134
    %p136 = scmp.eq.s32.totalorder %s16, 0
    %p137 = por %p135, %p136
    %p138 = scmp.le.s32.totalorder 1, %s10
    %p139 = scmp.lt.s32.totalorder %s10, 3
    %p140 = pnand %p138, %p139
    %p141 = pneg %p140
    // Predicated region
    $region9: #{tpu_custom_call.1} parent=5 // pred_check
      _
    $region10: #{tpu_custom_call.1} parent=5 // pred_check_branch
      %143 = sbr.rel (%p140) target = $region12
    $region11: #{tpu_custom_call.1} parent=5 // pred_region
      %s144 = ssub.s32 %s10, 1
      // Predicated region
      $region13: #{tpu_custom_call.1} parent=11 // pred_check
        %p145 = pneg %p83
      $region14: #{tpu_custom_call.1} parent=11 // pred_check_branch
        %147 = sbr.rel (%p145) target = $region16
      $region15: #{tpu_custom_call.1} parent=11 // pred_region
        _
      $region16: #{tpu_custom_call.1} parent=11 // pred_fallthru
        _
      // Predicated region
      $region17: #{tpu_custom_call.1} parent=11 // pred_check
        %p148 = pneg %p104
      $region18: #{tpu_custom_call.1} parent=11 // pred_check_branch
        %150 = sbr.rel (%p148) target = $region20
      $region19: #{tpu_custom_call.1} parent=11 // pred_region
        _
      $region20: #{tpu_custom_call.1} parent=11 // pred_fallthru
        _
    $region12: #{tpu_custom_call.1} parent=5 // pred_fallthru
      _
    %p151 = scmp.lt.s32.totalorder %s10, 2
    // Predicated region
    $region21: #{tpu_custom_call.1} parent=5 // pred_check
      %p152 = pneg %p151
    $region22: #{tpu_custom_call.1} parent=5 // pred_check_branch
      %154 = sbr.rel (%p152) target = $region24
    $region23: #{tpu_custom_call.1} parent=5 // pred_region
      // Predicated region
      $region25: #{tpu_custom_call.1} parent=23 // pred_check
        %p155 = pneg %p30
      $region26: #{tpu_custom_call.1} parent=23 // pred_check_branch
        %157 = sbr.rel (%p155) target = $region28
      $region27: #{tpu_custom_call.1} parent=23 // pred_region
        %p158 = scmp.lt.s32.totalorder %s10, 1
        %s159 = scalar_select %p158, %s10, 1
        %s160 = smul.addr %s159, 8
        %s161 = smul.addr %s160, 8
        %s162 = scalar_lea.vmem %s0, %s161
      $region28: #{tpu_custom_call.1} parent=23 // pred_fallthru
        _
      // Predicated region
      $region29: #{tpu_custom_call.1} parent=23 // pred_check
        %p163 = pneg %p56
      $region30: #{tpu_custom_call.1} parent=23 // pred_check_branch
        %165 = sbr.rel (%p163) target = $region32
      $region31: #{tpu_custom_call.1} parent=23 // pred_region
        %p166 = scmp.lt.s32.totalorder %s10, 1
        %s167 = scalar_select %p166, %s10, 1
        %s168 = smul.addr %s167, 2
        %s169 = smul.addr %s168, 8
        %s170 = scalar_lea.vmem %s1, %s169
      $region32: #{tpu_custom_call.1} parent=23 // pred_fallthru
        _
    $region24: #{tpu_custom_call.1} parent=5 // pred_fallthru
      _
    %p171 = scmp.le.s32.totalorder 1, %s10
    %p172 = scmp.lt.s32.totalorder %s10, 3
    %p173 = pnand %p171, %p172
    %p174 = pneg %p173
    // Predicated region
    $region33: #{tpu_custom_call.1} parent=5 // pred_check
      _
    $region34: #{tpu_custom_call.1} parent=5 // pred_check_branch
      %176 = sbr.rel (%p173) target = $region36
    $region35: #{tpu_custom_call.1} parent=5 // pred_region
      %s177 = ssub.s32 %s10, 1
      %p178 = scmp.lt.s32.totalorder %s15, 1
      %s179 = scalar_select %p178, %s15, 1
      %s180 = smul.addr %s179, 8
      %s181 = smul.addr %s180, 8
      %s182 = scalar_lea.vmem %s0, %s181
      %p183 = pneg %p36
      %p184 = pneg %p33
      %p185 = scmp.lt.s32.totalorder %s15, 1
      %s186 = scalar_select %p185, %s15, 1
      %s187 = smul.addr %s186, 2
      %s188 = smul.addr %s187, 8
      %s189 = scalar_lea.vmem %s1, %s188
      %p190 = pneg %p62
      %p191 = pneg %p59
      %p192 = pneg %p83
      %p193 = pneg %p80
      %p194 = pneg %p104
      %p195 = pneg %p101
      %p196 = pneg %p130
      %p197 = pneg %p127
      %p198 = scmp.lt.s32.totalorder %s15, 1
      %s199 = scalar_select %p198, %s15, 1
      %s200 = smul.addr %s199, 8
      %s201 = smul.addr %s200, 8
      %s202 = scalar_lea.vmem %s4, %s201
      %p203 = scmp.lt.s32.totalorder %s15, 1
      %s204 = scalar_select %p203, %s15, 1
      %s205 = smul.addr %s204, 8
      %s206 = smul.addr %s205, 8
      %s207 = scalar_lea.vmem %s0, %s206
      %p208 = scmp.lt.s32.totalorder %s15, 1
      %s209 = scalar_select %p208, %s15, 1
      %s210 = smul.addr %s209, 2
      %s211 = smul.addr %s210, 8
      %s212 = scalar_lea.vmem %s1, %s211
      %p213 = scmp.lt.s32.totalorder %s15, 1
      %s214 = scalar_select %p213, %s15, 1
      %s215 = smul.addr %s214, 8
      %s216 = smul.addr %s215, 8
      %s217 = scalar_lea.vmem %s4, %s216
      %v218 = vld [vmem:[%s207] sm:$0xff]
      %v219 = vld [vmem:[%s207 + $0x8] sm:$0xff]
      %v220 = vld [vmem:[%s207 + $0x10] sm:$0xff]
      %v221 = vld [vmem:[%s207 + $0x18] sm:$0xff]
      %v222 = vld [vmem:[%s207 + $0x20] sm:$0xff]
      %v223 = vld [vmem:[%s207 + $0x28] sm:$0xff]
      %v224 = vld [vmem:[%s207 + $0x30] sm:$0xff]
      %v225 = vld [vmem:[%s207 + $0x38] sm:$0xff]
      %v226 = vld [vmem:[%s212] sm:$0xff]
      %v227 = vld [vmem:[%s212 + $0x8] sm:$0xff]
      %v228 = vunpack.c.0.s8 %v226
      %v229 = vunpack.c.1.s8 %v226
      %v230 = vunpack.c.2.s8 %v226
      %v231 = vunpack.c.3.s8 %v226
      %v232 = vunpack.c.0.s8 %v227
      %v233 = vunpack.c.1.s8 %v227
      %v234 = vunpack.c.2.s8 %v227
      %v235 = vunpack.c.3.s8 %v227
      %v236 = vcvt.s32.f32 %v228
      %v237 = vcvt.s32.f32 %v229
      %v238 = vcvt.s32.f32 %v230
      %v239 = vcvt.s32.f32 %v231
      %v240 = vcvt.s32.f32 %v232
      %v241 = vcvt.s32.f32 %v233
      %v242 = vcvt.s32.f32 %v234
      %v243 = vcvt.s32.f32 %v235
      %v244 = vld [vmem:[%s2] sm:$0xff]
      %v245 = vld [vmem:[%s2 + $0x8] sm:$0xff]
      %v246 = vld [vmem:[%s2 + $0x10] sm:$0xff]
      %v247 = vld [vmem:[%s2 + $0x18] sm:$0xff]
      %v248 = vld [vmem:[%s3] sm:$0xff]
      %vm249 = vcmask 261120
      %v251 = vsel %vm249, %v218, 0
      %v254 = vsel %vm249, %v219, 0
      %v257 = vsel %vm249, %v220, 0
      %v260 = vsel %vm249, %v221, 0
      %v263 = vsel %vm249, %v222, 0
      %v266 = vsel %vm249, %v223, 0
      %v269 = vsel %vm249, %v224, 0
      %v272 = vsel %vm249, %v225, 0
      %274 = vmatprep.subr.mxu0 0.0
      %275 = vmatpush1.msra.mxu0 0.0
      %276 = vmatprep.subr.mxu0 0.0
      %277 = vmatpush1.msra.mxu0 0.0
      %278 = vmatprep.subr.mxu0 0.0
      %279 = vmatpush1.msra.mxu0 0.0
      %280 = vmatprep.subr.mxu0 0.0
      %281 = vmatpush1.msra.mxu0 0.0
      %282 = vmatprep.subr.mxu0 0.0
      %283 = vmatpush1.msra.mxu0 0.0
      %284 = vmatprep.subr.mxu0 0.0
      %285 = vmatpush1.msra.mxu0 0.0
      %286 = vmatprep.subr.mxu0 0.0
      %287 = vmatpush1.msra.mxu0 0.0
      %288 = vmatprep.subr.mxu0 0.0
      %289 = vmatpush1.msra.mxu0 0.0
      %290 = vmatprep.subr.mxu0 0.0
      %291 = vmatpush1.msra.mxu0 0.0
      %292 = vmatprep.subr.mxu0 0.0
      %293 = vmatpush1.msra.mxu0 0.0
      %294 = vmatprep.subr.mxu0 0.0
      %295 = vmatpush1.msra.mxu0 0.0
      %296 = vmatprep.subr.mxu0 0.0
      %297 = vmatpush1.msra.mxu0 0.0
      %298 = vmatprep.subr.mxu0 0.0
      %299 = vmatpush1.msra.mxu0 %v247
      %300 = vmatprep.subr.mxu0 0.0
      %301 = vmatpush1.msra.mxu0 %v246
      %302 = vmatprep.subr.mxu0 0.0
      %303 = vmatpush1.msra.mxu0 %v245
      %304 = vmatprep.subr.mxu0 0.0
      %305 = vmatpush1.msra.mxu0 %v244
      %306 = vmatprep.subr.mxu0 0.0
      %307 = vmatpush2.msra.mxu0 0.0
      %308 = vmatprep.subr.mxu0 0.0
      %309 = vmatpush2.msra.mxu0 0.0
      %310 = vmatprep.subr.mxu0 0.0
      %311 = vmatpush2.msra.mxu0 0.0
      %312 = vmatprep.subr.mxu0 0.0
      %313 = vmatpush2.msra.mxu0 0.0
      %314 = vmatprep.subr.mxu0 0.0
      %315 = vmatpush2.msra.mxu0 0.0
      %316 = vmatprep.subr.mxu0 0.0
      %317 = vmatpush2.msra.mxu0 0.0
      %318 = vmatprep.subr.mxu0 0.0
      %319 = vmatpush2.msra.mxu0 0.0
      %320 = vmatprep.subr.mxu0 0.0
      %321 = vmatpush2.msra.mxu0 0.0
      %322 = vmatprep.subr.mxu0 0.0
      %323 = vmatpush2.msra.mxu0 0.0
      %324 = vmatprep.subr.mxu0 0.0
      %325 = vmatpush2.msra.mxu0 0.0
      %326 = vmatprep.subr.mxu0 0.0
      %327 = vmatpush2.msra.mxu0 0.0
      %328 = vmatprep.subr.mxu0 0.0
      %329 = vmatpush2.msra.mxu0 0.0
      %330 = vmatprep.subr.mxu0 0.0
      %331 = vmatpush2.msra.mxu0 0.0
      %332 = vmatprep.subr.mxu0 0.0
      %333 = vmatpush2.msra.mxu0 0.0
      %334 = vmatprep.subr.mxu0 0.0
      %335 = vmatpush2.msra.mxu0 0.0
      %336 = vmatprep.subr.mxu0 0.0
      %337 = vmatpush2.msra.mxu0 0.0
      %338 = vmatprep.mubr.f32.mxu0 0.0
      %339 = vmatmul.mubr.f32.gmra.mxu0 %v251
      %v340 = vpop.f32.mrf.mxu0
      %v341 = vadd.f32 0.0, %v340
      %v342 = vpop.f32.mrf.mxu0
      %343 = vmatprep.mubr.f32.mxu0 0.0
      %344 = vmatmul.mubr.f32.gmra.mxu0 %v254
      %v345 = vpop.f32.mrf.mxu0
      %v346 = vadd.f32 0.0, %v345
      %v347 = vpop.f32.mrf.mxu0
      %348 = vmatprep.mubr.f32.mxu0 0.0
      %349 = vmatmul.mubr.f32.gmra.mxu0 %v257
      %v350 = vpop.f32.mrf.mxu0
      %v351 = vadd.f32 0.0, %v350
      %v352 = vpop.f32.mrf.mxu0
      %353 = vmatprep.mubr.f32.mxu0 0.0
      %354 = vmatmul.mubr.f32.gmra.mxu0 %v260
      %v355 = vpop.f32.mrf.mxu0
      %v356 = vadd.f32 0.0, %v355
      %v357 = vpop.f32.mrf.mxu0
      %358 = vmatprep.mubr.f32.mxu0 0.0
      %359 = vmatmul.mubr.f32.gmra.mxu0 %v263
      %v360 = vpop.f32.mrf.mxu0
      %v361 = vadd.f32 0.0, %v360
      %v362 = vpop.f32.mrf.mxu0
      %363 = vmatprep.mubr.f32.mxu0 0.0
      %364 = vmatmul.mubr.f32.gmra.mxu0 %v266
      %v365 = vpop.f32.mrf.mxu0
      %v366 = vadd.f32 0.0, %v365
      %v367 = vpop.f32.mrf.mxu0
      %368 = vmatprep.mubr.f32.mxu0 0.0
      %369 = vmatmul.mubr.f32.gmra.mxu0 %v269
      %v370 = vpop.f32.mrf.mxu0
      %v371 = vadd.f32 0.0, %v370
      %v372 = vpop.f32.mrf.mxu0
      %373 = vmatprep.mubr.f32.mxu0 0.0
      %374 = vmatmul.mubr.f32.gmra.mxu0 %v272
      %v375 = vpop.f32.mrf.mxu0
      %v376 = vadd.f32 0.0, %v375
      %v377 = vpop.f32.mrf.mxu0
      %378 = vdwg.mxu0
      %v379 = vlaneseq
      %v380 = vshrl.u32 %v379, 7
      %v381 = vsub.s32 1, %v380
      %v382 = vrot.slane %v248, %v381
      %v383 = vmul.f32 %v341, %v382
      %v384 = vmul.f32 %v346, %v382
      %v385 = vmul.f32 %v351, %v382
      %v386 = vmul.f32 %v356, %v382
      %v387 = vmul.f32 %v361, %v382
      %v388 = vmul.f32 %v366, %v382
      %v389 = vmul.f32 %v371, %v382
      %v390 = vmul.f32 %v376, %v382
      %v391 = vsel %vm249, %v383, 0.0
      %392 = vadd.xlane.f32.xlu0 %v391
      %v393 = vpop.xlane.xlu0 %392
      %v394 = vsel %vm249, %v384, 0.0
      %395 = vadd.xlane.f32.xlu0 %v394
      %v396 = vpop.xlane.xlu0 %395
      %v397 = vsel %vm249, %v385, 0.0
      %398 = vadd.xlane.f32.xlu0 %v397
      %v399 = vpop.xlane.xlu0 %398
      %v400 = vsel %vm249, %v386, 0.0
      %401 = vadd.xlane.f32.xlu0 %v400
      %v402 = vpop.xlane.xlu0 %401
      %v403 = vsel %vm249, %v387, 0.0
      %404 = vadd.xlane.f32.xlu0 %v403
      %v405 = vpop.xlane.xlu0 %404
      %v406 = vsel %vm249, %v388, 0.0
      %407 = vadd.xlane.f32.xlu0 %v406
      %v408 = vpop.xlane.xlu0 %407
      %v409 = vsel %vm249, %v389, 0.0
      %410 = vadd.xlane.f32.xlu0 %v409
      %v411 = vpop.xlane.xlu0 %410
      %v412 = vsel %vm249, %v390, 0.0
      %413 = vadd.xlane.f32.xlu0 %v412
      %v414 = vpop.xlane.xlu0 %413
      %v416 = vsel %vm249, %v248, 0
      %v419 = vsel %vm249, %v341, 0
      %v422 = vsel %vm249, %v346, 0
      %v425 = vsel %vm249, %v351, 0
      %v428 = vsel %vm249, %v356, 0
      %v431 = vsel %vm249, %v361, 0
      %v434 = vsel %vm249, %v366, 0
      %v437 = vsel %vm249, %v371, 0
      %v440 = vsel %vm249, %v376, 0
      %442 = vmatprep.subr.mxu0 0.0
      %443 = vmatpush1.xpose.msra.mxu0 0.0
      %444 = vmatprep.subr.mxu0 0.0
      %445 = vmatpush1.xpose.msra.mxu0 0.0
      %446 = vmatprep.subr.mxu0 0.0
      %447 = vmatpush1.xpose.msra.mxu0 0.0
      %448 = vmatprep.subr.mxu0 0.0
      %449 = vmatpush1.xpose.msra.mxu0 0.0
      %450 = vmatprep.subr.mxu0 0.0
      %451 = vmatpush1.xpose.msra.mxu0 0.0
      %452 = vmatprep.subr.mxu0 0.0
      %453 = vmatpush1.xpose.msra.mxu0 0.0
      %454 = vmatprep.subr.mxu0 0.0
      %455 = vmatpush1.xpose.msra.mxu0 0.0
      %456 = vmatprep.subr.mxu0 0.0
      %457 = vmatpush1.xpose.msra.mxu0 0.0
      %458 = vmatprep.subr.mxu0 0.0
      %459 = vmatpush1.xpose.msra.mxu0 %v440
      %460 = vmatprep.subr.mxu0 0.0
      %461 = vmatpush1.xpose.msra.mxu0 %v437
      %462 = vmatprep.subr.mxu0 0.0
      %463 = vmatpush1.xpose.msra.mxu0 %v434
      %464 = vmatprep.subr.mxu0 0.0
      %465 = vmatpush1.xpose.msra.mxu0 %v431
      %466 = vmatprep.subr.mxu0 0.0
      %467 = vmatpush1.xpose.msra.mxu0 %v428
      %468 = vmatprep.subr.mxu0 0.0
      %469 = vmatpush1.xpose.msra.mxu0 %v425
      %470 = vmatprep.subr.mxu0 0.0
      %471 = vmatpush1.xpose.msra.mxu0 %v422
      %472 = vmatprep.subr.mxu0 0.0
      %473 = vmatpush1.xpose.msra.mxu0 %v419
      %474 = vmatprep.subr.mxu0 0.0
      %475 = vmatpush2.xpose.msra.mxu0 0.0
      %476 = vmatprep.subr.mxu0 0.0
      %477 = vmatpush2.xpose.msra.mxu0 0.0
      %478 = vmatprep.subr.mxu0 0.0
      %479 = vmatpush2.xpose.msra.mxu0 0.0
      %480 = vmatprep.subr.mxu0 0.0
      %481 = vmatpush2.xpose.msra.mxu0 0.0
      %482 = vmatprep.subr.mxu0 0.0
      %483 = vmatpush2.xpose.msra.mxu0 0.0
      %484 = vmatprep.subr.mxu0 0.0
      %485 = vmatpush2.xpose.msra.mxu0 0.0
      %486 = vmatprep.subr.mxu0 0.0
      %487 = vmatpush2.xpose.msra.mxu0 0.0
      %488 = vmatprep.subr.mxu0 0.0
      %489 = vmatpush2.xpose.msra.mxu0 0.0
      %490 = vmatprep.subr.mxu0 0.0
      %491 = vmatpush2.xpose.msra.mxu0 0.0
      %492 = vmatprep.subr.mxu0 0.0
      %493 = vmatpush2.xpose.msra.mxu0 0.0
      %494 = vmatprep.subr.mxu0 0.0
      %495 = vmatpush2.xpose.msra.mxu0 0.0
      %496 = vmatprep.subr.mxu0 0.0
      %497 = vmatpush2.xpose.msra.mxu0 0.0
      %498 = vmatprep.subr.mxu0 0.0
      %499 = vmatpush2.xpose.msra.mxu0 0.0
      %500 = vmatprep.subr.mxu0 0.0
      %501 = vmatpush2.xpose.msra.mxu0 0.0
      %502 = vmatprep.subr.mxu0 0.0
      %503 = vmatpush2.xpose.msra.mxu0 0.0
      %504 = vmatprep.subr.mxu0 0.0
      %505 = vmatpush2.xpose.msra.mxu0 0.0
      %506 = vmatprep.mubr.f32.mxu0 0.0
      %507 = vmatmul.mubr.f32.gmra.mxu0 %v416
      %v508 = vpop.f32.mrf.mxu0
      %v509 = vadd.f32 0.0, %v508
      %v510 = vpop.f32.mrf.mxu0
      %511 = vdwg.mxu0
      %v512 = vlaneseq
      %v513 = vshrl.u32 %v512, 7
      %v514 = vsub.s32 0, %v513
      %v515 = vrot.slane %v509, %v514
      %v516 = vadd.f32 %v393, %v515
      %v517 = vadd.f32 %v396, %v515
      %v518 = vadd.f32 %v399, %v515
      %v519 = vadd.f32 %v402, %v515
      %v520 = vadd.f32 %v405, %v515
      %v521 = vadd.f32 %v408, %v515
      %v522 = vadd.f32 %v411, %v515
      %v523 = vadd.f32 %v414, %v515
      %vm524 = vcmp.gt.f32.partialorder %v516, 0.0
      %vm525 = vcmp.gt.f32.partialorder %v517, 0.0
      %vm526 = vcmp.gt.f32.partialorder %v518, 0.0
      %vm527 = vcmp.gt.f32.partialorder %v519, 0.0
      %vm528 = vcmp.gt.f32.partialorder %v520, 0.0
      %vm529 = vcmp.gt.f32.partialorder %v521, 0.0
      %vm530 = vcmp.gt.f32.partialorder %v522, 0.0
      %vm531 = vcmp.gt.f32.partialorder %v523, 0.0
      %v532 = vmul.f32 %v516, 0.2
      %v533 = vmul.f32 %v517, 0.2
      %v534 = vmul.f32 %v518, 0.2
      %v535 = vmul.f32 %v519, 0.2
      %v536 = vmul.f32 %v520, 0.2
      %v537 = vmul.f32 %v521, 0.2
      %v538 = vmul.f32 %v522, 0.2
      %v539 = vmul.f32 %v523, 0.2
      %v540 = vsel %vm524, %v516, %v532
      %v541 = vsel %vm525, %v517, %v533
      %v542 = vsel %vm526, %v518, %v534
      %v543 = vsel %vm527, %v519, %v535
      %v544 = vsel %vm528, %v520, %v536
      %v545 = vsel %vm529, %v521, %v537
      %v546 = vsel %vm530, %v522, %v538
      %v547 = vsel %vm531, %v523, %v539
      %vm548 = vcmp.gt.f32.partialorder %v236, 0.0
      %vm549 = vcmp.gt.f32.partialorder %v237, 0.0
      %vm550 = vcmp.gt.f32.partialorder %v238, 0.0
      %vm551 = vcmp.gt.f32.partialorder %v239, 0.0
      %vm552 = vcmp.gt.f32.partialorder %v240, 0.0
      %vm553 = vcmp.gt.f32.partialorder %v241, 0.0
      %vm554 = vcmp.gt.f32.partialorder %v242, 0.0
      %vm555 = vcmp.gt.f32.partialorder %v243, 0.0
      %v556 = vsel %vm548, %v540, -1e+30
      %v557 = vsel %vm549, %v541, -1e+30
      %v558 = vsel %vm550, %v542, -1e+30
      %v559 = vsel %vm551, %v543, -1e+30
      %v560 = vsel %vm552, %v544, -1e+30
      %v561 = vsel %vm553, %v545, -1e+30
      %v562 = vsel %vm554, %v546, -1e+30
      %v563 = vsel %vm555, %v547, -1e+30
      %vm564 = vcmask 523264
      %v565 = vsel %vm564, %v556, -inf
      %566 = vmax.xlane.f32.xlu0 %v565
      %v567 = vpop.xlane.xlu0 %566
      %v568 = vsel %vm564, %v557, -inf
      %569 = vmax.xlane.f32.xlu0 %v568
      %v570 = vpop.xlane.xlu0 %569
      %v571 = vsel %vm564, %v558, -inf
      %572 = vmax.xlane.f32.xlu0 %v571
      %v573 = vpop.xlane.xlu0 %572
      %v574 = vsel %vm564, %v559, -inf
      %575 = vmax.xlane.f32.xlu0 %v574
      %v576 = vpop.xlane.xlu0 %575
      %v577 = vsel %vm564, %v560, -inf
      %578 = vmax.xlane.f32.xlu0 %v577
      %v579 = vpop.xlane.xlu0 %578
      %v580 = vsel %vm564, %v561, -inf
      %581 = vmax.xlane.f32.xlu0 %v580
      %v582 = vpop.xlane.xlu0 %581
      %v583 = vsel %vm564, %v562, -inf
      %584 = vmax.xlane.f32.xlu0 %v583
      %v585 = vpop.xlane.xlu0 %584
      %v586 = vsel %vm564, %v563, -inf
      %587 = vmax.xlane.f32.xlu0 %v586
      %v588 = vpop.xlane.xlu0 %587
      %v589 = vsub.f32 %v556, %v567
      %v590 = vsub.f32 %v557, %v570
      %v591 = vsub.f32 %v558, %v573
      %v592 = vsub.f32 %v559, %v576
      %v593 = vsub.f32 %v560, %v579
      %v594 = vsub.f32 %v561, %v582
      %v595 = vsub.f32 %v562, %v585
      %v596 = vsub.f32 %v563, %v588
      %v597 = vmul.f32 %v589, 1.442695
      %v598 = vpow.pop %v597
      %v599 = vmul.f32 %v590, 1.442695
      %v600 = vpow.pop %v599
      %v601 = vmul.f32 %v591, 1.442695
      %v602 = vpow.pop %v601
      %v603 = vmul.f32 %v592, 1.442695
      %v604 = vpow.pop %v603
      %v605 = vmul.f32 %v593, 1.442695
      %v606 = vpow.pop %v605
      %v607 = vmul.f32 %v594, 1.442695
      %v608 = vpow.pop %v607
      %v609 = vmul.f32 %v595, 1.442695
      %v610 = vpow.pop %v609
      %v611 = vmul.f32 %v596, 1.442695
      %v612 = vpow.pop %v611
      %v613 = vmul.f32 %v598, %v236
      %v614 = vmul.f32 %v600, %v237
      %v615 = vmul.f32 %v602, %v238
      %v616 = vmul.f32 %v604, %v239
      %v617 = vmul.f32 %v606, %v240
      %v618 = vmul.f32 %v608, %v241
      %v619 = vmul.f32 %v610, %v242
      %v620 = vmul.f32 %v612, %v243
      %v621 = vsel %vm564, %v613, 0.0
      %622 = vadd.xlane.f32.xlu0 %v621
      %v623 = vpop.xlane.xlu0 %622
      %v624 = vsel %vm564, %v614, 0.0
      %625 = vadd.xlane.f32.xlu0 %v624
      %v626 = vpop.xlane.xlu0 %625
      %v627 = vsel %vm564, %v615, 0.0
      %628 = vadd.xlane.f32.xlu0 %v627
      %v629 = vpop.xlane.xlu0 %628
      %v630 = vsel %vm564, %v616, 0.0
      %631 = vadd.xlane.f32.xlu0 %v630
      %v632 = vpop.xlane.xlu0 %631
      %v633 = vsel %vm564, %v617, 0.0
      %634 = vadd.xlane.f32.xlu0 %v633
      %v635 = vpop.xlane.xlu0 %634
      %v636 = vsel %vm564, %v618, 0.0
      %637 = vadd.xlane.f32.xlu0 %v636
      %v638 = vpop.xlane.xlu0 %637
      %v639 = vsel %vm564, %v619, 0.0
      %640 = vadd.xlane.f32.xlu0 %v639
      %v641 = vpop.xlane.xlu0 %640
      %v642 = vsel %vm564, %v620, 0.0
      %643 = vadd.xlane.f32.xlu0 %v642
      %v644 = vpop.xlane.xlu0 %643
      %vm645 = vcmp.gt.f32.partialorder %v623, 0.0
      %vm646 = vcmp.gt.f32.partialorder %v626, 0.0
      %vm647 = vcmp.gt.f32.partialorder %v629, 0.0
      %vm648 = vcmp.gt.f32.partialorder %v632, 0.0
      %vm649 = vcmp.gt.f32.partialorder %v635, 0.0
      %vm650 = vcmp.gt.f32.partialorder %v638, 0.0
      %vm651 = vcmp.gt.f32.partialorder %v641, 0.0
      %vm652 = vcmp.gt.f32.partialorder %v644, 0.0
      %v653 = vsel %vm645, %v623, 1.0
      %v654 = vsel %vm646, %v626, 1.0
      %v655 = vsel %vm647, %v629, 1.0
      %v656 = vsel %vm648, %v632, 1.0
      %v657 = vsel %vm649, %v635, 1.0
      %v658 = vsel %vm650, %v638, 1.0
      %v659 = vsel %vm651, %v641, 1.0
      %v660 = vsel %vm652, %v644, 1.0
      %v661 = vrcp.pop %v653
      %v662 = vrcp.pop %v654
      %v663 = vrcp.pop %v655
      %v664 = vrcp.pop %v656
      %v665 = vrcp.pop %v657
      %v666 = vrcp.pop %v658
      %v667 = vrcp.pop %v659
      %v668 = vrcp.pop %v660
      %v669 = vmul.f32 %v613, %v661
      %v670 = vmul.f32 %v614, %v662
      %v671 = vmul.f32 %v615, %v663
      %v672 = vmul.f32 %v616, %v664
      %v673 = vmul.f32 %v617, %v665
      %v674 = vmul.f32 %v618, %v666
      %v675 = vmul.f32 %v619, %v667
      %v676 = vmul.f32 %v620, %v668
      %v677 = vlaneseq
      %v678 = vshrl.u32 %v677, 7
      %v679 = vsub.s32 2, %v678
      %v680 = vrot.slane %v248, %v679
      %v682 = vsel %vm564, %v669, 0
      %v685 = vsel %vm564, %v670, 0
      %v688 = vsel %vm564, %v671, 0
      %v691 = vsel %vm564, %v672, 0
      %v694 = vsel %vm564, %v673, 0
      %v697 = vsel %vm564, %v674, 0
      %v700 = vsel %vm564, %v675, 0
      %v703 = vsel %vm564, %v676, 0
      %705 = vmatprep.subr.mxu0 0.0
      %706 = vmatpush1.msra.mxu0 0.0
      %707 = vmatprep.subr.mxu0 0.0
      %708 = vmatpush1.msra.mxu0 0.0
      %709 = vmatprep.subr.mxu0 0.0
      %710 = vmatpush1.msra.mxu0 0.0
      %711 = vmatprep.subr.mxu0 0.0
      %712 = vmatpush1.msra.mxu0 0.0
      %713 = vmatprep.subr.mxu0 0.0
      %714 = vmatpush1.msra.mxu0 0.0
      %715 = vmatprep.subr.mxu0 0.0
      %716 = vmatpush1.msra.mxu0 0.0
      %717 = vmatprep.subr.mxu0 0.0
      %718 = vmatpush1.msra.mxu0 0.0
      %719 = vmatprep.subr.mxu0 0.0
      %720 = vmatpush1.msra.mxu0 0.0
      %721 = vmatprep.subr.mxu0 0.0
      %722 = vmatpush1.msra.mxu0 %v376
      %723 = vmatprep.subr.mxu0 0.0
      %724 = vmatpush1.msra.mxu0 %v371
      %725 = vmatprep.subr.mxu0 0.0
      %726 = vmatpush1.msra.mxu0 %v366
      %727 = vmatprep.subr.mxu0 0.0
      %728 = vmatpush1.msra.mxu0 %v361
      %729 = vmatprep.subr.mxu0 0.0
      %730 = vmatpush1.msra.mxu0 %v356
      %731 = vmatprep.subr.mxu0 0.0
      %732 = vmatpush1.msra.mxu0 %v351
      %733 = vmatprep.subr.mxu0 0.0
      %734 = vmatpush1.msra.mxu0 %v346
      %735 = vmatprep.subr.mxu0 0.0
      %736 = vmatpush1.msra.mxu0 %v341
      %737 = vmatprep.subr.mxu0 0.0
      %738 = vmatpush2.msra.mxu0 0.0
      %739 = vmatprep.subr.mxu0 0.0
      %740 = vmatpush2.msra.mxu0 0.0
      %741 = vmatprep.subr.mxu0 0.0
      %742 = vmatpush2.msra.mxu0 0.0
      %743 = vmatprep.subr.mxu0 0.0
      %744 = vmatpush2.msra.mxu0 0.0
      %745 = vmatprep.subr.mxu0 0.0
      %746 = vmatpush2.msra.mxu0 0.0
      %747 = vmatprep.subr.mxu0 0.0
      %748 = vmatpush2.msra.mxu0 0.0
      %749 = vmatprep.subr.mxu0 0.0
      %750 = vmatpush2.msra.mxu0 0.0
      %751 = vmatprep.subr.mxu0 0.0
      %752 = vmatpush2.msra.mxu0 0.0
      %753 = vmatprep.subr.mxu0 0.0
      %754 = vmatpush2.msra.mxu0 0.0
      %755 = vmatprep.subr.mxu0 0.0
      %756 = vmatpush2.msra.mxu0 0.0
      %757 = vmatprep.subr.mxu0 0.0
      %758 = vmatpush2.msra.mxu0 0.0
      %759 = vmatprep.subr.mxu0 0.0
      %760 = vmatpush2.msra.mxu0 0.0
      %761 = vmatprep.subr.mxu0 0.0
      %762 = vmatpush2.msra.mxu0 0.0
      %763 = vmatprep.subr.mxu0 0.0
      %764 = vmatpush2.msra.mxu0 0.0
      %765 = vmatprep.subr.mxu0 0.0
      %766 = vmatpush2.msra.mxu0 0.0
      %767 = vmatprep.subr.mxu0 0.0
      %768 = vmatpush2.msra.mxu0 0.0
      %769 = vmatprep.mubr.f32.mxu0 0.0
      %770 = vmatmul.mubr.f32.gmra.mxu0 %v682
      %v771 = vpop.f32.mrf.mxu0
      %v772 = vadd.f32 %v680, %v771
      %v773 = vpop.f32.mrf.mxu0
      %774 = vmatprep.mubr.f32.mxu0 0.0
      %775 = vmatmul.mubr.f32.gmra.mxu0 %v685
      %v776 = vpop.f32.mrf.mxu0
      %v777 = vadd.f32 %v680, %v776
      %v778 = vpop.f32.mrf.mxu0
      %779 = vmatprep.mubr.f32.mxu0 0.0
      %780 = vmatmul.mubr.f32.gmra.mxu0 %v688
      %v781 = vpop.f32.mrf.mxu0
      %v782 = vadd.f32 %v680, %v781
      %v783 = vpop.f32.mrf.mxu0
      %784 = vmatprep.mubr.f32.mxu0 0.0
      %785 = vmatmul.mubr.f32.gmra.mxu0 %v691
      %v786 = vpop.f32.mrf.mxu0
      %v787 = vadd.f32 %v680, %v786
      %v788 = vpop.f32.mrf.mxu0
      %789 = vmatprep.mubr.f32.mxu0 0.0
      %790 = vmatmul.mubr.f32.gmra.mxu0 %v694
      %v791 = vpop.f32.mrf.mxu0
      %v792 = vadd.f32 %v680, %v791
      %v793 = vpop.f32.mrf.mxu0
      %794 = vmatprep.mubr.f32.mxu0 0.0
      %795 = vmatmul.mubr.f32.gmra.mxu0 %v697
      %v796 = vpop.f32.mrf.mxu0
      %v797 = vadd.f32 %v680, %v796
      %v798 = vpop.f32.mrf.mxu0
      %799 = vmatprep.mubr.f32.mxu0 0.0
      %800 = vmatmul.mubr.f32.gmra.mxu0 %v700
      %v801 = vpop.f32.mrf.mxu0
      %v802 = vadd.f32 %v680, %v801
      %v803 = vpop.f32.mrf.mxu0
      %804 = vmatprep.mubr.f32.mxu0 0.0
      %805 = vmatmul.mubr.f32.gmra.mxu0 %v703
      %v806 = vpop.f32.mrf.mxu0
      %v807 = vadd.f32 %v680, %v806
      %v808 = vpop.f32.mrf.mxu0
      %809 = vdwg.mxu0
      %v810 = vsel %vm249, %v772, 0.0
      %811 = vadd.xlane.f32.xlu0 %v810
      %v812 = vpop.xlane.xlu0 %811
      %v813 = vsel %vm249, %v777, 0.0
      %814 = vadd.xlane.f32.xlu0 %v813
      %v815 = vpop.xlane.xlu0 %814
      %v816 = vsel %vm249, %v782, 0.0
      %817 = vadd.xlane.f32.xlu0 %v816
      %v818 = vpop.xlane.xlu0 %817
      %v819 = vsel %vm249, %v787, 0.0
      %820 = vadd.xlane.f32.xlu0 %v819
      %v821 = vpop.xlane.xlu0 %820
      %v822 = vsel %vm249, %v792, 0.0
      %823 = vadd.xlane.f32.xlu0 %v822
      %v824 = vpop.xlane.xlu0 %823
      %v825 = vsel %vm249, %v797, 0.0
      %826 = vadd.xlane.f32.xlu0 %v825
      %v827 = vpop.xlane.xlu0 %826
      %v828 = vsel %vm249, %v802, 0.0
      %829 = vadd.xlane.f32.xlu0 %v828
      %v830 = vpop.xlane.xlu0 %829
      %v831 = vsel %vm249, %v807, 0.0
      %832 = vadd.xlane.f32.xlu0 %v831
      %v833 = vpop.xlane.xlu0 %832
      %v834 = vrcp.pop 32.0
      %v835 = vmul.f32 %v812, %v834
      %v836 = vmul.f32 %v815, %v834
      %v837 = vmul.f32 %v818, %v834
      %v838 = vmul.f32 %v821, %v834
      %v839 = vmul.f32 %v824, %v834
      %v840 = vmul.f32 %v827, %v834
      %v841 = vmul.f32 %v830, %v834
      %v842 = vmul.f32 %v833, %v834
      %v843 = vmul.f32 %v772, %v772
      %v844 = vmul.f32 %v777, %v777
      %v845 = vmul.f32 %v782, %v782
      %v846 = vmul.f32 %v787, %v787
      %v847 = vmul.f32 %v792, %v792
      %v848 = vmul.f32 %v797, %v797
      %v849 = vmul.f32 %v802, %v802
      %v850 = vmul.f32 %v807, %v807
      %v851 = vsel %vm249, %v843, 0.0
      %852 = vadd.xlane.f32.xlu0 %v851
      %v853 = vpop.xlane.xlu0 %852
      %v854 = vsel %vm249, %v844, 0.0
      %855 = vadd.xlane.f32.xlu0 %v854
      %v856 = vpop.xlane.xlu0 %855
      %v857 = vsel %vm249, %v845, 0.0
      %858 = vadd.xlane.f32.xlu0 %v857
      %v859 = vpop.xlane.xlu0 %858
      %v860 = vsel %vm249, %v846, 0.0
      %861 = vadd.xlane.f32.xlu0 %v860
      %v862 = vpop.xlane.xlu0 %861
      %v863 = vsel %vm249, %v847, 0.0
      %864 = vadd.xlane.f32.xlu0 %v863
      %v865 = vpop.xlane.xlu0 %864
      %v866 = vsel %vm249, %v848, 0.0
      %867 = vadd.xlane.f32.xlu0 %v866
      %v868 = vpop.xlane.xlu0 %867
      %v869 = vsel %vm249, %v849, 0.0
      %870 = vadd.xlane.f32.xlu0 %v869
      %v871 = vpop.xlane.xlu0 %870
      %v872 = vsel %vm249, %v850, 0.0
      %873 = vadd.xlane.f32.xlu0 %v872
      %v874 = vpop.xlane.xlu0 %873
      %v875 = vmul.f32 %v853, %v834
      %v876 = vmul.f32 %v856, %v834
      %v877 = vmul.f32 %v859, %v834
      %v878 = vmul.f32 %v862, %v834
      %v879 = vmul.f32 %v865, %v834
      %v880 = vmul.f32 %v868, %v834
      %v881 = vmul.f32 %v871, %v834
      %v882 = vmul.f32 %v874, %v834
      %v883 = vmul.f32 %v835, %v835
      %v884 = vmul.f32 %v836, %v836
      %v885 = vmul.f32 %v837, %v837
      %v886 = vmul.f32 %v838, %v838
      %v887 = vmul.f32 %v839, %v839
      %v888 = vmul.f32 %v840, %v840
      %v889 = vmul.f32 %v841, %v841
      %v890 = vmul.f32 %v842, %v842
      %v891 = vsub.f32 %v875, %v883
      %v892 = vsub.f32 %v876, %v884
      %v893 = vsub.f32 %v877, %v885
      %v894 = vsub.f32 %v878, %v886
      %v895 = vsub.f32 %v879, %v887
      %v896 = vsub.f32 %v880, %v888
      %v897 = vsub.f32 %v881, %v889
      %v898 = vsub.f32 %v882, %v890
      %v899 = vmax.f32 %v891, 0.0
      %v900 = vmax.f32 %v892, 0.0
      %v901 = vmax.f32 %v893, 0.0
      %v902 = vmax.f32 %v894, 0.0
      %v903 = vmax.f32 %v895, 0.0
      %v904 = vmax.f32 %v896, 0.0
      %v905 = vmax.f32 %v897, 0.0
      %v906 = vmax.f32 %v898, 0.0
      %v907 = vsub.f32 %v772, %v835
      %v908 = vsub.f32 %v777, %v836
      %v909 = vsub.f32 %v782, %v837
      %v910 = vsub.f32 %v787, %v838
      %v911 = vsub.f32 %v792, %v839
      %v912 = vsub.f32 %v797, %v840
      %v913 = vsub.f32 %v802, %v841
      %v914 = vsub.f32 %v807, %v842
      %v915 = vadd.f32 %v899, 1e-05
      %v916 = vadd.f32 %v900, 1e-05
      %v917 = vadd.f32 %v901, 1e-05
      %v918 = vadd.f32 %v902, 1e-05
      %v919 = vadd.f32 %v903, 1e-05
      %v920 = vadd.f32 %v904, 1e-05
      %v921 = vadd.f32 %v905, 1e-05
      %v922 = vadd.f32 %v906, 1e-05
      %v923 = vrsqrt.pop %v915
      %v924 = vrsqrt.pop %v916
      %v925 = vrsqrt.pop %v917
      %v926 = vrsqrt.pop %v918
      %v927 = vrsqrt.pop %v919
      %v928 = vrsqrt.pop %v920
      %v929 = vrsqrt.pop %v921
      %v930 = vrsqrt.pop %v922
      %v931 = vmul.f32 %v907, %v923
      %v932 = vmul.f32 %v908, %v924
      %v933 = vmul.f32 %v909, %v925
      %v934 = vmul.f32 %v910, %v926
      %v935 = vmul.f32 %v911, %v927
      %v936 = vmul.f32 %v912, %v928
      %v937 = vmul.f32 %v913, %v929
      %v938 = vmul.f32 %v914, %v930
      %v939 = vlaneseq
      %v940 = vshrl.u32 %v939, 7
      %v941 = vsub.s32 3, %v940
      %v942 = vrot.slane %v248, %v941
      %v943 = vmul.f32 %v931, %v942
      %v944 = vmul.f32 %v932, %v942
      %v945 = vmul.f32 %v933, %v942
      %v946 = vmul.f32 %v934, %v942
      %v947 = vmul.f32 %v935, %v942
      %v948 = vmul.f32 %v936, %v942
      %v949 = vmul.f32 %v937, %v942
      %v950 = vmul.f32 %v938, %v942
      %v951 = vlaneseq
      %v952 = vshrl.u32 %v951, 7
      %v953 = vsub.s32 4, %v952
      %v954 = vrot.slane %v248, %v953
      %v955 = vadd.f32 %v943, %v954
      %v956 = vadd.f32 %v944, %v954
      %v957 = vadd.f32 %v945, %v954
      %v958 = vadd.f32 %v946, %v954
      %v959 = vadd.f32 %v947, %v954
      %v960 = vadd.f32 %v948, %v954
      %v961 = vadd.f32 %v949, %v954
      %v962 = vadd.f32 %v950, %v954
      %vm963 = vcmp.gt.f32.partialorder %v955, 0.0
      %vm964 = vcmp.gt.f32.partialorder %v956, 0.0
      %vm965 = vcmp.gt.f32.partialorder %v957, 0.0
      %vm966 = vcmp.gt.f32.partialorder %v958, 0.0
      %vm967 = vcmp.gt.f32.partialorder %v959, 0.0
      %vm968 = vcmp.gt.f32.partialorder %v960, 0.0
      %vm969 = vcmp.gt.f32.partialorder %v961, 0.0
      %vm970 = vcmp.gt.f32.partialorder %v962, 0.0
      %v971 = vmul.f32 %v955, 0.01
      %v972 = vmul.f32 %v956, 0.01
      %v973 = vmul.f32 %v957, 0.01
      %v974 = vmul.f32 %v958, 0.01
      %v975 = vmul.f32 %v959, 0.01
      %v976 = vmul.f32 %v960, 0.01
      %v977 = vmul.f32 %v961, 0.01
      %v978 = vmul.f32 %v962, 0.01
      %v979 = vsel %vm963, %v955, %v971
      %v980 = vsel %vm964, %v956, %v972
      %v981 = vsel %vm965, %v957, %v973
      %v982 = vsel %vm966, %v958, %v974
      %v983 = vsel %vm967, %v959, %v975
      %v984 = vsel %vm968, %v960, %v976
      %v985 = vsel %vm969, %v961, %v977
      %v986 = vsel %vm970, %v962, %v978
      %v987 = vmul.f32 %v979, 0.5
      %v988 = vmul.f32 %v980, 0.5
      %v989 = vmul.f32 %v981, 0.5
      %v990 = vmul.f32 %v982, 0.5
      %v991 = vmul.f32 %v983, 0.5
      %v992 = vmul.f32 %v984, 0.5
      %v993 = vmul.f32 %v985, 0.5
      %v994 = vmul.f32 %v986, 0.5
      %v995 = vadd.f32 %v987, 0.0
      %v996 = vadd.f32 %v988, 0.0
      %v997 = vadd.f32 %v989, 0.0
      %v998 = vadd.f32 %v990, 0.0
      %v999 = vadd.f32 %v991, 0.0
      %v1000 = vadd.f32 %v992, 0.0
      %v1001 = vadd.f32 %v993, 0.0
      %v1002 = vadd.f32 %v994, 0.0
      %s1003 = scalar_lea.vmem %s2, 32
      %v1004 = vld [vmem:[%s1003] sm:$0xff]
      %v1005 = vld [vmem:[%s1003 + $0x8] sm:$0xff]
      %v1006 = vld [vmem:[%s1003 + $0x10] sm:$0xff]
      %v1007 = vld [vmem:[%s1003 + $0x18] sm:$0xff]
      %s1008 = scalar_lea.vmem %s3, 8
      %v1009 = vld [vmem:[%s1008] sm:$0xff]
      %v1011 = vsel %vm249, %v979, 0
      %v1014 = vsel %vm249, %v980, 0
      %v1017 = vsel %vm249, %v981, 0
      %v1020 = vsel %vm249, %v982, 0
      %v1023 = vsel %vm249, %v983, 0
      %v1026 = vsel %vm249, %v984, 0
      %v1029 = vsel %vm249, %v985, 0
      %v1032 = vsel %vm249, %v986, 0
      %1034 = vmatprep.subr.mxu0 0.0
      %1035 = vmatpush1.msra.mxu0 0.0
      %1036 = vmatprep.subr.mxu0 0.0
      %1037 = vmatpush1.msra.mxu0 0.0
      %1038 = vmatprep.subr.mxu0 0.0
      %1039 = vmatpush1.msra.mxu0 0.0
      %1040 = vmatprep.subr.mxu0 0.0
      %1041 = vmatpush1.msra.mxu0 0.0
      %1042 = vmatprep.subr.mxu0 0.0
      %1043 = vmatpush1.msra.mxu0 0.0
      %1044 = vmatprep.subr.mxu0 0.0
      %1045 = vmatpush1.msra.mxu0 0.0
      %1046 = vmatprep.subr.mxu0 0.0
      %1047 = vmatpush1.msra.mxu0 0.0
      %1048 = vmatprep.subr.mxu0 0.0
      %1049 = vmatpush1.msra.mxu0 0.0
      %1050 = vmatprep.subr.mxu0 0.0
      %1051 = vmatpush1.msra.mxu0 0.0
      %1052 = vmatprep.subr.mxu0 0.0
      %1053 = vmatpush1.msra.mxu0 0.0
      %1054 = vmatprep.subr.mxu0 0.0
      %1055 = vmatpush1.msra.mxu0 0.0
      %1056 = vmatprep.subr.mxu0 0.0
      %1057 = vmatpush1.msra.mxu0 0.0
      %1058 = vmatprep.subr.mxu0 0.0
      %1059 = vmatpush1.msra.mxu0 %v1007
      %1060 = vmatprep.subr.mxu0 0.0
      %1061 = vmatpush1.msra.mxu0 %v1006
      %1062 = vmatprep.subr.mxu0 0.0
      %1063 = vmatpush1.msra.mxu0 %v1005
      %1064 = vmatprep.subr.mxu0 0.0
      %1065 = vmatpush1.msra.mxu0 %v1004
      %1066 = vmatprep.subr.mxu0 0.0
      %1067 = vmatpush2.msra.mxu0 0.0
      %1068 = vmatprep.subr.mxu0 0.0
      %1069 = vmatpush2.msra.mxu0 0.0
      %1070 = vmatprep.subr.mxu0 0.0
      %1071 = vmatpush2.msra.mxu0 0.0
      %1072 = vmatprep.subr.mxu0 0.0
      %1073 = vmatpush2.msra.mxu0 0.0
      %1074 = vmatprep.subr.mxu0 0.0
      %1075 = vmatpush2.msra.mxu0 0.0
      %1076 = vmatprep.subr.mxu0 0.0
      %1077 = vmatpush2.msra.mxu0 0.0
      %1078 = vmatprep.subr.mxu0 0.0
      %1079 = vmatpush2.msra.mxu0 0.0
      %1080 = vmatprep.subr.mxu0 0.0
      %1081 = vmatpush2.msra.mxu0 0.0
      %1082 = vmatprep.subr.mxu0 0.0
      %1083 = vmatpush2.msra.mxu0 0.0
      %1084 = vmatprep.subr.mxu0 0.0
      %1085 = vmatpush2.msra.mxu0 0.0
      %1086 = vmatprep.subr.mxu0 0.0
      %1087 = vmatpush2.msra.mxu0 0.0
      %1088 = vmatprep.subr.mxu0 0.0
      %1089 = vmatpush2.msra.mxu0 0.0
      %1090 = vmatprep.subr.mxu0 0.0
      %1091 = vmatpush2.msra.mxu0 0.0
      %1092 = vmatprep.subr.mxu0 0.0
      %1093 = vmatpush2.msra.mxu0 0.0
      %1094 = vmatprep.subr.mxu0 0.0
      %1095 = vmatpush2.msra.mxu0 0.0
      %1096 = vmatprep.subr.mxu0 0.0
      %1097 = vmatpush2.msra.mxu0 0.0
      %1098 = vmatprep.mubr.f32.mxu0 0.0
      %1099 = vmatmul.mubr.f32.gmra.mxu0 %v1011
      %v1100 = vpop.f32.mrf.mxu0
      %v1101 = vadd.f32 0.0, %v1100
      %v1102 = vpop.f32.mrf.mxu0
      %1103 = vmatprep.mubr.f32.mxu0 0.0
      %1104 = vmatmul.mubr.f32.gmra.mxu0 %v1014
      %v1105 = vpop.f32.mrf.mxu0
      %v1106 = vadd.f32 0.0, %v1105
      %v1107 = vpop.f32.mrf.mxu0
      %1108 = vmatprep.mubr.f32.mxu0 0.0
      %1109 = vmatmul.mubr.f32.gmra.mxu0 %v1017
      %v1110 = vpop.f32.mrf.mxu0
      %v1111 = vadd.f32 0.0, %v1110
      %v1112 = vpop.f32.mrf.mxu0
      %1113 = vmatprep.mubr.f32.mxu0 0.0
      %1114 = vmatmul.mubr.f32.gmra.mxu0 %v1020
      %v1115 = vpop.f32.mrf.mxu0
      %v1116 = vadd.f32 0.0, %v1115
      %v1117 = vpop.f32.mrf.mxu0
      %1118 = vmatprep.mubr.f32.mxu0 0.0
      %1119 = vmatmul.mubr.f32.gmra.mxu0 %v1023
      %v1120 = vpop.f32.mrf.mxu0
      %v1121 = vadd.f32 0.0, %v1120
      %v1122 = vpop.f32.mrf.mxu0
      %1123 = vmatprep.mubr.f32.mxu0 0.0
      %1124 = vmatmul.mubr.f32.gmra.mxu0 %v1026
      %v1125 = vpop.f32.mrf.mxu0
      %v1126 = vadd.f32 0.0, %v1125
      %v1127 = vpop.f32.mrf.mxu0
      %1128 = vmatprep.mubr.f32.mxu0 0.0
      %1129 = vmatmul.mubr.f32.gmra.mxu0 %v1029
      %v1130 = vpop.f32.mrf.mxu0
      %v1131 = vadd.f32 0.0, %v1130
      %v1132 = vpop.f32.mrf.mxu0
      %1133 = vmatprep.mubr.f32.mxu0 0.0
      %1134 = vmatmul.mubr.f32.gmra.mxu0 %v1032
      %v1135 = vpop.f32.mrf.mxu0
      %v1136 = vadd.f32 0.0, %v1135
      %v1137 = vpop.f32.mrf.mxu0
      %1138 = vdwg.mxu0
      %v1139 = vlaneseq
      %v1140 = vshrl.u32 %v1139, 7
      %v1141 = vsub.s32 1, %v1140
      %v1142 = vrot.slane %v1009, %v1141
      %v1143 = vmul.f32 %v1101, %v1142
      %v1144 = vmul.f32 %v1106, %v1142
      %v1145 = vmul.f32 %v1111, %v1142
      %v1146 = vmul.f32 %v1116, %v1142
      %v1147 = vmul.f32 %v1121, %v1142
      %v1148 = vmul.f32 %v1126, %v1142
      %v1149 = vmul.f32 %v1131, %v1142
      %v1150 = vmul.f32 %v1136, %v1142
      %v1151 = vsel %vm249, %v1143, 0.0
      %1152 = vadd.xlane.f32.xlu0 %v1151
      %v1153 = vpop.xlane.xlu0 %1152
      %v1154 = vsel %vm249, %v1144, 0.0
      %1155 = vadd.xlane.f32.xlu0 %v1154
      %v1156 = vpop.xlane.xlu0 %1155
      %v1157 = vsel %vm249, %v1145, 0.0
      %1158 = vadd.xlane.f32.xlu0 %v1157
      %v1159 = vpop.xlane.xlu0 %1158
      %v1160 = vsel %vm249, %v1146, 0.0
      %1161 = vadd.xlane.f32.xlu0 %v1160
      %v1162 = vpop.xlane.xlu0 %1161
      %v1163 = vsel %vm249, %v1147, 0.0
      %1164 = vadd.xlane.f32.xlu0 %v1163
      %v1165 = vpop.xlane.xlu0 %1164
      %v1166 = vsel %vm249, %v1148, 0.0
      %1167 = vadd.xlane.f32.xlu0 %v1166
      %v1168 = vpop.xlane.xlu0 %1167
      %v1169 = vsel %vm249, %v1149, 0.0
      %1170 = vadd.xlane.f32.xlu0 %v1169
      %v1171 = vpop.xlane.xlu0 %1170
      %v1172 = vsel %vm249, %v1150, 0.0
      %1173 = vadd.xlane.f32.xlu0 %v1172
      %v1174 = vpop.xlane.xlu0 %1173
      %v1176 = vsel %vm249, %v1009, 0
      %v1179 = vsel %vm249, %v1101, 0
      %v1182 = vsel %vm249, %v1106, 0
      %v1185 = vsel %vm249, %v1111, 0
      %v1188 = vsel %vm249, %v1116, 0
      %v1191 = vsel %vm249, %v1121, 0
      %v1194 = vsel %vm249, %v1126, 0
      %v1197 = vsel %vm249, %v1131, 0
      %v1200 = vsel %vm249, %v1136, 0
      %1202 = vmatprep.subr.mxu0 0.0
      %1203 = vmatpush1.xpose.msra.mxu0 0.0
      %1204 = vmatprep.subr.mxu0 0.0
      %1205 = vmatpush1.xpose.msra.mxu0 0.0
      %1206 = vmatprep.subr.mxu0 0.0
      %1207 = vmatpush1.xpose.msra.mxu0 0.0
      %1208 = vmatprep.subr.mxu0 0.0
      %1209 = vmatpush1.xpose.msra.mxu0 0.0
      %1210 = vmatprep.subr.mxu0 0.0
      %1211 = vmatpush1.xpose.msra.mxu0 0.0
      %1212 = vmatprep.subr.mxu0 0.0
      %1213 = vmatpush1.xpose.msra.mxu0 0.0
      %1214 = vmatprep.subr.mxu0 0.0
      %1215 = vmatpush1.xpose.msra.mxu0 0.0
      %1216 = vmatprep.subr.mxu0 0.0
      %1217 = vmatpush1.xpose.msra.mxu0 0.0
      %1218 = vmatprep.subr.mxu0 0.0
      %1219 = vmatpush1.xpose.msra.mxu0 %v1200
      %1220 = vmatprep.subr.mxu0 0.0
      %1221 = vmatpush1.xpose.msra.mxu0 %v1197
      %1222 = vmatprep.subr.mxu0 0.0
      %1223 = vmatpush1.xpose.msra.mxu0 %v1194
      %1224 = vmatprep.subr.mxu0 0.0
      %1225 = vmatpush1.xpose.msra.mxu0 %v1191
      %1226 = vmatprep.subr.mxu0 0.0
      %1227 = vmatpush1.xpose.msra.mxu0 %v1188
      %1228 = vmatprep.subr.mxu0 0.0
      %1229 = vmatpush1.xpose.msra.mxu0 %v1185
      %1230 = vmatprep.subr.mxu0 0.0
      %1231 = vmatpush1.xpose.msra.mxu0 %v1182
      %1232 = vmatprep.subr.mxu0 0.0
      %1233 = vmatpush1.xpose.msra.mxu0 %v1179
      %1234 = vmatprep.subr.mxu0 0.0
      %1235 = vmatpush2.xpose.msra.mxu0 0.0
      %1236 = vmatprep.subr.mxu0 0.0
      %1237 = vmatpush2.xpose.msra.mxu0 0.0
      %1238 = vmatprep.subr.mxu0 0.0
      %1239 = vmatpush2.xpose.msra.mxu0 0.0
      %1240 = vmatprep.subr.mxu0 0.0
      %1241 = vmatpush2.xpose.msra.mxu0 0.0
      %1242 = vmatprep.subr.mxu0 0.0
      %1243 = vmatpush2.xpose.msra.mxu0 0.0
      %1244 = vmatprep.subr.mxu0 0.0
      %1245 = vmatpush2.xpose.msra.mxu0 0.0
      %1246 = vmatprep.subr.mxu0 0.0
      %1247 = vmatpush2.xpose.msra.mxu0 0.0
      %1248 = vmatprep.subr.mxu0 0.0
      %1249 = vmatpush2.xpose.msra.mxu0 0.0
      %1250 = vmatprep.subr.mxu0 0.0
      %1251 = vmatpush2.xpose.msra.mxu0 0.0
      %1252 = vmatprep.subr.mxu0 0.0
      %1253 = vmatpush2.xpose.msra.mxu0 0.0
      %1254 = vmatprep.subr.mxu0 0.0
      %1255 = vmatpush2.xpose.msra.mxu0 0.0
      %1256 = vmatprep.subr.mxu0 0.0
      %1257 = vmatpush2.xpose.msra.mxu0 0.0
      %1258 = vmatprep.subr.mxu0 0.0
      %1259 = vmatpush2.xpose.msra.mxu0 0.0
      %1260 = vmatprep.subr.mxu0 0.0
      %1261 = vmatpush2.xpose.msra.mxu0 0.0
      %1262 = vmatprep.subr.mxu0 0.0
      %1263 = vmatpush2.xpose.msra.mxu0 0.0
      %1264 = vmatprep.subr.mxu0 0.0
      %1265 = vmatpush2.xpose.msra.mxu0 0.0
      %1266 = vmatprep.mubr.f32.mxu0 0.0
      %1267 = vmatmul.mubr.f32.gmra.mxu0 %v1176
      %v1268 = vpop.f32.mrf.mxu0
      %v1269 = vadd.f32 0.0, %v1268
      %v1270 = vpop.f32.mrf.mxu0
      %1271 = vdwg.mxu0
      %v1272 = vlaneseq
      %v1273 = vshrl.u32 %v1272, 7
      %v1274 = vsub.s32 0, %v1273
      %v1275 = vrot.slane %v1269, %v1274
      %v1276 = vadd.f32 %v1153, %v1275
      %v1277 = vadd.f32 %v1156, %v1275
      %v1278 = vadd.f32 %v1159, %v1275
      %v1279 = vadd.f32 %v1162, %v1275
      %v1280 = vadd.f32 %v1165, %v1275
      %v1281 = vadd.f32 %v1168, %v1275
      %v1282 = vadd.f32 %v1171, %v1275
      %v1283 = vadd.f32 %v1174, %v1275
      %vm1284 = vcmp.gt.f32.partialorder %v1276, 0.0
      %vm1285 = vcmp.gt.f32.partialorder %v1277, 0.0
      %vm1286 = vcmp.gt.f32.partialorder %v1278, 0.0
      %vm1287 = vcmp.gt.f32.partialorder %v1279, 0.0
      %vm1288 = vcmp.gt.f32.partialorder %v1280, 0.0
      %vm1289 = vcmp.gt.f32.partialorder %v1281, 0.0
      %vm1290 = vcmp.gt.f32.partialorder %v1282, 0.0
      %vm1291 = vcmp.gt.f32.partialorder %v1283, 0.0
      %v1292 = vmul.f32 %v1276, 0.2
      %v1293 = vmul.f32 %v1277, 0.2
      %v1294 = vmul.f32 %v1278, 0.2
      %v1295 = vmul.f32 %v1279, 0.2
      %v1296 = vmul.f32 %v1280, 0.2
      %v1297 = vmul.f32 %v1281, 0.2
      %v1298 = vmul.f32 %v1282, 0.2
      %v1299 = vmul.f32 %v1283, 0.2
      %v1300 = vsel %vm1284, %v1276, %v1292
      %v1301 = vsel %vm1285, %v1277, %v1293
      %v1302 = vsel %vm1286, %v1278, %v1294
      %v1303 = vsel %vm1287, %v1279, %v1295
      %v1304 = vsel %vm1288, %v1280, %v1296
      %v1305 = vsel %vm1289, %v1281, %v1297
      %v1306 = vsel %vm1290, %v1282, %v1298
      %v1307 = vsel %vm1291, %v1283, %v1299
      %v1308 = vsel %vm548, %v1300, -1e+30
      %v1309 = vsel %vm549, %v1301, -1e+30
      %v1310 = vsel %vm550, %v1302, -1e+30
      %v1311 = vsel %vm551, %v1303, -1e+30
      %v1312 = vsel %vm552, %v1304, -1e+30
      %v1313 = vsel %vm553, %v1305, -1e+30
      %v1314 = vsel %vm554, %v1306, -1e+30
      %v1315 = vsel %vm555, %v1307, -1e+30
      %v1316 = vsel %vm564, %v1308, -inf
      %1317 = vmax.xlane.f32.xlu0 %v1316
      %v1318 = vpop.xlane.xlu0 %1317
      %v1319 = vsel %vm564, %v1309, -inf
      %1320 = vmax.xlane.f32.xlu0 %v1319
      %v1321 = vpop.xlane.xlu0 %1320
      %v1322 = vsel %vm564, %v1310, -inf
      %1323 = vmax.xlane.f32.xlu0 %v1322
      %v1324 = vpop.xlane.xlu0 %1323
      %v1325 = vsel %vm564, %v1311, -inf
      %1326 = vmax.xlane.f32.xlu0 %v1325
      %v1327 = vpop.xlane.xlu0 %1326
      %v1328 = vsel %vm564, %v1312, -inf
      %1329 = vmax.xlane.f32.xlu0 %v1328
      %v1330 = vpop.xlane.xlu0 %1329
      %v1331 = vsel %vm564, %v1313, -inf
      %1332 = vmax.xlane.f32.xlu0 %v1331
      %v1333 = vpop.xlane.xlu0 %1332
      %v1334 = vsel %vm564, %v1314, -inf
      %1335 = vmax.xlane.f32.xlu0 %v1334
      %v1336 = vpop.xlane.xlu0 %1335
      %v1337 = vsel %vm564, %v1315, -inf
      %1338 = vmax.xlane.f32.xlu0 %v1337
      %v1339 = vpop.xlane.xlu0 %1338
      %v1340 = vsub.f32 %v1308, %v1318
      %v1341 = vsub.f32 %v1309, %v1321
      %v1342 = vsub.f32 %v1310, %v1324
      %v1343 = vsub.f32 %v1311, %v1327
      %v1344 = vsub.f32 %v1312, %v1330
      %v1345 = vsub.f32 %v1313, %v1333
      %v1346 = vsub.f32 %v1314, %v1336
      %v1347 = vsub.f32 %v1315, %v1339
      %v1348 = vmul.f32 %v1340, 1.442695
      %v1349 = vpow.pop %v1348
      %v1350 = vmul.f32 %v1341, 1.442695
      %v1351 = vpow.pop %v1350
      %v1352 = vmul.f32 %v1342, 1.442695
      %v1353 = vpow.pop %v1352
      %v1354 = vmul.f32 %v1343, 1.442695
      %v1355 = vpow.pop %v1354
      %v1356 = vmul.f32 %v1344, 1.442695
      %v1357 = vpow.pop %v1356
      %v1358 = vmul.f32 %v1345, 1.442695
      %v1359 = vpow.pop %v1358
      %v1360 = vmul.f32 %v1346, 1.442695
      %v1361 = vpow.pop %v1360
      %v1362 = vmul.f32 %v1347, 1.442695
      %v1363 = vpow.pop %v1362
      %v1364 = vmul.f32 %v1349, %v236
      %v1365 = vmul.f32 %v1351, %v237
      %v1366 = vmul.f32 %v1353, %v238
      %v1367 = vmul.f32 %v1355, %v239
      %v1368 = vmul.f32 %v1357, %v240
      %v1369 = vmul.f32 %v1359, %v241
      %v1370 = vmul.f32 %v1361, %v242
      %v1371 = vmul.f32 %v1363, %v243
      %v1372 = vsel %vm564, %v1364, 0.0
      %1373 = vadd.xlane.f32.xlu0 %v1372
      %v1374 = vpop.xlane.xlu0 %1373
      %v1375 = vsel %vm564, %v1365, 0.0
      %1376 = vadd.xlane.f32.xlu0 %v1375
      %v1377 = vpop.xlane.xlu0 %1376
      %v1378 = vsel %vm564, %v1366, 0.0
      %1379 = vadd.xlane.f32.xlu0 %v1378
      %v1380 = vpop.xlane.xlu0 %1379
      %v1381 = vsel %vm564, %v1367, 0.0
      %1382 = vadd.xlane.f32.xlu0 %v1381
      %v1383 = vpop.xlane.xlu0 %1382
      %v1384 = vsel %vm564, %v1368, 0.0
      %1385 = vadd.xlane.f32.xlu0 %v1384
      %v1386 = vpop.xlane.xlu0 %1385
      %v1387 = vsel %vm564, %v1369, 0.0
      %1388 = vadd.xlane.f32.xlu0 %v1387
      %v1389 = vpop.xlane.xlu0 %1388
      %v1390 = vsel %vm564, %v1370, 0.0
      %1391 = vadd.xlane.f32.xlu0 %v1390
      %v1392 = vpop.xlane.xlu0 %1391
      %v1393 = vsel %vm564, %v1371, 0.0
      %1394 = vadd.xlane.f32.xlu0 %v1393
      %v1395 = vpop.xlane.xlu0 %1394
      %vm1396 = vcmp.gt.f32.partialorder %v1374, 0.0
      %vm1397 = vcmp.gt.f32.partialorder %v1377, 0.0
      %vm1398 = vcmp.gt.f32.partialorder %v1380, 0.0
      %vm1399 = vcmp.gt.f32.partialorder %v1383, 0.0
      %vm1400 = vcmp.gt.f32.partialorder %v1386, 0.0
      %vm1401 = vcmp.gt.f32.partialorder %v1389, 0.0
      %vm1402 = vcmp.gt.f32.partialorder %v1392, 0.0
      %vm1403 = vcmp.gt.f32.partialorder %v1395, 0.0
      %v1404 = vsel %vm1396, %v1374, 1.0
      %v1405 = vsel %vm1397, %v1377, 1.0
      %v1406 = vsel %vm1398, %v1380, 1.0
      %v1407 = vsel %vm1399, %v1383, 1.0
      %v1408 = vsel %vm1400, %v1386, 1.0
      %v1409 = vsel %vm1401, %v1389, 1.0
      %v1410 = vsel %vm1402, %v1392, 1.0
      %v1411 = vsel %vm1403, %v1395, 1.0
      %v1412 = vrcp.pop %v1404
      %v1413 = vrcp.pop %v1405
      %v1414 = vrcp.pop %v1406
      %v1415 = vrcp.pop %v1407
      %v1416 = vrcp.pop %v1408
      %v1417 = vrcp.pop %v1409
      %v1418 = vrcp.pop %v1410
      %v1419 = vrcp.pop %v1411
      %v1420 = vmul.f32 %v1364, %v1412
      %v1421 = vmul.f32 %v1365, %v1413
      %v1422 = vmul.f32 %v1366, %v1414
      %v1423 = vmul.f32 %v1367, %v1415
      %v1424 = vmul.f32 %v1368, %v1416
      %v1425 = vmul.f32 %v1369, %v1417
      %v1426 = vmul.f32 %v1370, %v1418
      %v1427 = vmul.f32 %v1371, %v1419
      %v1428 = vlaneseq
      %v1429 = vshrl.u32 %v1428, 7
      %v1430 = vsub.s32 2, %v1429
      %v1431 = vrot.slane %v1009, %v1430
      %v1433 = vsel %vm564, %v1420, 0
      %v1436 = vsel %vm564, %v1421, 0
      %v1439 = vsel %vm564, %v1422, 0
      %v1442 = vsel %vm564, %v1423, 0
      %v1445 = vsel %vm564, %v1424, 0
      %v1448 = vsel %vm564, %v1425, 0
      %v1451 = vsel %vm564, %v1426, 0
      %v1454 = vsel %vm564, %v1427, 0
      %1456 = vmatprep.subr.mxu0 0.0
      %1457 = vmatpush1.msra.mxu0 0.0
      %1458 = vmatprep.subr.mxu0 0.0
      %1459 = vmatpush1.msra.mxu0 0.0
      %1460 = vmatprep.subr.mxu0 0.0
      %1461 = vmatpush1.msra.mxu0 0.0
      %1462 = vmatprep.subr.mxu0 0.0
      %1463 = vmatpush1.msra.mxu0 0.0
      %1464 = vmatprep.subr.mxu0 0.0
      %1465 = vmatpush1.msra.mxu0 0.0
      %1466 = vmatprep.subr.mxu0 0.0
      %1467 = vmatpush1.msra.mxu0 0.0
      %1468 = vmatprep.subr.mxu0 0.0
      %1469 = vmatpush1.msra.mxu0 0.0
      %1470 = vmatprep.subr.mxu0 0.0
      %1471 = vmatpush1.msra.mxu0 0.0
      %1472 = vmatprep.subr.mxu0 0.0
      %1473 = vmatpush1.msra.mxu0 %v1136
      %1474 = vmatprep.subr.mxu0 0.0
      %1475 = vmatpush1.msra.mxu0 %v1131
      %1476 = vmatprep.subr.mxu0 0.0
      %1477 = vmatpush1.msra.mxu0 %v1126
      %1478 = vmatprep.subr.mxu0 0.0
      %1479 = vmatpush1.msra.mxu0 %v1121
      %1480 = vmatprep.subr.mxu0 0.0
      %1481 = vmatpush1.msra.mxu0 %v1116
      %1482 = vmatprep.subr.mxu0 0.0
      %1483 = vmatpush1.msra.mxu0 %v1111
      %1484 = vmatprep.subr.mxu0 0.0
      %1485 = vmatpush1.msra.mxu0 %v1106
      %1486 = vmatprep.subr.mxu0 0.0
      %1487 = vmatpush1.msra.mxu0 %v1101
      %1488 = vmatprep.subr.mxu0 0.0
      %1489 = vmatpush2.msra.mxu0 0.0
      %1490 = vmatprep.subr.mxu0 0.0
      %1491 = vmatpush2.msra.mxu0 0.0
      %1492 = vmatprep.subr.mxu0 0.0
      %1493 = vmatpush2.msra.mxu0 0.0
      %1494 = vmatprep.subr.mxu0 0.0
      %1495 = vmatpush2.msra.mxu0 0.0
      %1496 = vmatprep.subr.mxu0 0.0
      %1497 = vmatpush2.msra.mxu0 0.0
      %1498 = vmatprep.subr.mxu0 0.0
      %1499 = vmatpush2.msra.mxu0 0.0
      %1500 = vmatprep.subr.mxu0 0.0
      %1501 = vmatpush2.msra.mxu0 0.0
      %1502 = vmatprep.subr.mxu0 0.0
      %1503 = vmatpush2.msra.mxu0 0.0
      %1504 = vmatprep.subr.mxu0 0.0
      %1505 = vmatpush2.msra.mxu0 0.0
      %1506 = vmatprep.subr.mxu0 0.0
      %1507 = vmatpush2.msra.mxu0 0.0
      %1508 = vmatprep.subr.mxu0 0.0
      %1509 = vmatpush2.msra.mxu0 0.0
      %1510 = vmatprep.subr.mxu0 0.0
      %1511 = vmatpush2.msra.mxu0 0.0
      %1512 = vmatprep.subr.mxu0 0.0
      %1513 = vmatpush2.msra.mxu0 0.0
      %1514 = vmatprep.subr.mxu0 0.0
      %1515 = vmatpush2.msra.mxu0 0.0
      %1516 = vmatprep.subr.mxu0 0.0
      %1517 = vmatpush2.msra.mxu0 0.0
      %1518 = vmatprep.subr.mxu0 0.0
      %1519 = vmatpush2.msra.mxu0 0.0
      %1520 = vmatprep.mubr.f32.mxu0 0.0
      %1521 = vmatmul.mubr.f32.gmra.mxu0 %v1433
      %v1522 = vpop.f32.mrf.mxu0
      %v1523 = vadd.f32 %v1431, %v1522
      %v1524 = vpop.f32.mrf.mxu0
      %1525 = vmatprep.mubr.f32.mxu0 0.0
      %1526 = vmatmul.mubr.f32.gmra.mxu0 %v1436
      %v1527 = vpop.f32.mrf.mxu0
      %v1528 = vadd.f32 %v1431, %v1527
      %v1529 = vpop.f32.mrf.mxu0
      %1530 = vmatprep.mubr.f32.mxu0 0.0
      %1531 = vmatmul.mubr.f32.gmra.mxu0 %v1439
      %v1532 = vpop.f32.mrf.mxu0
      %v1533 = vadd.f32 %v1431, %v1532
      %v1534 = vpop.f32.mrf.mxu0
      %1535 = vmatprep.mubr.f32.mxu0 0.0
      %1536 = vmatmul.mubr.f32.gmra.mxu0 %v1442
      %v1537 = vpop.f32.mrf.mxu0
      %v1538 = vadd.f32 %v1431, %v1537
      %v1539 = vpop.f32.mrf.mxu0
      %1540 = vmatprep.mubr.f32.mxu0 0.0
      %1541 = vmatmul.mubr.f32.gmra.mxu0 %v1445
      %v1542 = vpop.f32.mrf.mxu0
      %v1543 = vadd.f32 %v1431, %v1542
      %v1544 = vpop.f32.mrf.mxu0
      %1545 = vmatprep.mubr.f32.mxu0 0.0
      %1546 = vmatmul.mubr.f32.gmra.mxu0 %v1448
      %v1547 = vpop.f32.mrf.mxu0
      %v1548 = vadd.f32 %v1431, %v1547
      %v1549 = vpop.f32.mrf.mxu0
      %1550 = vmatprep.mubr.f32.mxu0 0.0
      %1551 = vmatmul.mubr.f32.gmra.mxu0 %v1451
      %v1552 = vpop.f32.mrf.mxu0
      %v1553 = vadd.f32 %v1431, %v1552
      %v1554 = vpop.f32.mrf.mxu0
      %1555 = vmatprep.mubr.f32.mxu0 0.0
      %1556 = vmatmul.mubr.f32.gmra.mxu0 %v1454
      %v1557 = vpop.f32.mrf.mxu0
      %v1558 = vadd.f32 %v1431, %v1557
      %v1559 = vpop.f32.mrf.mxu0
      %1560 = vdwg.mxu0
      %v1561 = vsel %vm249, %v1523, 0.0
      %1562 = vadd.xlane.f32.xlu0 %v1561
      %v1563 = vpop.xlane.xlu0 %1562
      %v1564 = vsel %vm249, %v1528, 0.0
      %1565 = vadd.xlane.f32.xlu0 %v1564
      %v1566 = vpop.xlane.xlu0 %1565
      %v1567 = vsel %vm249, %v1533, 0.0
      %1568 = vadd.xlane.f32.xlu0 %v1567
      %v1569 = vpop.xlane.xlu0 %1568
      %v1570 = vsel %vm249, %v1538, 0.0
      %1571 = vadd.xlane.f32.xlu0 %v1570
      %v1572 = vpop.xlane.xlu0 %1571
      %v1573 = vsel %vm249, %v1543, 0.0
      %1574 = vadd.xlane.f32.xlu0 %v1573
      %v1575 = vpop.xlane.xlu0 %1574
      %v1576 = vsel %vm249, %v1548, 0.0
      %1577 = vadd.xlane.f32.xlu0 %v1576
      %v1578 = vpop.xlane.xlu0 %1577
      %v1579 = vsel %vm249, %v1553, 0.0
      %1580 = vadd.xlane.f32.xlu0 %v1579
      %v1581 = vpop.xlane.xlu0 %1580
      %v1582 = vsel %vm249, %v1558, 0.0
      %1583 = vadd.xlane.f32.xlu0 %v1582
      %v1584 = vpop.xlane.xlu0 %1583
      %v1585 = vmul.f32 %v1563, %v834
      %v1586 = vmul.f32 %v1566, %v834
      %v1587 = vmul.f32 %v1569, %v834
      %v1588 = vmul.f32 %v1572, %v834
      %v1589 = vmul.f32 %v1575, %v834
      %v1590 = vmul.f32 %v1578, %v834
      %v1591 = vmul.f32 %v1581, %v834
      %v1592 = vmul.f32 %v1584, %v834
      %v1593 = vmul.f32 %v1523, %v1523
      %v1594 = vmul.f32 %v1528, %v1528
      %v1595 = vmul.f32 %v1533, %v1533
      %v1596 = vmul.f32 %v1538, %v1538
      %v1597 = vmul.f32 %v1543, %v1543
      %v1598 = vmul.f32 %v1548, %v1548
      %v1599 = vmul.f32 %v1553, %v1553
      %v1600 = vmul.f32 %v1558, %v1558
      %v1601 = vsel %vm249, %v1593, 0.0
      %1602 = vadd.xlane.f32.xlu0 %v1601
      %v1603 = vpop.xlane.xlu0 %1602
      %v1604 = vsel %vm249, %v1594, 0.0
      %1605 = vadd.xlane.f32.xlu0 %v1604
      %v1606 = vpop.xlane.xlu0 %1605
      %v1607 = vsel %vm249, %v1595, 0.0
      %1608 = vadd.xlane.f32.xlu0 %v1607
      %v1609 = vpop.xlane.xlu0 %1608
      %v1610 = vsel %vm249, %v1596, 0.0
      %1611 = vadd.xlane.f32.xlu0 %v1610
      %v1612 = vpop.xlane.xlu0 %1611
      %v1613 = vsel %vm249, %v1597, 0.0
      %1614 = vadd.xlane.f32.xlu0 %v1613
      %v1615 = vpop.xlane.xlu0 %1614
      %v1616 = vsel %vm249, %v1598, 0.0
      %1617 = vadd.xlane.f32.xlu0 %v1616
      %v1618 = vpop.xlane.xlu0 %1617
      %v1619 = vsel %vm249, %v1599, 0.0
      %1620 = vadd.xlane.f32.xlu0 %v1619
      %v1621 = vpop.xlane.xlu0 %1620
      %v1622 = vsel %vm249, %v1600, 0.0
      %1623 = vadd.xlane.f32.xlu0 %v1622
      %v1624 = vpop.xlane.xlu0 %1623
      %v1625 = vmul.f32 %v1603, %v834
      %v1626 = vmul.f32 %v1606, %v834
      %v1627 = vmul.f32 %v1609, %v834
      %v1628 = vmul.f32 %v1612, %v834
      %v1629 = vmul.f32 %v1615, %v834
      %v1630 = vmul.f32 %v1618, %v834
      %v1631 = vmul.f32 %v1621, %v834
      %v1632 = vmul.f32 %v1624, %v834
      %v1633 = vmul.f32 %v1585, %v1585
      %v1634 = vmul.f32 %v1586, %v1586
      %v1635 = vmul.f32 %v1587, %v1587
      %v1636 = vmul.f32 %v1588, %v1588
      %v1637 = vmul.f32 %v1589, %v1589
      %v1638 = vmul.f32 %v1590, %v1590
      %v1639 = vmul.f32 %v1591, %v1591
      %v1640 = vmul.f32 %v1592, %v1592
      %v1641 = vsub.f32 %v1625, %v1633
      %v1642 = vsub.f32 %v1626, %v1634
      %v1643 = vsub.f32 %v1627, %v1635
      %v1644 = vsub.f32 %v1628, %v1636
      %v1645 = vsub.f32 %v1629, %v1637
      %v1646 = vsub.f32 %v1630, %v1638
      %v1647 = vsub.f32 %v1631, %v1639
      %v1648 = vsub.f32 %v1632, %v1640
      %v1649 = vmax.f32 %v1641, 0.0
      %v1650 = vmax.f32 %v1642, 0.0
      %v1651 = vmax.f32 %v1643, 0.0
      %v1652 = vmax.f32 %v1644, 0.0
      %v1653 = vmax.f32 %v1645, 0.0
      %v1654 = vmax.f32 %v1646, 0.0
      %v1655 = vmax.f32 %v1647, 0.0
      %v1656 = vmax.f32 %v1648, 0.0
      %v1657 = vsub.f32 %v1523, %v1585
      %v1658 = vsub.f32 %v1528, %v1586
      %v1659 = vsub.f32 %v1533, %v1587
      %v1660 = vsub.f32 %v1538, %v1588
      %v1661 = vsub.f32 %v1543, %v1589
      %v1662 = vsub.f32 %v1548, %v1590
      %v1663 = vsub.f32 %v1553, %v1591
      %v1664 = vsub.f32 %v1558, %v1592
      %v1665 = vadd.f32 %v1649, 1e-05
      %v1666 = vadd.f32 %v1650, 1e-05
      %v1667 = vadd.f32 %v1651, 1e-05
      %v1668 = vadd.f32 %v1652, 1e-05
      %v1669 = vadd.f32 %v1653, 1e-05
      %v1670 = vadd.f32 %v1654, 1e-05
      %v1671 = vadd.f32 %v1655, 1e-05
      %v1672 = vadd.f32 %v1656, 1e-05
      %v1673 = vrsqrt.pop %v1665
      %v1674 = vrsqrt.pop %v1666
      %v1675 = vrsqrt.pop %v1667
      %v1676 = vrsqrt.pop %v1668
      %v1677 = vrsqrt.pop %v1669
      %v1678 = vrsqrt.pop %v1670
      %v1679 = vrsqrt.pop %v1671
      %v1680 = vrsqrt.pop %v1672
      %v1681 = vmul.f32 %v1657, %v1673
      %v1682 = vmul.f32 %v1658, %v1674
      %v1683 = vmul.f32 %v1659, %v1675
      %v1684 = vmul.f32 %v1660, %v1676
      %v1685 = vmul.f32 %v1661, %v1677
      %v1686 = vmul.f32 %v1662, %v1678
      %v1687 = vmul.f32 %v1663, %v1679
      %v1688 = vmul.f32 %v1664, %v1680
      %v1689 = vlaneseq
      %v1690 = vshrl.u32 %v1689, 7
      %v1691 = vsub.s32 3, %v1690
      %v1692 = vrot.slane %v1009, %v1691
      %v1693 = vmul.f32 %v1681, %v1692
      %v1694 = vmul.f32 %v1682, %v1692
      %v1695 = vmul.f32 %v1683, %v1692
      %v1696 = vmul.f32 %v1684, %v1692
      %v1697 = vmul.f32 %v1685, %v1692
      %v1698 = vmul.f32 %v1686, %v1692
      %v1699 = vmul.f32 %v1687, %v1692
      %v1700 = vmul.f32 %v1688, %v1692
      %v1701 = vlaneseq
      %v1702 = vshrl.u32 %v1701, 7
      %v1703 = vsub.s32 4, %v1702
      %v1704 = vrot.slane %v1009, %v1703
      %v1705 = vadd.f32 %v1693, %v1704
      %v1706 = vadd.f32 %v1694, %v1704
      %v1707 = vadd.f32 %v1695, %v1704
      %v1708 = vadd.f32 %v1696, %v1704
      %v1709 = vadd.f32 %v1697, %v1704
      %v1710 = vadd.f32 %v1698, %v1704
      %v1711 = vadd.f32 %v1699, %v1704
      %v1712 = vadd.f32 %v1700, %v1704
      %vm1713 = vcmp.gt.f32.partialorder %v1705, 0.0
      %vm1714 = vcmp.gt.f32.partialorder %v1706, 0.0
      %vm1715 = vcmp.gt.f32.partialorder %v1707, 0.0
      %vm1716 = vcmp.gt.f32.partialorder %v1708, 0.0
      %vm1717 = vcmp.gt.f32.partialorder %v1709, 0.0
      %vm1718 = vcmp.gt.f32.partialorder %v1710, 0.0
      %vm1719 = vcmp.gt.f32.partialorder %v1711, 0.0
      %vm1720 = vcmp.gt.f32.partialorder %v1712, 0.0
      %v1721 = vmul.f32 %v1705, 0.01
      %v1722 = vmul.f32 %v1706, 0.01
      %v1723 = vmul.f32 %v1707, 0.01
      %v1724 = vmul.f32 %v1708, 0.01
      %v1725 = vmul.f32 %v1709, 0.01
      %v1726 = vmul.f32 %v1710, 0.01
      %v1727 = vmul.f32 %v1711, 0.01
      %v1728 = vmul.f32 %v1712, 0.01
      %v1729 = vsel %vm1713, %v1705, %v1721
      %v1730 = vsel %vm1714, %v1706, %v1722
      %v1731 = vsel %vm1715, %v1707, %v1723
      %v1732 = vsel %vm1716, %v1708, %v1724
      %v1733 = vsel %vm1717, %v1709, %v1725
      %v1734 = vsel %vm1718, %v1710, %v1726
      %v1735 = vsel %vm1719, %v1711, %v1727
      %v1736 = vsel %vm1720, %v1712, %v1728
      %v1737 = vmul.f32 %v1729, 0.5
      %v1738 = vmul.f32 %v1730, 0.5
      %v1739 = vmul.f32 %v1731, 0.5
      %v1740 = vmul.f32 %v1732, 0.5
      %v1741 = vmul.f32 %v1733, 0.5
      %v1742 = vmul.f32 %v1734, 0.5
      %v1743 = vmul.f32 %v1735, 0.5
      %v1744 = vmul.f32 %v1736, 0.5
      %v1745 = vadd.f32 %v995, %v1737
      %v1746 = vadd.f32 %v996, %v1738
      %v1747 = vadd.f32 %v997, %v1739
      %v1748 = vadd.f32 %v998, %v1740
      %v1749 = vadd.f32 %v999, %v1741
      %v1750 = vadd.f32 %v1000, %v1742
      %v1751 = vadd.f32 %v1001, %v1743
      %v1752 = vadd.f32 %v1002, %v1744
      %s1753 = scalar_lea.vmem %s2, 64
      %v1754 = vld [vmem:[%s1753] sm:$0xff]
      %v1755 = vld [vmem:[%s1753 + $0x8] sm:$0xff]
      %v1756 = vld [vmem:[%s1753 + $0x10] sm:$0xff]
      %v1757 = vld [vmem:[%s1753 + $0x18] sm:$0xff]
      %s1758 = scalar_lea.vmem %s3, 16
      %v1759 = vld [vmem:[%s1758] sm:$0xff]
      %v1761 = vsel %vm249, %v1729, 0
      %v1764 = vsel %vm249, %v1730, 0
      %v1767 = vsel %vm249, %v1731, 0
      %v1770 = vsel %vm249, %v1732, 0
      %v1773 = vsel %vm249, %v1733, 0
      %v1776 = vsel %vm249, %v1734, 0
      %v1779 = vsel %vm249, %v1735, 0
      %v1782 = vsel %vm249, %v1736, 0
      %1784 = vmatprep.subr.mxu0 0.0
      %1785 = vmatpush1.msra.mxu0 0.0
      %1786 = vmatprep.subr.mxu0 0.0
      %1787 = vmatpush1.msra.mxu0 0.0
      %1788 = vmatprep.subr.mxu0 0.0
      %1789 = vmatpush1.msra.mxu0 0.0
      %1790 = vmatprep.subr.mxu0 0.0
      %1791 = vmatpush1.msra.mxu0 0.0
      %1792 = vmatprep.subr.mxu0 0.0
      %1793 = vmatpush1.msra.mxu0 0.0
      %1794 = vmatprep.subr.mxu0 0.0
      %1795 = vmatpush1.msra.mxu0 0.0
      %1796 = vmatprep.subr.mxu0 0.0
      %1797 = vmatpush1.msra.mxu0 0.0
      %1798 = vmatprep.subr.mxu0 0.0
      %1799 = vmatpush1.msra.mxu0 0.0
      %1800 = vmatprep.subr.mxu0 0.0
      %1801 = vmatpush1.msra.mxu0 0.0
      %1802 = vmatprep.subr.mxu0 0.0
      %1803 = vmatpush1.msra.mxu0 0.0
      %1804 = vmatprep.subr.mxu0 0.0
      %1805 = vmatpush1.msra.mxu0 0.0
      %1806 = vmatprep.subr.mxu0 0.0
      %1807 = vmatpush1.msra.mxu0 0.0
      %1808 = vmatprep.subr.mxu0 0.0
      %1809 = vmatpush1.msra.mxu0 %v1757
      %1810 = vmatprep.subr.mxu0 0.0
      %1811 = vmatpush1.msra.mxu0 %v1756
      %1812 = vmatprep.subr.mxu0 0.0
      %1813 = vmatpush1.msra.mxu0 %v1755
      %1814 = vmatprep.subr.mxu0 0.0
      %1815 = vmatpush1.msra.mxu0 %v1754
      %1816 = vmatprep.subr.mxu0 0.0
      %1817 = vmatpush2.msra.mxu0 0.0
      %1818 = vmatprep.subr.mxu0 0.0
      %1819 = vmatpush2.msra.mxu0 0.0
      %1820 = vmatprep.subr.mxu0 0.0
      %1821 = vmatpush2.msra.mxu0 0.0
      %1822 = vmatprep.subr.mxu0 0.0
      %1823 = vmatpush2.msra.mxu0 0.0
      %1824 = vmatprep.subr.mxu0 0.0
      %1825 = vmatpush2.msra.mxu0 0.0
      %1826 = vmatprep.subr.mxu0 0.0
      %1827 = vmatpush2.msra.mxu0 0.0
      %1828 = vmatprep.subr.mxu0 0.0
      %1829 = vmatpush2.msra.mxu0 0.0
      %1830 = vmatprep.subr.mxu0 0.0
      %1831 = vmatpush2.msra.mxu0 0.0
      %1832 = vmatprep.subr.mxu0 0.0
      %1833 = vmatpush2.msra.mxu0 0.0
      %1834 = vmatprep.subr.mxu0 0.0
      %1835 = vmatpush2.msra.mxu0 0.0
      %1836 = vmatprep.subr.mxu0 0.0
      %1837 = vmatpush2.msra.mxu0 0.0
      %1838 = vmatprep.subr.mxu0 0.0
      %1839 = vmatpush2.msra.mxu0 0.0
      %1840 = vmatprep.subr.mxu0 0.0
      %1841 = vmatpush2.msra.mxu0 0.0
      %1842 = vmatprep.subr.mxu0 0.0
      %1843 = vmatpush2.msra.mxu0 0.0
      %1844 = vmatprep.subr.mxu0 0.0
      %1845 = vmatpush2.msra.mxu0 0.0
      %1846 = vmatprep.subr.mxu0 0.0
      %1847 = vmatpush2.msra.mxu0 0.0
      %1848 = vmatprep.mubr.f32.mxu0 0.0
      %1849 = vmatmul.mubr.f32.gmra.mxu0 %v1761
      %v1850 = vpop.f32.mrf.mxu0
      %v1851 = vadd.f32 0.0, %v1850
      %v1852 = vpop.f32.mrf.mxu0
      %1853 = vmatprep.mubr.f32.mxu0 0.0
      %1854 = vmatmul.mubr.f32.gmra.mxu0 %v1764
      %v1855 = vpop.f32.mrf.mxu0
      %v1856 = vadd.f32 0.0, %v1855
      %v1857 = vpop.f32.mrf.mxu0
      %1858 = vmatprep.mubr.f32.mxu0 0.0
      %1859 = vmatmul.mubr.f32.gmra.mxu0 %v1767
      %v1860 = vpop.f32.mrf.mxu0
      %v1861 = vadd.f32 0.0, %v1860
      %v1862 = vpop.f32.mrf.mxu0
      %1863 = vmatprep.mubr.f32.mxu0 0.0
      %1864 = vmatmul.mubr.f32.gmra.mxu0 %v1770
      %v1865 = vpop.f32.mrf.mxu0
      %v1866 = vadd.f32 0.0, %v1865
      %v1867 = vpop.f32.mrf.mxu0
      %1868 = vmatprep.mubr.f32.mxu0 0.0
      %1869 = vmatmul.mubr.f32.gmra.mxu0 %v1773
      %v1870 = vpop.f32.mrf.mxu0
      %v1871 = vadd.f32 0.0, %v1870
      %v1872 = vpop.f32.mrf.mxu0
      %1873 = vmatprep.mubr.f32.mxu0 0.0
      %1874 = vmatmul.mubr.f32.gmra.mxu0 %v1776
      %v1875 = vpop.f32.mrf.mxu0
      %v1876 = vadd.f32 0.0, %v1875
      %v1877 = vpop.f32.mrf.mxu0
      %1878 = vmatprep.mubr.f32.mxu0 0.0
      %1879 = vmatmul.mubr.f32.gmra.mxu0 %v1779
      %v1880 = vpop.f32.mrf.mxu0
      %v1881 = vadd.f32 0.0, %v1880
      %v1882 = vpop.f32.mrf.mxu0
      %1883 = vmatprep.mubr.f32.mxu0 0.0
      %1884 = vmatmul.mubr.f32.gmra.mxu0 %v1782
      %v1885 = vpop.f32.mrf.mxu0
      %v1886 = vadd.f32 0.0, %v1885
      %v1887 = vpop.f32.mrf.mxu0
      %1888 = vdwg.mxu0
      %v1889 = vlaneseq
      %v1890 = vshrl.u32 %v1889, 7
      %v1891 = vsub.s32 1, %v1890
      %v1892 = vrot.slane %v1759, %v1891
      %v1893 = vmul.f32 %v1851, %v1892
      %v1894 = vmul.f32 %v1856, %v1892
      %v1895 = vmul.f32 %v1861, %v1892
      %v1896 = vmul.f32 %v1866, %v1892
      %v1897 = vmul.f32 %v1871, %v1892
      %v1898 = vmul.f32 %v1876, %v1892
      %v1899 = vmul.f32 %v1881, %v1892
      %v1900 = vmul.f32 %v1886, %v1892
      %v1901 = vsel %vm249, %v1893, 0.0
      %1902 = vadd.xlane.f32.xlu0 %v1901
      %v1903 = vpop.xlane.xlu0 %1902
      %v1904 = vsel %vm249, %v1894, 0.0
      %1905 = vadd.xlane.f32.xlu0 %v1904
      %v1906 = vpop.xlane.xlu0 %1905
      %v1907 = vsel %vm249, %v1895, 0.0
      %1908 = vadd.xlane.f32.xlu0 %v1907
      %v1909 = vpop.xlane.xlu0 %1908
      %v1910 = vsel %vm249, %v1896, 0.0
      %1911 = vadd.xlane.f32.xlu0 %v1910
      %v1912 = vpop.xlane.xlu0 %1911
      %v1913 = vsel %vm249, %v1897, 0.0
      %1914 = vadd.xlane.f32.xlu0 %v1913
      %v1915 = vpop.xlane.xlu0 %1914
      %v1916 = vsel %vm249, %v1898, 0.0
      %1917 = vadd.xlane.f32.xlu0 %v1916
      %v1918 = vpop.xlane.xlu0 %1917
      %v1919 = vsel %vm249, %v1899, 0.0
      %1920 = vadd.xlane.f32.xlu0 %v1919
      %v1921 = vpop.xlane.xlu0 %1920
      %v1922 = vsel %vm249, %v1900, 0.0
      %1923 = vadd.xlane.f32.xlu0 %v1922
      %v1924 = vpop.xlane.xlu0 %1923
      %v1926 = vsel %vm249, %v1759, 0
      %v1929 = vsel %vm249, %v1851, 0
      %v1932 = vsel %vm249, %v1856, 0
      %v1935 = vsel %vm249, %v1861, 0
      %v1938 = vsel %vm249, %v1866, 0
      %v1941 = vsel %vm249, %v1871, 0
      %v1944 = vsel %vm249, %v1876, 0
      %v1947 = vsel %vm249, %v1881, 0
      %v1950 = vsel %vm249, %v1886, 0
      %1952 = vmatprep.subr.mxu0 0.0
      %1953 = vmatpush1.xpose.msra.mxu0 0.0
      %1954 = vmatprep.subr.mxu0 0.0
      %1955 = vmatpush1.xpose.msra.mxu0 0.0
      %1956 = vmatprep.subr.mxu0 0.0
      %1957 = vmatpush1.xpose.msra.mxu0 0.0
      %1958 = vmatprep.subr.mxu0 0.0
      %1959 = vmatpush1.xpose.msra.mxu0 0.0
      %1960 = vmatprep.subr.mxu0 0.0
      %1961 = vmatpush1.xpose.msra.mxu0 0.0
      %1962 = vmatprep.subr.mxu0 0.0
      %1963 = vmatpush1.xpose.msra.mxu0 0.0
      %1964 = vmatprep.subr.mxu0 0.0
      %1965 = vmatpush1.xpose.msra.mxu0 0.0
      %1966 = vmatprep.subr.mxu0 0.0
      %1967 = vmatpush1.xpose.msra.mxu0 0.0
      %1968 = vmatprep.subr.mxu0 0.0
      %1969 = vmatpush1.xpose.msra.mxu0 %v1950
      %1970 = vmatprep.subr.mxu0 0.0
      %1971 = vmatpush1.xpose.msra.mxu0 %v1947
      %1972 = vmatprep.subr.mxu0 0.0
      %1973 = vmatpush1.xpose.msra.mxu0 %v1944
      %1974 = vmatprep.subr.mxu0 0.0
      %1975 = vmatpush1.xpose.msra.mxu0 %v1941
      %1976 = vmatprep.subr.mxu0 0.0
      %1977 = vmatpush1.xpose.msra.mxu0 %v1938
      %1978 = vmatprep.subr.mxu0 0.0
      %1979 = vmatpush1.xpose.msra.mxu0 %v1935
      %1980 = vmatprep.subr.mxu0 0.0
      %1981 = vmatpush1.xpose.msra.mxu0 %v1932
      %1982 = vmatprep.subr.mxu0 0.0
      %1983 = vmatpush1.xpose.msra.mxu0 %v1929
      %1984 = vmatprep.subr.mxu0 0.0
      %1985 = vmatpush2.xpose.msra.mxu0 0.0
      %1986 = vmatprep.subr.mxu0 0.0
      %1987 = vmatpush2.xpose.msra.mxu0 0.0
      %1988 = vmatprep.subr.mxu0 0.0
      %1989 = vmatpush2.xpose.msra.mxu0 0.0
      %1990 = vmatprep.subr.mxu0 0.0
      %1991 = vmatpush2.xpose.msra.mxu0 0.0
      %1992 = vmatprep.subr.mxu0 0.0
      %1993 = vmatpush2.xpose.msra.mxu0 0.0
      %1994 = vmatprep.subr.mxu0 0.0
      %1995 = vmatpush2.xpose.msra.mxu0 0.0
      %1996 = vmatprep.subr.mxu0 0.0
      %1997 = vmatpush2.xpose.msra.mxu0 0.0
      %1998 = vmatprep.subr.mxu0 0.0
      %1999 = vmatpush2.xpose.msra.mxu0 0.0
      %2000 = vmatprep.subr.mxu0 0.0
      %2001 = vmatpush2.xpose.msra.mxu0 0.0
      %2002 = vmatprep.subr.mxu0 0.0
      %2003 = vmatpush2.xpose.msra.mxu0 0.0
      %2004 = vmatprep.subr.mxu0 0.0
      %2005 = vmatpush2.xpose.msra.mxu0 0.0
      %2006 = vmatprep.subr.mxu0 0.0
      %2007 = vmatpush2.xpose.msra.mxu0 0.0
      %2008 = vmatprep.subr.mxu0 0.0
      %2009 = vmatpush2.xpose.msra.mxu0 0.0
      %2010 = vmatprep.subr.mxu0 0.0
      %2011 = vmatpush2.xpose.msra.mxu0 0.0
      %2012 = vmatprep.subr.mxu0 0.0
      %2013 = vmatpush2.xpose.msra.mxu0 0.0
      %2014 = vmatprep.subr.mxu0 0.0
      %2015 = vmatpush2.xpose.msra.mxu0 0.0
      %2016 = vmatprep.mubr.f32.mxu0 0.0
      %2017 = vmatmul.mubr.f32.gmra.mxu0 %v1926
      %v2018 = vpop.f32.mrf.mxu0
      %v2019 = vadd.f32 0.0, %v2018
      %v2020 = vpop.f32.mrf.mxu0
      %2021 = vdwg.mxu0
      %v2022 = vlaneseq
      %v2023 = vshrl.u32 %v2022, 7
      %v2024 = vsub.s32 0, %v2023
      %v2025 = vrot.slane %v2019, %v2024
      %v2026 = vadd.f32 %v1903, %v2025
      %v2027 = vadd.f32 %v1906, %v2025
      %v2028 = vadd.f32 %v1909, %v2025
      %v2029 = vadd.f32 %v1912, %v2025
      %v2030 = vadd.f32 %v1915, %v2025
      %v2031 = vadd.f32 %v1918, %v2025
      %v2032 = vadd.f32 %v1921, %v2025
      %v2033 = vadd.f32 %v1924, %v2025
      %vm2034 = vcmp.gt.f32.partialorder %v2026, 0.0
      %vm2035 = vcmp.gt.f32.partialorder %v2027, 0.0
      %vm2036 = vcmp.gt.f32.partialorder %v2028, 0.0
      %vm2037 = vcmp.gt.f32.partialorder %v2029, 0.0
      %vm2038 = vcmp.gt.f32.partialorder %v2030, 0.0
      %vm2039 = vcmp.gt.f32.partialorder %v2031, 0.0
      %vm2040 = vcmp.gt.f32.partialorder %v2032, 0.0
      %vm2041 = vcmp.gt.f32.partialorder %v2033, 0.0
      %v2042 = vmul.f32 %v2026, 0.2
      %v2043 = vmul.f32 %v2027, 0.2
      %v2044 = vmul.f32 %v2028, 0.2
      %v2045 = vmul.f32 %v2029, 0.2
      %v2046 = vmul.f32 %v2030, 0.2
      %v2047 = vmul.f32 %v2031, 0.2
      %v2048 = vmul.f32 %v2032, 0.2
      %v2049 = vmul.f32 %v2033, 0.2
      %v2050 = vsel %vm2034, %v2026, %v2042
      %v2051 = vsel %vm2035, %v2027, %v2043
      %v2052 = vsel %vm2036, %v2028, %v2044
      %v2053 = vsel %vm2037, %v2029, %v2045
      %v2054 = vsel %vm2038, %v2030, %v2046
      %v2055 = vsel %vm2039, %v2031, %v2047
      %v2056 = vsel %vm2040, %v2032, %v2048
      %v2057 = vsel %vm2041, %v2033, %v2049
      %v2058 = vsel %vm548, %v2050, -1e+30
      %v2059 = vsel %vm549, %v2051, -1e+30
      %v2060 = vsel %vm550, %v2052, -1e+30
      %v2061 = vsel %vm551, %v2053, -1e+30
      %v2062 = vsel %vm552, %v2054, -1e+30
      %v2063 = vsel %vm553, %v2055, -1e+30
      %v2064 = vsel %vm554, %v2056, -1e+30
      %v2065 = vsel %vm555, %v2057, -1e+30
      %v2066 = vsel %vm564, %v2058, -inf
      %2067 = vmax.xlane.f32.xlu0 %v2066
      %v2068 = vpop.xlane.xlu0 %2067
      %v2069 = vsel %vm564, %v2059, -inf
      %2070 = vmax.xlane.f32.xlu0 %v2069
      %v2071 = vpop.xlane.xlu0 %2070
      %v2072 = vsel %vm564, %v2060, -inf
      %2073 = vmax.xlane.f32.xlu0 %v2072
      %v2074 = vpop.xlane.xlu0 %2073
      %v2075 = vsel %vm564, %v2061, -inf
      %2076 = vmax.xlane.f32.xlu0 %v2075
      %v2077 = vpop.xlane.xlu0 %2076
      %v2078 = vsel %vm564, %v2062, -inf
      %2079 = vmax.xlane.f32.xlu0 %v2078
      %v2080 = vpop.xlane.xlu0 %2079
      %v2081 = vsel %vm564, %v2063, -inf
      %2082 = vmax.xlane.f32.xlu0 %v2081
      %v2083 = vpop.xlane.xlu0 %2082
      %v2084 = vsel %vm564, %v2064, -inf
      %2085 = vmax.xlane.f32.xlu0 %v2084
      %v2086 = vpop.xlane.xlu0 %2085
      %v2087 = vsel %vm564, %v2065, -inf
      %2088 = vmax.xlane.f32.xlu0 %v2087
      %v2089 = vpop.xlane.xlu0 %2088
      %v2090 = vsub.f32 %v2058, %v2068
      %v2091 = vsub.f32 %v2059, %v2071
      %v2092 = vsub.f32 %v2060, %v2074
      %v2093 = vsub.f32 %v2061, %v2077
      %v2094 = vsub.f32 %v2062, %v2080
      %v2095 = vsub.f32 %v2063, %v2083
      %v2096 = vsub.f32 %v2064, %v2086
      %v2097 = vsub.f32 %v2065, %v2089
      %v2098 = vmul.f32 %v2090, 1.442695
      %v2099 = vpow.pop %v2098
      %v2100 = vmul.f32 %v2091, 1.442695
      %v2101 = vpow.pop %v2100
      %v2102 = vmul.f32 %v2092, 1.442695
      %v2103 = vpow.pop %v2102
      %v2104 = vmul.f32 %v2093, 1.442695
      %v2105 = vpow.pop %v2104
      %v2106 = vmul.f32 %v2094, 1.442695
      %v2107 = vpow.pop %v2106
      %v2108 = vmul.f32 %v2095, 1.442695
      %v2109 = vpow.pop %v2108
      %v2110 = vmul.f32 %v2096, 1.442695
      %v2111 = vpow.pop %v2110
      %v2112 = vmul.f32 %v2097, 1.442695
      %v2113 = vpow.pop %v2112
      %v2114 = vmul.f32 %v2099, %v236
      %v2115 = vmul.f32 %v2101, %v237
      %v2116 = vmul.f32 %v2103, %v238
      %v2117 = vmul.f32 %v2105, %v239
      %v2118 = vmul.f32 %v2107, %v240
      %v2119 = vmul.f32 %v2109, %v241
      %v2120 = vmul.f32 %v2111, %v242
      %v2121 = vmul.f32 %v2113, %v243
      %v2122 = vsel %vm564, %v2114, 0.0
      %2123 = vadd.xlane.f32.xlu0 %v2122
      %v2124 = vpop.xlane.xlu0 %2123
      %v2125 = vsel %vm564, %v2115, 0.0
      %2126 = vadd.xlane.f32.xlu0 %v2125
      %v2127 = vpop.xlane.xlu0 %2126
      %v2128 = vsel %vm564, %v2116, 0.0
      %2129 = vadd.xlane.f32.xlu0 %v2128
      %v2130 = vpop.xlane.xlu0 %2129
      %v2131 = vsel %vm564, %v2117, 0.0
      %2132 = vadd.xlane.f32.xlu0 %v2131
      %v2133 = vpop.xlane.xlu0 %2132
      %v2134 = vsel %vm564, %v2118, 0.0
      %2135 = vadd.xlane.f32.xlu0 %v2134
      %v2136 = vpop.xlane.xlu0 %2135
      %v2137 = vsel %vm564, %v2119, 0.0
      %2138 = vadd.xlane.f32.xlu0 %v2137
      %v2139 = vpop.xlane.xlu0 %2138
      %v2140 = vsel %vm564, %v2120, 0.0
      %2141 = vadd.xlane.f32.xlu0 %v2140
      %v2142 = vpop.xlane.xlu0 %2141
      %v2143 = vsel %vm564, %v2121, 0.0
      %2144 = vadd.xlane.f32.xlu0 %v2143
      %v2145 = vpop.xlane.xlu0 %2144
      %vm2146 = vcmp.gt.f32.partialorder %v2124, 0.0
      %vm2147 = vcmp.gt.f32.partialorder %v2127, 0.0
      %vm2148 = vcmp.gt.f32.partialorder %v2130, 0.0
      %vm2149 = vcmp.gt.f32.partialorder %v2133, 0.0
      %vm2150 = vcmp.gt.f32.partialorder %v2136, 0.0
      %vm2151 = vcmp.gt.f32.partialorder %v2139, 0.0
      %vm2152 = vcmp.gt.f32.partialorder %v2142, 0.0
      %vm2153 = vcmp.gt.f32.partialorder %v2145, 0.0
      %v2154 = vsel %vm2146, %v2124, 1.0
      %v2155 = vsel %vm2147, %v2127, 1.0
      %v2156 = vsel %vm2148, %v2130, 1.0
      %v2157 = vsel %vm2149, %v2133, 1.0
      %v2158 = vsel %vm2150, %v2136, 1.0
      %v2159 = vsel %vm2151, %v2139, 1.0
      %v2160 = vsel %vm2152, %v2142, 1.0
      %v2161 = vsel %vm2153, %v2145, 1.0
      %v2162 = vrcp.pop %v2154
      %v2163 = vrcp.pop %v2155
      %v2164 = vrcp.pop %v2156
      %v2165 = vrcp.pop %v2157
      %v2166 = vrcp.pop %v2158
      %v2167 = vrcp.pop %v2159
      %v2168 = vrcp.pop %v2160
      %v2169 = vrcp.pop %v2161
      %v2170 = vmul.f32 %v2114, %v2162
      %v2171 = vmul.f32 %v2115, %v2163
      %v2172 = vmul.f32 %v2116, %v2164
      %v2173 = vmul.f32 %v2117, %v2165
      %v2174 = vmul.f32 %v2118, %v2166
      %v2175 = vmul.f32 %v2119, %v2167
      %v2176 = vmul.f32 %v2120, %v2168
      %v2177 = vmul.f32 %v2121, %v2169
      %v2178 = vlaneseq
      %v2179 = vshrl.u32 %v2178, 7
      %v2180 = vsub.s32 2, %v2179
      %v2181 = vrot.slane %v1759, %v2180
      %v2183 = vsel %vm564, %v2170, 0
      %v2186 = vsel %vm564, %v2171, 0
      %v2189 = vsel %vm564, %v2172, 0
      %v2192 = vsel %vm564, %v2173, 0
      %v2195 = vsel %vm564, %v2174, 0
      %v2198 = vsel %vm564, %v2175, 0
      %v2201 = vsel %vm564, %v2176, 0
      %v2204 = vsel %vm564, %v2177, 0
      %2206 = vmatprep.subr.mxu0 0.0
      %2207 = vmatpush1.msra.mxu0 0.0
      %2208 = vmatprep.subr.mxu0 0.0
      %2209 = vmatpush1.msra.mxu0 0.0
      %2210 = vmatprep.subr.mxu0 0.0
      %2211 = vmatpush1.msra.mxu0 0.0
      %2212 = vmatprep.subr.mxu0 0.0
      %2213 = vmatpush1.msra.mxu0 0.0
      %2214 = vmatprep.subr.mxu0 0.0
      %2215 = vmatpush1.msra.mxu0 0.0
      %2216 = vmatprep.subr.mxu0 0.0
      %2217 = vmatpush1.msra.mxu0 0.0
      %2218 = vmatprep.subr.mxu0 0.0
      %2219 = vmatpush1.msra.mxu0 0.0
      %2220 = vmatprep.subr.mxu0 0.0
      %2221 = vmatpush1.msra.mxu0 0.0
      %2222 = vmatprep.subr.mxu0 0.0
      %2223 = vmatpush1.msra.mxu0 %v1886
      %2224 = vmatprep.subr.mxu0 0.0
      %2225 = vmatpush1.msra.mxu0 %v1881
      %2226 = vmatprep.subr.mxu0 0.0
      %2227 = vmatpush1.msra.mxu0 %v1876
      %2228 = vmatprep.subr.mxu0 0.0
      %2229 = vmatpush1.msra.mxu0 %v1871
      %2230 = vmatprep.subr.mxu0 0.0
      %2231 = vmatpush1.msra.mxu0 %v1866
      %2232 = vmatprep.subr.mxu0 0.0
      %2233 = vmatpush1.msra.mxu0 %v1861
      %2234 = vmatprep.subr.mxu0 0.0
      %2235 = vmatpush1.msra.mxu0 %v1856
      %2236 = vmatprep.subr.mxu0 0.0
      %2237 = vmatpush1.msra.mxu0 %v1851
      %2238 = vmatprep.subr.mxu0 0.0
      %2239 = vmatpush2.msra.mxu0 0.0
      %2240 = vmatprep.subr.mxu0 0.0
      %2241 = vmatpush2.msra.mxu0 0.0
      %2242 = vmatprep.subr.mxu0 0.0
      %2243 = vmatpush2.msra.mxu0 0.0
      %2244 = vmatprep.subr.mxu0 0.0
      %2245 = vmatpush2.msra.mxu0 0.0
      %2246 = vmatprep.subr.mxu0 0.0
      %2247 = vmatpush2.msra.mxu0 0.0
      %2248 = vmatprep.subr.mxu0 0.0
      %2249 = vmatpush2.msra.mxu0 0.0
      %2250 = vmatprep.subr.mxu0 0.0
      %2251 = vmatpush2.msra.mxu0 0.0
      %2252 = vmatprep.subr.mxu0 0.0
      %2253 = vmatpush2.msra.mxu0 0.0
      %2254 = vmatprep.subr.mxu0 0.0
      %2255 = vmatpush2.msra.mxu0 0.0
      %2256 = vmatprep.subr.mxu0 0.0
      %2257 = vmatpush2.msra.mxu0 0.0
      %2258 = vmatprep.subr.mxu0 0.0
      %2259 = vmatpush2.msra.mxu0 0.0
      %2260 = vmatprep.subr.mxu0 0.0
      %2261 = vmatpush2.msra.mxu0 0.0
      %2262 = vmatprep.subr.mxu0 0.0
      %2263 = vmatpush2.msra.mxu0 0.0
      %2264 = vmatprep.subr.mxu0 0.0
      %2265 = vmatpush2.msra.mxu0 0.0
      %2266 = vmatprep.subr.mxu0 0.0
      %2267 = vmatpush2.msra.mxu0 0.0
      %2268 = vmatprep.subr.mxu0 0.0
      %2269 = vmatpush2.msra.mxu0 0.0
      %2270 = vmatprep.mubr.f32.mxu0 0.0
      %2271 = vmatmul.mubr.f32.gmra.mxu0 %v2183
      %v2272 = vpop.f32.mrf.mxu0
      %v2273 = vadd.f32 %v2181, %v2272
      %v2274 = vpop.f32.mrf.mxu0
      %2275 = vmatprep.mubr.f32.mxu0 0.0
      %2276 = vmatmul.mubr.f32.gmra.mxu0 %v2186
      %v2277 = vpop.f32.mrf.mxu0
      %v2278 = vadd.f32 %v2181, %v2277
      %v2279 = vpop.f32.mrf.mxu0
      %2280 = vmatprep.mubr.f32.mxu0 0.0
      %2281 = vmatmul.mubr.f32.gmra.mxu0 %v2189
      %v2282 = vpop.f32.mrf.mxu0
      %v2283 = vadd.f32 %v2181, %v2282
      %v2284 = vpop.f32.mrf.mxu0
      %2285 = vmatprep.mubr.f32.mxu0 0.0
      %2286 = vmatmul.mubr.f32.gmra.mxu0 %v2192
      %v2287 = vpop.f32.mrf.mxu0
      %v2288 = vadd.f32 %v2181, %v2287
      %v2289 = vpop.f32.mrf.mxu0
      %2290 = vmatprep.mubr.f32.mxu0 0.0
      %2291 = vmatmul.mubr.f32.gmra.mxu0 %v2195
      %v2292 = vpop.f32.mrf.mxu0
      %v2293 = vadd.f32 %v2181, %v2292
      %v2294 = vpop.f32.mrf.mxu0
      %2295 = vmatprep.mubr.f32.mxu0 0.0
      %2296 = vmatmul.mubr.f32.gmra.mxu0 %v2198
      %v2297 = vpop.f32.mrf.mxu0
      %v2298 = vadd.f32 %v2181, %v2297
      %v2299 = vpop.f32.mrf.mxu0
      %2300 = vmatprep.mubr.f32.mxu0 0.0
      %2301 = vmatmul.mubr.f32.gmra.mxu0 %v2201
      %v2302 = vpop.f32.mrf.mxu0
      %v2303 = vadd.f32 %v2181, %v2302
      %v2304 = vpop.f32.mrf.mxu0
      %2305 = vmatprep.mubr.f32.mxu0 0.0
      %2306 = vmatmul.mubr.f32.gmra.mxu0 %v2204
      %v2307 = vpop.f32.mrf.mxu0
      %v2308 = vadd.f32 %v2181, %v2307
      %v2309 = vpop.f32.mrf.mxu0
      %2310 = vdwg.mxu0
      %v2311 = vsel %vm249, %v2273, 0.0
      %2312 = vadd.xlane.f32.xlu0 %v2311
      %v2313 = vpop.xlane.xlu0 %2312
      %v2314 = vsel %vm249, %v2278, 0.0
      %2315 = vadd.xlane.f32.xlu0 %v2314
      %v2316 = vpop.xlane.xlu0 %2315
      %v2317 = vsel %vm249, %v2283, 0.0
      %2318 = vadd.xlane.f32.xlu0 %v2317
      %v2319 = vpop.xlane.xlu0 %2318
      %v2320 = vsel %vm249, %v2288, 0.0
      %2321 = vadd.xlane.f32.xlu0 %v2320
      %v2322 = vpop.xlane.xlu0 %2321
      %v2323 = vsel %vm249, %v2293, 0.0
      %2324 = vadd.xlane.f32.xlu0 %v2323
      %v2325 = vpop.xlane.xlu0 %2324
      %v2326 = vsel %vm249, %v2298, 0.0
      %2327 = vadd.xlane.f32.xlu0 %v2326
      %v2328 = vpop.xlane.xlu0 %2327
      %v2329 = vsel %vm249, %v2303, 0.0
      %2330 = vadd.xlane.f32.xlu0 %v2329
      %v2331 = vpop.xlane.xlu0 %2330
      %v2332 = vsel %vm249, %v2308, 0.0
      %2333 = vadd.xlane.f32.xlu0 %v2332
      %v2334 = vpop.xlane.xlu0 %2333
      %v2335 = vmul.f32 %v2313, %v834
      %v2336 = vmul.f32 %v2316, %v834
      %v2337 = vmul.f32 %v2319, %v834
      %v2338 = vmul.f32 %v2322, %v834
      %v2339 = vmul.f32 %v2325, %v834
      %v2340 = vmul.f32 %v2328, %v834
      %v2341 = vmul.f32 %v2331, %v834
      %v2342 = vmul.f32 %v2334, %v834
      %v2343 = vmul.f32 %v2273, %v2273
      %v2344 = vmul.f32 %v2278, %v2278
      %v2345 = vmul.f32 %v2283, %v2283
      %v2346 = vmul.f32 %v2288, %v2288
      %v2347 = vmul.f32 %v2293, %v2293
      %v2348 = vmul.f32 %v2298, %v2298
      %v2349 = vmul.f32 %v2303, %v2303
      %v2350 = vmul.f32 %v2308, %v2308
      %v2351 = vsel %vm249, %v2343, 0.0
      %2352 = vadd.xlane.f32.xlu0 %v2351
      %v2353 = vpop.xlane.xlu0 %2352
      %v2354 = vsel %vm249, %v2344, 0.0
      %2355 = vadd.xlane.f32.xlu0 %v2354
      %v2356 = vpop.xlane.xlu0 %2355
      %v2357 = vsel %vm249, %v2345, 0.0
      %2358 = vadd.xlane.f32.xlu0 %v2357
      %v2359 = vpop.xlane.xlu0 %2358
      %v2360 = vsel %vm249, %v2346, 0.0
      %2361 = vadd.xlane.f32.xlu0 %v2360
      %v2362 = vpop.xlane.xlu0 %2361
      %v2363 = vsel %vm249, %v2347, 0.0
      %2364 = vadd.xlane.f32.xlu0 %v2363
      %v2365 = vpop.xlane.xlu0 %2364
      %v2366 = vsel %vm249, %v2348, 0.0
      %2367 = vadd.xlane.f32.xlu0 %v2366
      %v2368 = vpop.xlane.xlu0 %2367
      %v2369 = vsel %vm249, %v2349, 0.0
      %2370 = vadd.xlane.f32.xlu0 %v2369
      %v2371 = vpop.xlane.xlu0 %2370
      %v2372 = vsel %vm249, %v2350, 0.0
      %2373 = vadd.xlane.f32.xlu0 %v2372
      %v2374 = vpop.xlane.xlu0 %2373
      %v2375 = vmul.f32 %v2353, %v834
      %v2376 = vmul.f32 %v2356, %v834
      %v2377 = vmul.f32 %v2359, %v834
      %v2378 = vmul.f32 %v2362, %v834
      %v2379 = vmul.f32 %v2365, %v834
      %v2380 = vmul.f32 %v2368, %v834
      %v2381 = vmul.f32 %v2371, %v834
      %v2382 = vmul.f32 %v2374, %v834
      %v2383 = vmul.f32 %v2335, %v2335
      %v2384 = vmul.f32 %v2336, %v2336
      %v2385 = vmul.f32 %v2337, %v2337
      %v2386 = vmul.f32 %v2338, %v2338
      %v2387 = vmul.f32 %v2339, %v2339
      %v2388 = vmul.f32 %v2340, %v2340
      %v2389 = vmul.f32 %v2341, %v2341
      %v2390 = vmul.f32 %v2342, %v2342
      %v2391 = vsub.f32 %v2375, %v2383
      %v2392 = vsub.f32 %v2376, %v2384
      %v2393 = vsub.f32 %v2377, %v2385
      %v2394 = vsub.f32 %v2378, %v2386
      %v2395 = vsub.f32 %v2379, %v2387
      %v2396 = vsub.f32 %v2380, %v2388
      %v2397 = vsub.f32 %v2381, %v2389
      %v2398 = vsub.f32 %v2382, %v2390
      %v2399 = vmax.f32 %v2391, 0.0
      %v2400 = vmax.f32 %v2392, 0.0
      %v2401 = vmax.f32 %v2393, 0.0
      %v2402 = vmax.f32 %v2394, 0.0
      %v2403 = vmax.f32 %v2395, 0.0
      %v2404 = vmax.f32 %v2396, 0.0
      %v2405 = vmax.f32 %v2397, 0.0
      %v2406 = vmax.f32 %v2398, 0.0
      %v2407 = vsub.f32 %v2273, %v2335
      %v2408 = vsub.f32 %v2278, %v2336
      %v2409 = vsub.f32 %v2283, %v2337
      %v2410 = vsub.f32 %v2288, %v2338
      %v2411 = vsub.f32 %v2293, %v2339
      %v2412 = vsub.f32 %v2298, %v2340
      %v2413 = vsub.f32 %v2303, %v2341
      %v2414 = vsub.f32 %v2308, %v2342
      %v2415 = vadd.f32 %v2399, 1e-05
      %v2416 = vadd.f32 %v2400, 1e-05
      %v2417 = vadd.f32 %v2401, 1e-05
      %v2418 = vadd.f32 %v2402, 1e-05
      %v2419 = vadd.f32 %v2403, 1e-05
      %v2420 = vadd.f32 %v2404, 1e-05
      %v2421 = vadd.f32 %v2405, 1e-05
      %v2422 = vadd.f32 %v2406, 1e-05
      %v2423 = vrsqrt.pop %v2415
      %v2424 = vrsqrt.pop %v2416
      %v2425 = vrsqrt.pop %v2417
      %v2426 = vrsqrt.pop %v2418
      %v2427 = vrsqrt.pop %v2419
      %v2428 = vrsqrt.pop %v2420
      %v2429 = vrsqrt.pop %v2421
      %v2430 = vrsqrt.pop %v2422
      %v2431 = vmul.f32 %v2407, %v2423
      %v2432 = vmul.f32 %v2408, %v2424
      %v2433 = vmul.f32 %v2409, %v2425
      %v2434 = vmul.f32 %v2410, %v2426
      %v2435 = vmul.f32 %v2411, %v2427
      %v2436 = vmul.f32 %v2412, %v2428
      %v2437 = vmul.f32 %v2413, %v2429
      %v2438 = vmul.f32 %v2414, %v2430
      %v2439 = vlaneseq
      %v2440 = vshrl.u32 %v2439, 7
      %v2441 = vsub.s32 3, %v2440
      %v2442 = vrot.slane %v1759, %v2441
      %v2443 = vmul.f32 %v2431, %v2442
      %v2444 = vmul.f32 %v2432, %v2442
      %v2445 = vmul.f32 %v2433, %v2442
      %v2446 = vmul.f32 %v2434, %v2442
      %v2447 = vmul.f32 %v2435, %v2442
      %v2448 = vmul.f32 %v2436, %v2442
      %v2449 = vmul.f32 %v2437, %v2442
      %v2450 = vmul.f32 %v2438, %v2442
      %v2451 = vlaneseq
      %v2452 = vshrl.u32 %v2451, 7
      %v2453 = vsub.s32 4, %v2452
      %v2454 = vrot.slane %v1759, %v2453
      %v2455 = vadd.f32 %v2443, %v2454
      %v2456 = vadd.f32 %v2444, %v2454
      %v2457 = vadd.f32 %v2445, %v2454
      %v2458 = vadd.f32 %v2446, %v2454
      %v2459 = vadd.f32 %v2447, %v2454
      %v2460 = vadd.f32 %v2448, %v2454
      %v2461 = vadd.f32 %v2449, %v2454
      %v2462 = vadd.f32 %v2450, %v2454
      %vm2463 = vcmp.gt.f32.partialorder %v2455, 0.0
      %vm2464 = vcmp.gt.f32.partialorder %v2456, 0.0
      %vm2465 = vcmp.gt.f32.partialorder %v2457, 0.0
      %vm2466 = vcmp.gt.f32.partialorder %v2458, 0.0
      %vm2467 = vcmp.gt.f32.partialorder %v2459, 0.0
      %vm2468 = vcmp.gt.f32.partialorder %v2460, 0.0
      %vm2469 = vcmp.gt.f32.partialorder %v2461, 0.0
      %vm2470 = vcmp.gt.f32.partialorder %v2462, 0.0
      %v2471 = vmul.f32 %v2455, 0.01
      %v2472 = vmul.f32 %v2456, 0.01
      %v2473 = vmul.f32 %v2457, 0.01
      %v2474 = vmul.f32 %v2458, 0.01
      %v2475 = vmul.f32 %v2459, 0.01
      %v2476 = vmul.f32 %v2460, 0.01
      %v2477 = vmul.f32 %v2461, 0.01
      %v2478 = vmul.f32 %v2462, 0.01
      %v2479 = vsel %vm2463, %v2455, %v2471
      %v2480 = vsel %vm2464, %v2456, %v2472
      %v2481 = vsel %vm2465, %v2457, %v2473
      %v2482 = vsel %vm2466, %v2458, %v2474
      %v2483 = vsel %vm2467, %v2459, %v2475
      %v2484 = vsel %vm2468, %v2460, %v2476
      %v2485 = vsel %vm2469, %v2461, %v2477
      %v2486 = vsel %vm2470, %v2462, %v2478
      %v2487 = vmul.f32 %v2479, 0.5
      %v2488 = vmul.f32 %v2480, 0.5
      %v2489 = vmul.f32 %v2481, 0.5
      %v2490 = vmul.f32 %v2482, 0.5
      %v2491 = vmul.f32 %v2483, 0.5
      %v2492 = vmul.f32 %v2484, 0.5
      %v2493 = vmul.f32 %v2485, 0.5
      %v2494 = vmul.f32 %v2486, 0.5
      %v2495 = vadd.f32 %v1745, %v2487
      %v2496 = vadd.f32 %v1746, %v2488
      %v2497 = vadd.f32 %v1747, %v2489
      %v2498 = vadd.f32 %v1748, %v2490
      %v2499 = vadd.f32 %v1749, %v2491
      %v2500 = vadd.f32 %v1750, %v2492
      %v2501 = vadd.f32 %v1751, %v2493
      %v2502 = vadd.f32 %v1752, %v2494
      %s2503 = scalar_lea.vmem %s2, 96
      %v2504 = vld [vmem:[%s2503] sm:$0xff]
      %v2505 = vld [vmem:[%s2503 + $0x8] sm:$0xff]
      %v2506 = vld [vmem:[%s2503 + $0x10] sm:$0xff]
      %v2507 = vld [vmem:[%s2503 + $0x18] sm:$0xff]
      %s2508 = scalar_lea.vmem %s3, 24
      %v2509 = vld [vmem:[%s2508] sm:$0xff]
      %v2511 = vsel %vm249, %v2479, 0
      %v2514 = vsel %vm249, %v2480, 0
      %v2517 = vsel %vm249, %v2481, 0
      %v2520 = vsel %vm249, %v2482, 0
      %v2523 = vsel %vm249, %v2483, 0
      %v2526 = vsel %vm249, %v2484, 0
      %v2529 = vsel %vm249, %v2485, 0
      %v2532 = vsel %vm249, %v2486, 0
      %2534 = vmatprep.subr.mxu0 0.0
      %2535 = vmatpush1.msra.mxu0 0.0
      %2536 = vmatprep.subr.mxu0 0.0
      %2537 = vmatpush1.msra.mxu0 0.0
      %2538 = vmatprep.subr.mxu0 0.0
      %2539 = vmatpush1.msra.mxu0 0.0
      %2540 = vmatprep.subr.mxu0 0.0
      %2541 = vmatpush1.msra.mxu0 0.0
      %2542 = vmatprep.subr.mxu0 0.0
      %2543 = vmatpush1.msra.mxu0 0.0
      %2544 = vmatprep.subr.mxu0 0.0
      %2545 = vmatpush1.msra.mxu0 0.0
      %2546 = vmatprep.subr.mxu0 0.0
      %2547 = vmatpush1.msra.mxu0 0.0
      %2548 = vmatprep.subr.mxu0 0.0
      %2549 = vmatpush1.msra.mxu0 0.0
      %2550 = vmatprep.subr.mxu0 0.0
      %2551 = vmatpush1.msra.mxu0 0.0
      %2552 = vmatprep.subr.mxu0 0.0
      %2553 = vmatpush1.msra.mxu0 0.0
      %2554 = vmatprep.subr.mxu0 0.0
      %2555 = vmatpush1.msra.mxu0 0.0
      %2556 = vmatprep.subr.mxu0 0.0
      %2557 = vmatpush1.msra.mxu0 0.0
      %2558 = vmatprep.subr.mxu0 0.0
      %2559 = vmatpush1.msra.mxu0 %v2507
      %2560 = vmatprep.subr.mxu0 0.0
      %2561 = vmatpush1.msra.mxu0 %v2506
      %2562 = vmatprep.subr.mxu0 0.0
      %2563 = vmatpush1.msra.mxu0 %v2505
      %2564 = vmatprep.subr.mxu0 0.0
      %2565 = vmatpush1.msra.mxu0 %v2504
      %2566 = vmatprep.subr.mxu0 0.0
      %2567 = vmatpush2.msra.mxu0 0.0
      %2568 = vmatprep.subr.mxu0 0.0
      %2569 = vmatpush2.msra.mxu0 0.0
      %2570 = vmatprep.subr.mxu0 0.0
      %2571 = vmatpush2.msra.mxu0 0.0
      %2572 = vmatprep.subr.mxu0 0.0
      %2573 = vmatpush2.msra.mxu0 0.0
      %2574 = vmatprep.subr.mxu0 0.0
      %2575 = vmatpush2.msra.mxu0 0.0
      %2576 = vmatprep.subr.mxu0 0.0
      %2577 = vmatpush2.msra.mxu0 0.0
      %2578 = vmatprep.subr.mxu0 0.0
      %2579 = vmatpush2.msra.mxu0 0.0
      %2580 = vmatprep.subr.mxu0 0.0
      %2581 = vmatpush2.msra.mxu0 0.0
      %2582 = vmatprep.subr.mxu0 0.0
      %2583 = vmatpush2.msra.mxu0 0.0
      %2584 = vmatprep.subr.mxu0 0.0
      %2585 = vmatpush2.msra.mxu0 0.0
      %2586 = vmatprep.subr.mxu0 0.0
      %2587 = vmatpush2.msra.mxu0 0.0
      %2588 = vmatprep.subr.mxu0 0.0
      %2589 = vmatpush2.msra.mxu0 0.0
      %2590 = vmatprep.subr.mxu0 0.0
      %2591 = vmatpush2.msra.mxu0 0.0
      %2592 = vmatprep.subr.mxu0 0.0
      %2593 = vmatpush2.msra.mxu0 0.0
      %2594 = vmatprep.subr.mxu0 0.0
      %2595 = vmatpush2.msra.mxu0 0.0
      %2596 = vmatprep.subr.mxu0 0.0
      %2597 = vmatpush2.msra.mxu0 0.0
      %2598 = vmatprep.mubr.f32.mxu0 0.0
      %2599 = vmatmul.mubr.f32.gmra.mxu0 %v2511
      %v2600 = vpop.f32.mrf.mxu0
      %v2601 = vadd.f32 0.0, %v2600
      %v2602 = vpop.f32.mrf.mxu0
      %2603 = vmatprep.mubr.f32.mxu0 0.0
      %2604 = vmatmul.mubr.f32.gmra.mxu0 %v2514
      %v2605 = vpop.f32.mrf.mxu0
      %v2606 = vadd.f32 0.0, %v2605
      %v2607 = vpop.f32.mrf.mxu0
      %2608 = vmatprep.mubr.f32.mxu0 0.0
      %2609 = vmatmul.mubr.f32.gmra.mxu0 %v2517
      %v2610 = vpop.f32.mrf.mxu0
      %v2611 = vadd.f32 0.0, %v2610
      %v2612 = vpop.f32.mrf.mxu0
      %2613 = vmatprep.mubr.f32.mxu0 0.0
      %2614 = vmatmul.mubr.f32.gmra.mxu0 %v2520
      %v2615 = vpop.f32.mrf.mxu0
      %v2616 = vadd.f32 0.0, %v2615
      %v2617 = vpop.f32.mrf.mxu0
      %2618 = vmatprep.mubr.f32.mxu0 0.0
      %2619 = vmatmul.mubr.f32.gmra.mxu0 %v2523
      %v2620 = vpop.f32.mrf.mxu0
      %v2621 = vadd.f32 0.0, %v2620
      %v2622 = vpop.f32.mrf.mxu0
      %2623 = vmatprep.mubr.f32.mxu0 0.0
      %2624 = vmatmul.mubr.f32.gmra.mxu0 %v2526
      %v2625 = vpop.f32.mrf.mxu0
      %v2626 = vadd.f32 0.0, %v2625
      %v2627 = vpop.f32.mrf.mxu0
      %2628 = vmatprep.mubr.f32.mxu0 0.0
      %2629 = vmatmul.mubr.f32.gmra.mxu0 %v2529
      %v2630 = vpop.f32.mrf.mxu0
      %v2631 = vadd.f32 0.0, %v2630
      %v2632 = vpop.f32.mrf.mxu0
      %2633 = vmatprep.mubr.f32.mxu0 0.0
      %2634 = vmatmul.mubr.f32.gmra.mxu0 %v2532
      %v2635 = vpop.f32.mrf.mxu0
      %v2636 = vadd.f32 0.0, %v2635
      %v2637 = vpop.f32.mrf.mxu0
      %2638 = vdwg.mxu0
      %v2639 = vlaneseq
      %v2640 = vshrl.u32 %v2639, 7
      %v2641 = vsub.s32 1, %v2640
      %v2642 = vrot.slane %v2509, %v2641
      %v2643 = vmul.f32 %v2601, %v2642
      %v2644 = vmul.f32 %v2606, %v2642
      %v2645 = vmul.f32 %v2611, %v2642
      %v2646 = vmul.f32 %v2616, %v2642
      %v2647 = vmul.f32 %v2621, %v2642
      %v2648 = vmul.f32 %v2626, %v2642
      %v2649 = vmul.f32 %v2631, %v2642
      %v2650 = vmul.f32 %v2636, %v2642
      %v2651 = vsel %vm249, %v2643, 0.0
      %2652 = vadd.xlane.f32.xlu0 %v2651
      %v2653 = vpop.xlane.xlu0 %2652
      %v2654 = vsel %vm249, %v2644, 0.0
      %2655 = vadd.xlane.f32.xlu0 %v2654
      %v2656 = vpop.xlane.xlu0 %2655
      %v2657 = vsel %vm249, %v2645, 0.0
      %2658 = vadd.xlane.f32.xlu0 %v2657
      %v2659 = vpop.xlane.xlu0 %2658
      %v2660 = vsel %vm249, %v2646, 0.0
      %2661 = vadd.xlane.f32.xlu0 %v2660
      %v2662 = vpop.xlane.xlu0 %2661
      %v2663 = vsel %vm249, %v2647, 0.0
      %2664 = vadd.xlane.f32.xlu0 %v2663
      %v2665 = vpop.xlane.xlu0 %2664
      %v2666 = vsel %vm249, %v2648, 0.0
      %2667 = vadd.xlane.f32.xlu0 %v2666
      %v2668 = vpop.xlane.xlu0 %2667
      %v2669 = vsel %vm249, %v2649, 0.0
      %2670 = vadd.xlane.f32.xlu0 %v2669
      %v2671 = vpop.xlane.xlu0 %2670
      %v2672 = vsel %vm249, %v2650, 0.0
      %2673 = vadd.xlane.f32.xlu0 %v2672
      %v2674 = vpop.xlane.xlu0 %2673
      %v2676 = vsel %vm249, %v2509, 0
      %v2679 = vsel %vm249, %v2601, 0
      %v2682 = vsel %vm249, %v2606, 0
      %v2685 = vsel %vm249, %v2611, 0
      %v2688 = vsel %vm249, %v2616, 0
      %v2691 = vsel %vm249, %v2621, 0
      %v2694 = vsel %vm249, %v2626, 0
      %v2697 = vsel %vm249, %v2631, 0
      %v2700 = vsel %vm249, %v2636, 0
      %2702 = vmatprep.subr.mxu0 0.0
      %2703 = vmatpush1.xpose.msra.mxu0 0.0
      %2704 = vmatprep.subr.mxu0 0.0
      %2705 = vmatpush1.xpose.msra.mxu0 0.0
      %2706 = vmatprep.subr.mxu0 0.0
      %2707 = vmatpush1.xpose.msra.mxu0 0.0
      %2708 = vmatprep.subr.mxu0 0.0
      %2709 = vmatpush1.xpose.msra.mxu0 0.0
      %2710 = vmatprep.subr.mxu0 0.0
      %2711 = vmatpush1.xpose.msra.mxu0 0.0
      %2712 = vmatprep.subr.mxu0 0.0
      %2713 = vmatpush1.xpose.msra.mxu0 0.0
      %2714 = vmatprep.subr.mxu0 0.0
      %2715 = vmatpush1.xpose.msra.mxu0 0.0
      %2716 = vmatprep.subr.mxu0 0.0
      %2717 = vmatpush1.xpose.msra.mxu0 0.0
      %2718 = vmatprep.subr.mxu0 0.0
      %2719 = vmatpush1.xpose.msra.mxu0 %v2700
      %2720 = vmatprep.subr.mxu0 0.0
      %2721 = vmatpush1.xpose.msra.mxu0 %v2697
      %2722 = vmatprep.subr.mxu0 0.0
      %2723 = vmatpush1.xpose.msra.mxu0 %v2694
      %2724 = vmatprep.subr.mxu0 0.0
      %2725 = vmatpush1.xpose.msra.mxu0 %v2691
      %2726 = vmatprep.subr.mxu0 0.0
      %2727 = vmatpush1.xpose.msra.mxu0 %v2688
      %2728 = vmatprep.subr.mxu0 0.0
      %2729 = vmatpush1.xpose.msra.mxu0 %v2685
      %2730 = vmatprep.subr.mxu0 0.0
      %2731 = vmatpush1.xpose.msra.mxu0 %v2682
      %2732 = vmatprep.subr.mxu0 0.0
      %2733 = vmatpush1.xpose.msra.mxu0 %v2679
      %2734 = vmatprep.subr.mxu0 0.0
      %2735 = vmatpush2.xpose.msra.mxu0 0.0
      %2736 = vmatprep.subr.mxu0 0.0
      %2737 = vmatpush2.xpose.msra.mxu0 0.0
      %2738 = vmatprep.subr.mxu0 0.0
      %2739 = vmatpush2.xpose.msra.mxu0 0.0
      %2740 = vmatprep.subr.mxu0 0.0
      %2741 = vmatpush2.xpose.msra.mxu0 0.0
      %2742 = vmatprep.subr.mxu0 0.0
      %2743 = vmatpush2.xpose.msra.mxu0 0.0
      %2744 = vmatprep.subr.mxu0 0.0
      %2745 = vmatpush2.xpose.msra.mxu0 0.0
      %2746 = vmatprep.subr.mxu0 0.0
      %2747 = vmatpush2.xpose.msra.mxu0 0.0
      %2748 = vmatprep.subr.mxu0 0.0
      %2749 = vmatpush2.xpose.msra.mxu0 0.0
      %2750 = vmatprep.subr.mxu0 0.0
      %2751 = vmatpush2.xpose.msra.mxu0 0.0
      %2752 = vmatprep.subr.mxu0 0.0
      %2753 = vmatpush2.xpose.msra.mxu0 0.0
      %2754 = vmatprep.subr.mxu0 0.0
      %2755 = vmatpush2.xpose.msra.mxu0 0.0
      %2756 = vmatprep.subr.mxu0 0.0
      %2757 = vmatpush2.xpose.msra.mxu0 0.0
      %2758 = vmatprep.subr.mxu0 0.0
      %2759 = vmatpush2.xpose.msra.mxu0 0.0
      %2760 = vmatprep.subr.mxu0 0.0
      %2761 = vmatpush2.xpose.msra.mxu0 0.0
      %2762 = vmatprep.subr.mxu0 0.0
      %2763 = vmatpush2.xpose.msra.mxu0 0.0
      %2764 = vmatprep.subr.mxu0 0.0
      %2765 = vmatpush2.xpose.msra.mxu0 0.0
      %2766 = vmatprep.mubr.f32.mxu0 0.0
      %2767 = vmatmul.mubr.f32.gmra.mxu0 %v2676
      %v2768 = vpop.f32.mrf.mxu0
      %v2769 = vadd.f32 0.0, %v2768
      %v2770 = vpop.f32.mrf.mxu0
      %2771 = vdwg.mxu0
      %v2772 = vlaneseq
      %v2773 = vshrl.u32 %v2772, 7
      %v2774 = vsub.s32 0, %v2773
      %v2775 = vrot.slane %v2769, %v2774
      %v2776 = vadd.f32 %v2653, %v2775
      %v2777 = vadd.f32 %v2656, %v2775
      %v2778 = vadd.f32 %v2659, %v2775
      %v2779 = vadd.f32 %v2662, %v2775
      %v2780 = vadd.f32 %v2665, %v2775
      %v2781 = vadd.f32 %v2668, %v2775
      %v2782 = vadd.f32 %v2671, %v2775
      %v2783 = vadd.f32 %v2674, %v2775
      %vm2784 = vcmp.gt.f32.partialorder %v2776, 0.0
      %vm2785 = vcmp.gt.f32.partialorder %v2777, 0.0
      %vm2786 = vcmp.gt.f32.partialorder %v2778, 0.0
      %vm2787 = vcmp.gt.f32.partialorder %v2779, 0.0
      %vm2788 = vcmp.gt.f32.partialorder %v2780, 0.0
      %vm2789 = vcmp.gt.f32.partialorder %v2781, 0.0
      %vm2790 = vcmp.gt.f32.partialorder %v2782, 0.0
      %vm2791 = vcmp.gt.f32.partialorder %v2783, 0.0
      %v2792 = vmul.f32 %v2776, 0.2
      %v2793 = vmul.f32 %v2777, 0.2
      %v2794 = vmul.f32 %v2778, 0.2
      %v2795 = vmul.f32 %v2779, 0.2
      %v2796 = vmul.f32 %v2780, 0.2
      %v2797 = vmul.f32 %v2781, 0.2
      %v2798 = vmul.f32 %v2782, 0.2
      %v2799 = vmul.f32 %v2783, 0.2
      %v2800 = vsel %vm2784, %v2776, %v2792
      %v2801 = vsel %vm2785, %v2777, %v2793
      %v2802 = vsel %vm2786, %v2778, %v2794
      %v2803 = vsel %vm2787, %v2779, %v2795
      %v2804 = vsel %vm2788, %v2780, %v2796
      %v2805 = vsel %vm2789, %v2781, %v2797
      %v2806 = vsel %vm2790, %v2782, %v2798
      %v2807 = vsel %vm2791, %v2783, %v2799
      %v2808 = vsel %vm548, %v2800, -1e+30
      %v2809 = vsel %vm549, %v2801, -1e+30
      %v2810 = vsel %vm550, %v2802, -1e+30
      %v2811 = vsel %vm551, %v2803, -1e+30
      %v2812 = vsel %vm552, %v2804, -1e+30
      %v2813 = vsel %vm553, %v2805, -1e+30
      %v2814 = vsel %vm554, %v2806, -1e+30
      %v2815 = vsel %vm555, %v2807, -1e+30
      %v2816 = vsel %vm564, %v2808, -inf
      %2817 = vmax.xlane.f32.xlu0 %v2816
      %v2818 = vpop.xlane.xlu0 %2817
      %v2819 = vsel %vm564, %v2809, -inf
      %2820 = vmax.xlane.f32.xlu0 %v2819
      %v2821 = vpop.xlane.xlu0 %2820
      %v2822 = vsel %vm564, %v2810, -inf
      %2823 = vmax.xlane.f32.xlu0 %v2822
      %v2824 = vpop.xlane.xlu0 %2823
      %v2825 = vsel %vm564, %v2811, -inf
      %2826 = vmax.xlane.f32.xlu0 %v2825
      %v2827 = vpop.xlane.xlu0 %2826
      %v2828 = vsel %vm564, %v2812, -inf
      %2829 = vmax.xlane.f32.xlu0 %v2828
      %v2830 = vpop.xlane.xlu0 %2829
      %v2831 = vsel %vm564, %v2813, -inf
      %2832 = vmax.xlane.f32.xlu0 %v2831
      %v2833 = vpop.xlane.xlu0 %2832
      %v2834 = vsel %vm564, %v2814, -inf
      %2835 = vmax.xlane.f32.xlu0 %v2834
      %v2836 = vpop.xlane.xlu0 %2835
      %v2837 = vsel %vm564, %v2815, -inf
      %2838 = vmax.xlane.f32.xlu0 %v2837
      %v2839 = vpop.xlane.xlu0 %2838
      %v2840 = vsub.f32 %v2808, %v2818
      %v2841 = vsub.f32 %v2809, %v2821
      %v2842 = vsub.f32 %v2810, %v2824
      %v2843 = vsub.f32 %v2811, %v2827
      %v2844 = vsub.f32 %v2812, %v2830
      %v2845 = vsub.f32 %v2813, %v2833
      %v2846 = vsub.f32 %v2814, %v2836
      %v2847 = vsub.f32 %v2815, %v2839
      %v2848 = vmul.f32 %v2840, 1.442695
      %v2849 = vpow.pop %v2848
      %v2850 = vmul.f32 %v2841, 1.442695
      %v2851 = vpow.pop %v2850
      %v2852 = vmul.f32 %v2842, 1.442695
      %v2853 = vpow.pop %v2852
      %v2854 = vmul.f32 %v2843, 1.442695
      %v2855 = vpow.pop %v2854
      %v2856 = vmul.f32 %v2844, 1.442695
      %v2857 = vpow.pop %v2856
      %v2858 = vmul.f32 %v2845, 1.442695
      %v2859 = vpow.pop %v2858
      %v2860 = vmul.f32 %v2846, 1.442695
      %v2861 = vpow.pop %v2860
      %v2862 = vmul.f32 %v2847, 1.442695
      %v2863 = vpow.pop %v2862
      %v2864 = vmul.f32 %v2849, %v236
      %v2865 = vmul.f32 %v2851, %v237
      %v2866 = vmul.f32 %v2853, %v238
      %v2867 = vmul.f32 %v2855, %v239
      %v2868 = vmul.f32 %v2857, %v240
      %v2869 = vmul.f32 %v2859, %v241
      %v2870 = vmul.f32 %v2861, %v242
      %v2871 = vmul.f32 %v2863, %v243
      %v2872 = vsel %vm564, %v2864, 0.0
      %2873 = vadd.xlane.f32.xlu0 %v2872
      %v2874 = vpop.xlane.xlu0 %2873
      %v2875 = vsel %vm564, %v2865, 0.0
      %2876 = vadd.xlane.f32.xlu0 %v2875
      %v2877 = vpop.xlane.xlu0 %2876
      %v2878 = vsel %vm564, %v2866, 0.0
      %2879 = vadd.xlane.f32.xlu0 %v2878
      %v2880 = vpop.xlane.xlu0 %2879
      %v2881 = vsel %vm564, %v2867, 0.0
      %2882 = vadd.xlane.f32.xlu0 %v2881
      %v2883 = vpop.xlane.xlu0 %2882
      %v2884 = vsel %vm564, %v2868, 0.0
      %2885 = vadd.xlane.f32.xlu0 %v2884
      %v2886 = vpop.xlane.xlu0 %2885
      %v2887 = vsel %vm564, %v2869, 0.0
      %2888 = vadd.xlane.f32.xlu0 %v2887
      %v2889 = vpop.xlane.xlu0 %2888
      %v2890 = vsel %vm564, %v2870, 0.0
      %2891 = vadd.xlane.f32.xlu0 %v2890
      %v2892 = vpop.xlane.xlu0 %2891
      %v2893 = vsel %vm564, %v2871, 0.0
      %2894 = vadd.xlane.f32.xlu0 %v2893
      %v2895 = vpop.xlane.xlu0 %2894
      %vm2896 = vcmp.gt.f32.partialorder %v2874, 0.0
      %vm2897 = vcmp.gt.f32.partialorder %v2877, 0.0
      %vm2898 = vcmp.gt.f32.partialorder %v2880, 0.0
      %vm2899 = vcmp.gt.f32.partialorder %v2883, 0.0
      %vm2900 = vcmp.gt.f32.partialorder %v2886, 0.0
      %vm2901 = vcmp.gt.f32.partialorder %v2889, 0.0
      %vm2902 = vcmp.gt.f32.partialorder %v2892, 0.0
      %vm2903 = vcmp.gt.f32.partialorder %v2895, 0.0
      %v2904 = vsel %vm2896, %v2874, 1.0
      %v2905 = vsel %vm2897, %v2877, 1.0
      %v2906 = vsel %vm2898, %v2880, 1.0
      %v2907 = vsel %vm2899, %v2883, 1.0
      %v2908 = vsel %vm2900, %v2886, 1.0
      %v2909 = vsel %vm2901, %v2889, 1.0
      %v2910 = vsel %vm2902, %v2892, 1.0
      %v2911 = vsel %vm2903, %v2895, 1.0
      %v2912 = vrcp.pop %v2904
      %v2913 = vrcp.pop %v2905
      %v2914 = vrcp.pop %v2906
      %v2915 = vrcp.pop %v2907
      %v2916 = vrcp.pop %v2908
      %v2917 = vrcp.pop %v2909
      %v2918 = vrcp.pop %v2910
      %v2919 = vrcp.pop %v2911
      %v2920 = vmul.f32 %v2864, %v2912
      %v2921 = vmul.f32 %v2865, %v2913
      %v2922 = vmul.f32 %v2866, %v2914
      %v2923 = vmul.f32 %v2867, %v2915
      %v2924 = vmul.f32 %v2868, %v2916
      %v2925 = vmul.f32 %v2869, %v2917
      %v2926 = vmul.f32 %v2870, %v2918
      %v2927 = vmul.f32 %v2871, %v2919
      %v2928 = vlaneseq
      %v2929 = vshrl.u32 %v2928, 7
      %v2930 = vsub.s32 2, %v2929
      %v2931 = vrot.slane %v2509, %v2930
      %v2933 = vsel %vm564, %v2920, 0
      %v2936 = vsel %vm564, %v2921, 0
      %v2939 = vsel %vm564, %v2922, 0
      %v2942 = vsel %vm564, %v2923, 0
      %v2945 = vsel %vm564, %v2924, 0
      %v2948 = vsel %vm564, %v2925, 0
      %v2951 = vsel %vm564, %v2926, 0
      %v2954 = vsel %vm564, %v2927, 0
      %2956 = vmatprep.subr.mxu0 0.0
      %2957 = vmatpush1.msra.mxu0 0.0
      %2958 = vmatprep.subr.mxu0 0.0
      %2959 = vmatpush1.msra.mxu0 0.0
      %2960 = vmatprep.subr.mxu0 0.0
      %2961 = vmatpush1.msra.mxu0 0.0
      %2962 = vmatprep.subr.mxu0 0.0
      %2963 = vmatpush1.msra.mxu0 0.0
      %2964 = vmatprep.subr.mxu0 0.0
      %2965 = vmatpush1.msra.mxu0 0.0
      %2966 = vmatprep.subr.mxu0 0.0
      %2967 = vmatpush1.msra.mxu0 0.0
      %2968 = vmatprep.subr.mxu0 0.0
      %2969 = vmatpush1.msra.mxu0 0.0
      %2970 = vmatprep.subr.mxu0 0.0
      %2971 = vmatpush1.msra.mxu0 0.0
      %2972 = vmatprep.subr.mxu0 0.0
      %2973 = vmatpush1.msra.mxu0 %v2636
      %2974 = vmatprep.subr.mxu0 0.0
      %2975 = vmatpush1.msra.mxu0 %v2631
      %2976 = vmatprep.subr.mxu0 0.0
      %2977 = vmatpush1.msra.mxu0 %v2626
      %2978 = vmatprep.subr.mxu0 0.0
      %2979 = vmatpush1.msra.mxu0 %v2621
      %2980 = vmatprep.subr.mxu0 0.0
      %2981 = vmatpush1.msra.mxu0 %v2616
      %2982 = vmatprep.subr.mxu0 0.0
      %2983 = vmatpush1.msra.mxu0 %v2611
      %2984 = vmatprep.subr.mxu0 0.0
      %2985 = vmatpush1.msra.mxu0 %v2606
      %2986 = vmatprep.subr.mxu0 0.0
      %2987 = vmatpush1.msra.mxu0 %v2601
      %2988 = vmatprep.subr.mxu0 0.0
      %2989 = vmatpush2.msra.mxu0 0.0
      %2990 = vmatprep.subr.mxu0 0.0
      %2991 = vmatpush2.msra.mxu0 0.0
      %2992 = vmatprep.subr.mxu0 0.0
      %2993 = vmatpush2.msra.mxu0 0.0
      %2994 = vmatprep.subr.mxu0 0.0
      %2995 = vmatpush2.msra.mxu0 0.0
      %2996 = vmatprep.subr.mxu0 0.0
      %2997 = vmatpush2.msra.mxu0 0.0
      %2998 = vmatprep.subr.mxu0 0.0
      %2999 = vmatpush2.msra.mxu0 0.0
      %3000 = vmatprep.subr.mxu0 0.0
      %3001 = vmatpush2.msra.mxu0 0.0
      %3002 = vmatprep.subr.mxu0 0.0
      %3003 = vmatpush2.msra.mxu0 0.0
      %3004 = vmatprep.subr.mxu0 0.0
      %3005 = vmatpush2.msra.mxu0 0.0
      %3006 = vmatprep.subr.mxu0 0.0
      %3007 = vmatpush2.msra.mxu0 0.0
      %3008 = vmatprep.subr.mxu0 0.0
      %3009 = vmatpush2.msra.mxu0 0.0
      %3010 = vmatprep.subr.mxu0 0.0
      %3011 = vmatpush2.msra.mxu0 0.0
      %3012 = vmatprep.subr.mxu0 0.0
      %3013 = vmatpush2.msra.mxu0 0.0
      %3014 = vmatprep.subr.mxu0 0.0
      %3015 = vmatpush2.msra.mxu0 0.0
      %3016 = vmatprep.subr.mxu0 0.0
      %3017 = vmatpush2.msra.mxu0 0.0
      %3018 = vmatprep.subr.mxu0 0.0
      %3019 = vmatpush2.msra.mxu0 0.0
      %3020 = vmatprep.mubr.f32.mxu0 0.0
      %3021 = vmatmul.mubr.f32.gmra.mxu0 %v2933
      %v3022 = vpop.f32.mrf.mxu0
      %v3023 = vadd.f32 %v2931, %v3022
      %v3024 = vpop.f32.mrf.mxu0
      %3025 = vmatprep.mubr.f32.mxu0 0.0
      %3026 = vmatmul.mubr.f32.gmra.mxu0 %v2936
      %v3027 = vpop.f32.mrf.mxu0
      %v3028 = vadd.f32 %v2931, %v3027
      %v3029 = vpop.f32.mrf.mxu0
      %3030 = vmatprep.mubr.f32.mxu0 0.0
      %3031 = vmatmul.mubr.f32.gmra.mxu0 %v2939
      %v3032 = vpop.f32.mrf.mxu0
      %v3033 = vadd.f32 %v2931, %v3032
      %v3034 = vpop.f32.mrf.mxu0
      %3035 = vmatprep.mubr.f32.mxu0 0.0
      %3036 = vmatmul.mubr.f32.gmra.mxu0 %v2942
      %v3037 = vpop.f32.mrf.mxu0
      %v3038 = vadd.f32 %v2931, %v3037
      %v3039 = vpop.f32.mrf.mxu0
      %3040 = vmatprep.mubr.f32.mxu0 0.0
      %3041 = vmatmul.mubr.f32.gmra.mxu0 %v2945
      %v3042 = vpop.f32.mrf.mxu0
      %v3043 = vadd.f32 %v2931, %v3042
      %v3044 = vpop.f32.mrf.mxu0
      %3045 = vmatprep.mubr.f32.mxu0 0.0
      %3046 = vmatmul.mubr.f32.gmra.mxu0 %v2948
      %v3047 = vpop.f32.mrf.mxu0
      %v3048 = vadd.f32 %v2931, %v3047
      %v3049 = vpop.f32.mrf.mxu0
      %3050 = vmatprep.mubr.f32.mxu0 0.0
      %3051 = vmatmul.mubr.f32.gmra.mxu0 %v2951
      %v3052 = vpop.f32.mrf.mxu0
      %v3053 = vadd.f32 %v2931, %v3052
      %v3054 = vpop.f32.mrf.mxu0
      %3055 = vmatprep.mubr.f32.mxu0 0.0
      %3056 = vmatmul.mubr.f32.gmra.mxu0 %v2954
      %v3057 = vpop.f32.mrf.mxu0
      %v3058 = vadd.f32 %v2931, %v3057
      %v3059 = vpop.f32.mrf.mxu0
      %3060 = vdwg.mxu0
      %v3061 = vsel %vm249, %v3023, 0.0
      %3062 = vadd.xlane.f32.xlu0 %v3061
      %v3063 = vpop.xlane.xlu0 %3062
      %v3064 = vsel %vm249, %v3028, 0.0
      %3065 = vadd.xlane.f32.xlu0 %v3064
      %v3066 = vpop.xlane.xlu0 %3065
      %v3067 = vsel %vm249, %v3033, 0.0
      %3068 = vadd.xlane.f32.xlu0 %v3067
      %v3069 = vpop.xlane.xlu0 %3068
      %v3070 = vsel %vm249, %v3038, 0.0
      %3071 = vadd.xlane.f32.xlu0 %v3070
      %v3072 = vpop.xlane.xlu0 %3071
      %v3073 = vsel %vm249, %v3043, 0.0
      %3074 = vadd.xlane.f32.xlu0 %v3073
      %v3075 = vpop.xlane.xlu0 %3074
      %v3076 = vsel %vm249, %v3048, 0.0
      %3077 = vadd.xlane.f32.xlu0 %v3076
      %v3078 = vpop.xlane.xlu0 %3077
      %v3079 = vsel %vm249, %v3053, 0.0
      %3080 = vadd.xlane.f32.xlu0 %v3079
      %v3081 = vpop.xlane.xlu0 %3080
      %v3082 = vsel %vm249, %v3058, 0.0
      %3083 = vadd.xlane.f32.xlu0 %v3082
      %v3084 = vpop.xlane.xlu0 %3083
      %v3085 = vmul.f32 %v3063, %v834
      %v3086 = vmul.f32 %v3066, %v834
      %v3087 = vmul.f32 %v3069, %v834
      %v3088 = vmul.f32 %v3072, %v834
      %v3089 = vmul.f32 %v3075, %v834
      %v3090 = vmul.f32 %v3078, %v834
      %v3091 = vmul.f32 %v3081, %v834
      %v3092 = vmul.f32 %v3084, %v834
      %v3093 = vmul.f32 %v3023, %v3023
      %v3094 = vmul.f32 %v3028, %v3028
      %v3095 = vmul.f32 %v3033, %v3033
      %v3096 = vmul.f32 %v3038, %v3038
      %v3097 = vmul.f32 %v3043, %v3043
      %v3098 = vmul.f32 %v3048, %v3048
      %v3099 = vmul.f32 %v3053, %v3053
      %v3100 = vmul.f32 %v3058, %v3058
      %v3101 = vsel %vm249, %v3093, 0.0
      %3102 = vadd.xlane.f32.xlu0 %v3101
      %v3103 = vpop.xlane.xlu0 %3102
      %v3104 = vsel %vm249, %v3094, 0.0
      %3105 = vadd.xlane.f32.xlu0 %v3104
      %v3106 = vpop.xlane.xlu0 %3105
      %v3107 = vsel %vm249, %v3095, 0.0
      %3108 = vadd.xlane.f32.xlu0 %v3107
      %v3109 = vpop.xlane.xlu0 %3108
      %v3110 = vsel %vm249, %v3096, 0.0
      %3111 = vadd.xlane.f32.xlu0 %v3110
      %v3112 = vpop.xlane.xlu0 %3111
      %v3113 = vsel %vm249, %v3097, 0.0
      %3114 = vadd.xlane.f32.xlu0 %v3113
      %v3115 = vpop.xlane.xlu0 %3114
      %v3116 = vsel %vm249, %v3098, 0.0
      %3117 = vadd.xlane.f32.xlu0 %v3116
      %v3118 = vpop.xlane.xlu0 %3117
      %v3119 = vsel %vm249, %v3099, 0.0
      %3120 = vadd.xlane.f32.xlu0 %v3119
      %v3121 = vpop.xlane.xlu0 %3120
      %v3122 = vsel %vm249, %v3100, 0.0
      %3123 = vadd.xlane.f32.xlu0 %v3122
      %v3124 = vpop.xlane.xlu0 %3123
      %v3125 = vmul.f32 %v3103, %v834
      %v3126 = vmul.f32 %v3106, %v834
      %v3127 = vmul.f32 %v3109, %v834
      %v3128 = vmul.f32 %v3112, %v834
      %v3129 = vmul.f32 %v3115, %v834
      %v3130 = vmul.f32 %v3118, %v834
      %v3131 = vmul.f32 %v3121, %v834
      %v3132 = vmul.f32 %v3124, %v834
      %v3133 = vmul.f32 %v3085, %v3085
      %v3134 = vmul.f32 %v3086, %v3086
      %v3135 = vmul.f32 %v3087, %v3087
      %v3136 = vmul.f32 %v3088, %v3088
      %v3137 = vmul.f32 %v3089, %v3089
      %v3138 = vmul.f32 %v3090, %v3090
      %v3139 = vmul.f32 %v3091, %v3091
      %v3140 = vmul.f32 %v3092, %v3092
      %v3141 = vsub.f32 %v3125, %v3133
      %v3142 = vsub.f32 %v3126, %v3134
      %v3143 = vsub.f32 %v3127, %v3135
      %v3144 = vsub.f32 %v3128, %v3136
      %v3145 = vsub.f32 %v3129, %v3137
      %v3146 = vsub.f32 %v3130, %v3138
      %v3147 = vsub.f32 %v3131, %v3139
      %v3148 = vsub.f32 %v3132, %v3140
      %v3149 = vmax.f32 %v3141, 0.0
      %v3150 = vmax.f32 %v3142, 0.0
      %v3151 = vmax.f32 %v3143, 0.0
      %v3152 = vmax.f32 %v3144, 0.0
      %v3153 = vmax.f32 %v3145, 0.0
      %v3154 = vmax.f32 %v3146, 0.0
      %v3155 = vmax.f32 %v3147, 0.0
      %v3156 = vmax.f32 %v3148, 0.0
      %v3157 = vsub.f32 %v3023, %v3085
      %v3158 = vsub.f32 %v3028, %v3086
      %v3159 = vsub.f32 %v3033, %v3087
      %v3160 = vsub.f32 %v3038, %v3088
      %v3161 = vsub.f32 %v3043, %v3089
      %v3162 = vsub.f32 %v3048, %v3090
      %v3163 = vsub.f32 %v3053, %v3091
      %v3164 = vsub.f32 %v3058, %v3092
      %v3165 = vadd.f32 %v3149, 1e-05
      %v3166 = vadd.f32 %v3150, 1e-05
      %v3167 = vadd.f32 %v3151, 1e-05
      %v3168 = vadd.f32 %v3152, 1e-05
      %v3169 = vadd.f32 %v3153, 1e-05
      %v3170 = vadd.f32 %v3154, 1e-05
      %v3171 = vadd.f32 %v3155, 1e-05
      %v3172 = vadd.f32 %v3156, 1e-05
      %v3173 = vrsqrt.pop %v3165
      %v3174 = vrsqrt.pop %v3166
      %v3175 = vrsqrt.pop %v3167
      %v3176 = vrsqrt.pop %v3168
      %v3177 = vrsqrt.pop %v3169
      %v3178 = vrsqrt.pop %v3170
      %v3179 = vrsqrt.pop %v3171
      %v3180 = vrsqrt.pop %v3172
      %v3181 = vmul.f32 %v3157, %v3173
      %v3182 = vmul.f32 %v3158, %v3174
      %v3183 = vmul.f32 %v3159, %v3175
      %v3184 = vmul.f32 %v3160, %v3176
      %v3185 = vmul.f32 %v3161, %v3177
      %v3186 = vmul.f32 %v3162, %v3178
      %v3187 = vmul.f32 %v3163, %v3179
      %v3188 = vmul.f32 %v3164, %v3180
      %v3189 = vlaneseq
      %v3190 = vshrl.u32 %v3189, 7
      %v3191 = vsub.s32 3, %v3190
      %v3192 = vrot.slane %v2509, %v3191
      %v3193 = vmul.f32 %v3181, %v3192
      %v3194 = vmul.f32 %v3182, %v3192
      %v3195 = vmul.f32 %v3183, %v3192
      %v3196 = vmul.f32 %v3184, %v3192
      %v3197 = vmul.f32 %v3185, %v3192
      %v3198 = vmul.f32 %v3186, %v3192
      %v3199 = vmul.f32 %v3187, %v3192
      %v3200 = vmul.f32 %v3188, %v3192
      %v3201 = vlaneseq
      %v3202 = vshrl.u32 %v3201, 7
      %v3203 = vsub.s32 4, %v3202
      %v3204 = vrot.slane %v2509, %v3203
      %v3205 = vadd.f32 %v3193, %v3204
      %v3206 = vadd.f32 %v3194, %v3204
      %v3207 = vadd.f32 %v3195, %v3204
      %v3208 = vadd.f32 %v3196, %v3204
      %v3209 = vadd.f32 %v3197, %v3204
      %v3210 = vadd.f32 %v3198, %v3204
      %v3211 = vadd.f32 %v3199, %v3204
      %v3212 = vadd.f32 %v3200, %v3204
      %vm3213 = vcmp.gt.f32.partialorder %v3205, 0.0
      %vm3214 = vcmp.gt.f32.partialorder %v3206, 0.0
      %vm3215 = vcmp.gt.f32.partialorder %v3207, 0.0
      %vm3216 = vcmp.gt.f32.partialorder %v3208, 0.0
      %vm3217 = vcmp.gt.f32.partialorder %v3209, 0.0
      %vm3218 = vcmp.gt.f32.partialorder %v3210, 0.0
      %vm3219 = vcmp.gt.f32.partialorder %v3211, 0.0
      %vm3220 = vcmp.gt.f32.partialorder %v3212, 0.0
      %v3221 = vmul.f32 %v3205, 0.01
      %v3222 = vmul.f32 %v3206, 0.01
      %v3223 = vmul.f32 %v3207, 0.01
      %v3224 = vmul.f32 %v3208, 0.01
      %v3225 = vmul.f32 %v3209, 0.01
      %v3226 = vmul.f32 %v3210, 0.01
      %v3227 = vmul.f32 %v3211, 0.01
      %v3228 = vmul.f32 %v3212, 0.01
      %v3229 = vsel %vm3213, %v3205, %v3221
      %v3230 = vsel %vm3214, %v3206, %v3222
      %v3231 = vsel %vm3215, %v3207, %v3223
      %v3232 = vsel %vm3216, %v3208, %v3224
      %v3233 = vsel %vm3217, %v3209, %v3225
      %v3234 = vsel %vm3218, %v3210, %v3226
      %v3235 = vsel %vm3219, %v3211, %v3227
      %v3236 = vsel %vm3220, %v3212, %v3228
      %v3237 = vmul.f32 %v3229, 0.5
      %v3238 = vmul.f32 %v3230, 0.5
      %v3239 = vmul.f32 %v3231, 0.5
      %v3240 = vmul.f32 %v3232, 0.5
      %v3241 = vmul.f32 %v3233, 0.5
      %v3242 = vmul.f32 %v3234, 0.5
      %v3243 = vmul.f32 %v3235, 0.5
      %v3244 = vmul.f32 %v3236, 0.5
      %v3245 = vadd.f32 %v2495, %v3237
      %v3246 = vadd.f32 %v2496, %v3238
      %v3247 = vadd.f32 %v2497, %v3239
      %v3248 = vadd.f32 %v2498, %v3240
      %v3249 = vadd.f32 %v2499, %v3241
      %v3250 = vadd.f32 %v2500, %v3242
      %v3251 = vadd.f32 %v2501, %v3243
      %v3252 = vadd.f32 %v2502, %v3244
      %3253 = vst.msk [vmem:[%s217] sm:$0xff] %vm249, %v3245
      %3254 = vst.msk [vmem:[%s217 + $0x8] sm:$0xff] %vm249, %v3246
      %3255 = vst.msk [vmem:[%s217 + $0x10] sm:$0xff] %vm249, %v3247
      %3256 = vst.msk [vmem:[%s217 + $0x18] sm:$0xff] %vm249, %v3248
      %3257 = vst.msk [vmem:[%s217 + $0x20] sm:$0xff] %vm249, %v3249
      %3258 = vst.msk [vmem:[%s217 + $0x28] sm:$0xff] %vm249, %v3250
      %3259 = vst.msk [vmem:[%s217 + $0x30] sm:$0xff] %vm249, %v3251
      %3260 = vst.msk [vmem:[%s217 + $0x38] sm:$0xff] %vm249, %v3252
      %p3261 = scmp.lt.s32.totalorder %s15, 1
      %s3262 = scalar_select %p3261, %s15, 1
      %s3263 = smul.addr %s3262, 8
      %s3264 = smul.addr %s3263, 8
      %s3265 = scalar_lea.vmem %s4, %s3264
      // Predicated region
      $region37: #{tpu_custom_call.1} parent=35 // pred_check
        %p3266 = pneg %p127
      $region38: #{tpu_custom_call.1} parent=35 // pred_check_branch
        %3268 = sbr.rel (%p3266) target = $region40
      $region39: #{tpu_custom_call.1} parent=35 // pred_region
        _
      $region40: #{tpu_custom_call.1} parent=35 // pred_fallthru
        _
    $region36: #{tpu_custom_call.1} parent=5 // pred_fallthru
      _
    %p3269 = scmp.le.s32.totalorder 2, %s10
    // Predicated region
    $region41: #{tpu_custom_call.1} parent=5 // pred_check
      %p3270 = pneg %p3269
    $region42: #{tpu_custom_call.1} parent=5 // pred_check_branch
      %3272 = sbr.rel (%p3270) target = $region44
    $region43: #{tpu_custom_call.1} parent=5 // pred_region
      %s3273 = ssub.s32 %s10, 2
      // Predicated region
      $region45: #{tpu_custom_call.1} parent=43 // pred_check
        %p3274 = pneg %p133
      $region46: #{tpu_custom_call.1} parent=43 // pred_check_branch
        %3276 = sbr.rel (%p3274) target = $region48
      $region47: #{tpu_custom_call.1} parent=43 // pred_region
        %p3277 = scmp.lt.s32.totalorder %s16, 1
        %s3278 = scalar_select %p3277, %s16, 1
        %s3279 = smul.addr %s3278, 8
        %s3280 = smul.addr %s3279, 8
        %s3281 = scalar_lea.vmem %s4, %s3280
      $region48: #{tpu_custom_call.1} parent=43 // pred_fallthru
        _
    $region44: #{tpu_custom_call.1} parent=5 // pred_fallthru
      _
  $region6: #{tpu_custom_call.1} parent=0 // loop_footer
    %s14 = sadd.s32 1, %s10
  $region7: #{tpu_custom_call.1} parent=0 // loop_footer_branch
    %9 = sbr.rel target = $region3
  $region8: #{tpu_custom_call.1} parent=0 // loop_exit
    _

</llo_original>
